<compile_context>
chip_gen: v7x
topology: tpu7x:2x2x1
jax: 0.10.0
libtpu: 0.0.40
codegen_flags: <defaults>
</compile_context>

<pallas_src>
import functools

import jax
import jax.numpy as jnp
from jax.experimental import pallas as pl
from jax.experimental.pallas import tpu as pltpu

# ---------------- small config consistent with the module's forward ---------
B = 2                      # batch
IN_CHANS = 4               # channels
IMG = 16                   # image height = width
PATCH = 8                  # patch size
EMBED_DIM = 32             # embed_dim
DEPTH = 2                  # depth
NUM_HEADS = 4              # num_heads
MLP_RATIO = 4.0
NUM_CLASSES = 0            # -> head = nn.Identity(); forward returns norm(x)[:, 0]

HEAD_DIM = EMBED_DIM // NUM_HEADS          # 8
HIDDEN = int(EMBED_DIM * MLP_RATIO)        # 128
NUM_PATCHES = (IMG // PATCH) ** 2          # 4
SEQ = NUM_PATCHES + 1                      # 5 (cls token first)
PATCH_DIM = IN_CHANS * PATCH * PATCH       # 256
HN = NUM_HEADS * SEQ                       # 20: flattened (token, head) score axis
NUM_VEC = 10                               # packed per-block (D,)-vectors
LN_EPS = 1e-5                              # nn.LayerNorm default eps
W_DTYPE = jnp.bfloat16                     # weight-slab / MXU-operand dtype
BIGW_LANES = 4 * EMBED_DIM + HIDDEN        # [wqkv(3D) | wo(D) | w1(HIDDEN)] = 256

# NOTE: if this is ever scaled to a real ViT (D=768, SEQ=197, DEPTH=12) the
# all-weights-resident design must be replaced by a depth-axis weight pipeline
# (weights alone would exceed v7x's 64 MiB VMEM).


# ---------------------------- in-kernel helper --------------------------------
def _layernorm(x, w, b, eps=LN_EPS):
    mu = jnp.mean(x, axis=-1, keepdims=True)
    xc = x - mu
    var = jnp.mean(xc * xc, axis=-1, keepdims=True)
    return xc * jax.lax.rsqrt(var + eps) * w + b


# ---------------------------- fused forward kernel ----------------------------
def _vit_forward_kernel(patches_ref, patch_w_ref, tok_ref, bigw_ref, w2_ref,
                        vec_ref, b1_ref, idxd_ref, idxhn_ref, out_ref):
    f32 = jnp.float32
    nb = patches_ref.shape[0]          # images processed in this grid step

    # ----- resident constant index matrices (built once in pack_params) ------
    seg_mean = idxd_ref[0:EMBED_DIM, :]                  # (D, D) block-diag 1/hd
    mask_v = idxd_ref[EMBED_DIM:EMBED_DIM + HN, :]       # (HN, D) head feature mask
    seg_sum = idxhn_ref[:, 0:HN]                         # (HN, HN) same-head sum
    rep_mat = idxhn_ref[:, HN:HN + SEQ]                  # (HN, SEQ) per-head row rep

    add_tok = tok_ref[0:SEQ, :]                          # cls/pos/bias additive slab
    fln_w = tok_ref[SEQ:SEQ + 1, :]                      # final LayerNorm weight
    fln_b = tok_ref[SEQ + 1:SEQ + 2, :]                  # final LayerNorm bias

    # ----- patch embedding + cls token + positional embedding ----------------
    # Row 0 of `patches` is all-zero (wrapper pads), so the matmul yields 0 in
    # the cls slot and add_tok row 0 (= cls_token + pos[0]) supplies the cls
    # token directly: no in-kernel concatenate / partial stores.
    xs = []
    for b in range(nb):
        p = patches_ref[b].astype(W_DTYPE)
        xs.append(jnp.dot(p, patch_w_ref[...], preferred_element_type=f32)
                  + add_tok)                             # (SEQ, D)

    for d in range(DEPTH):                               # static unroll
        vec = vec_ref[d]                                 # (NUM_VEC, D)
        ln1_w, ln1_b = vec[0:1], vec[1:2]
        qn_w, qn_b = vec[2:3], vec[3:4]   # tiled over heads, pre-scaled by hd**-0.5
        kn_w, kn_b = vec[4:5], vec[5:6]   # tiled over heads
        bo = vec[6:7]
        ln2_w, ln2_b = vec[7:8], vec[8:9]
        b2 = vec[9:10]

        # merged per-block weight slab (bf16): [wqkv | wo | w1] along lanes
        wqkv = bigw_ref[d, :, 0:3 * EMBED_DIM]
        wo = bigw_ref[d, :, 3 * EMBED_DIM:4 * EMBED_DIM]
        w1 = bigw_ref[d, :, 4 * EMBED_DIM:4 * EMBED_DIM + HIDDEN]
        w2 = w2_ref[d]
        b1 = b1_ref[d]

        for b in range(nb):
            x = xs[b]

            # ---------------- attention (qkv_bias=False, qk_norm=True) -------
            h = _layernorm(x, ln1_w, ln1_b)
            qkv = jnp.dot(h.astype(W_DTYPE), wqkv,
                          preferred_element_type=f32)                  # (SEQ, 3D)
            q = qkv[:, 0:EMBED_DIM]
            k = qkv[:, EMBED_DIM:2 * EMBED_DIM]
            v = qkv[:, 2 * EMBED_DIM:3 * EMBED_DIM]

            # per-head LayerNorm on q/k for ALL heads at once (segment matmuls);
            # var = E[x^2] - mean^2 so the two stats matmuls are independent.
            q_mu = jnp.dot(q, seg_mean, preferred_element_type=f32)
            q_ms = jnp.dot(q * q, seg_mean, preferred_element_type=f32)
            q_var = jnp.maximum(q_ms - q_mu * q_mu, 0.0)
            q_n = (q - q_mu) * jax.lax.rsqrt(q_var + LN_EPS) * qn_w + qn_b

            k_mu = jnp.dot(k, seg_mean, preferred_element_type=f32)
            k_ms = jnp.dot(k * k, seg_mean, preferred_element_type=f32)
            k_var = jnp.maximum(k_ms - k_mu * k_mu, 0.0)
            k_n = (k - k_mu) * jax.lax.rsqrt(k_var + LN_EPS) * kn_w + kn_b

            # all-head attention via rank-2 matmuls only: k/v replicated per
            # head along the HN lane axis, masked to their own feature lanes.
            k_big = jnp.dot(rep_mat, k_n, preferred_element_type=f32) * mask_v
            v_big = jnp.dot(rep_mat, v, preferred_element_type=f32) * mask_v
            s = jax.lax.dot_general(q_n, k_big, (((1,), (1,)), ((), ())),
                                    preferred_element_type=f32)        # (SEQ, HN)
            s = s - jnp.max(s, axis=-1, keepdims=True)
            e = jnp.exp(s)
            den = jnp.dot(e, seg_sum, preferred_element_type=f32)      # per-head sums
            den = jnp.maximum(den, 1e-20)        # guard approx reciprocal vs underflow
            p_attn = e * pl.reciprocal(den, approx=True)
            attn = jnp.dot(p_attn, v_big, preferred_element_type=f32)  # (SEQ, D)

            x = x + jnp.dot(attn.astype(W_DTYPE), wo,
                            preferred_element_type=f32) + bo

            # ---------------- MLP ----------------
            h2 = _layernorm(x, ln2_w, ln2_b)
            h2 = jnp.dot(h2.astype(W_DTYPE), w1, preferred_element_type=f32) + b1
            # TODO(synk): PyTorch nn.GELU default is erf-exact; using the tanh
            # approximation (Mosaic-safe), ~1e-3 difference.
            h2 = jax.nn.gelu(h2, approximate=True)
            h2 = jnp.dot(h2.astype(W_DTYPE), w2, preferred_element_type=f32) + b2
            xs[b] = x + h2

    # ----- final LayerNorm, cls token only (LN is token-wise) ----------------
    for b in range(nb):
        out_ref[b] = _layernorm(xs[b][0:1, :], fln_w, fln_b)


# ---------------------------- pallas_call wrapper ------------------------------
def _const_spec(shape):
    n = len(shape)
    return pl.BlockSpec(shape, lambda i, _n=n: (0,) * _n)


def vit_forward_fused(patches, pk, multi_core):
    if multi_core:
        # v7x / megacore: one image per TensorCore.
        grid = (B,)
        pat_spec = pl.BlockSpec((1, SEQ, PATCH_DIM), lambda i: (i, 0, 0))
        out_spec = pl.BlockSpec((1, 1, EMBED_DIM), lambda i: (i, 0, 0))
    else:
        # single-TC v5e/v6e: fold the whole batch into one grid step.
        grid = (1,)
        pat_spec = pl.BlockSpec((B, SEQ, PATCH_DIM), lambda i: (0, 0, 0))
        out_spec = pl.BlockSpec((B, 1, EMBED_DIM), lambda i: (0, 0, 0))

    out = pl.pallas_call(
        _vit_forward_kernel,
        out_shape=jax.ShapeDtypeStruct((B, 1, EMBED_DIM), jnp.float32),
        grid=grid,
        in_specs=[
            pat_spec,                                                 # per-image patches
            _const_spec((PATCH_DIM, EMBED_DIM)),                      # patch proj weight (bf16)
            _const_spec((SEQ + 2, EMBED_DIM)),                        # cls/pos/bias + final LN
            _const_spec((DEPTH, EMBED_DIM, BIGW_LANES)),              # [wqkv|wo|w1] (bf16)
            _const_spec((DEPTH, HIDDEN, EMBED_DIM)),                  # fc2 (bf16)
            _const_spec((DEPTH, NUM_VEC, EMBED_DIM)),                 # packed (D,)-vectors
            _const_spec((DEPTH, 1, HIDDEN)),                          # fc1 bias
            _const_spec((EMBED_DIM + HN, EMBED_DIM)),                 # [seg_mean ; mask_v]
            _const_spec((HN, HN + SEQ)),                              # [seg_sum | rep_mat]
        ],
        out_specs=out_spec,
        compiler_params=pltpu.CompilerParams(
            dimension_semantics=("parallel",)),
    )(patches, pk["patch_w"], pk["tok"], pk["big_w"], pk["w2"],
      pk["vecs"], pk["b1"], pk["idx_d"], pk["idx_hn"])
    return out[:, 0, :]


# ---------------------------- glue (plain JAX) --------------------------------
def extract_patches(x):
    # x: (B, C, H, W) NCHW -> (B, num_patches, C*p*p); flatten order (C, ph, pw)
    # matches the flattening of a PyTorch Conv2d weight (D, C, p, p).
    b, c, h, w = x.shape
    hp, wp = h // PATCH, w // PATCH
    x = x.reshape(b, c, hp, PATCH, wp, PATCH)
    x = x.transpose(0, 2, 4, 1, 3, 5)                   # (B, hp, wp, C, p, p)
    return x.reshape(b, hp * wp, c * PATCH * PATCH)


def init_params(key):
    """Deterministic synthetic init (timm-style: std=0.02 weights, zero biases,
    cls token std=1e-6, pos_embed std=0.02, LayerNorm weight=1 / bias=0)."""
    ks = jax.random.split(key, 3 + DEPTH)
    p = {
        "patch_w": 0.02 * jax.random.normal(ks[0], (PATCH_DIM, EMBED_DIM), jnp.float32),
        "patch_b": jnp.zeros((EMBED_DIM,), jnp.float32),
        "cls": 1e-6 * jax.random.normal(ks[1], (1, EMBED_DIM), jnp.float32),
        "pos": 0.02 * jax.random.normal(ks[2], (SEQ, EMBED_DIM), jnp.float32),
        "norm_w": jnp.ones((EMBED_DIM,), jnp.float32),
        "norm_b": jnp.zeros((EMBED_DIM,), jnp.float32),
        "blocks": [],
    }
    for d in range(DEPTH):
        bk = jax.random.split(ks[3 + d], 4)
        p["blocks"].append(dict(
            ln1_w=jnp.ones((EMBED_DIM,), jnp.float32),
            ln1_b=jnp.zeros((EMBED_DIM,), jnp.float32),
            wqkv=0.02 * jax.random.normal(bk[0], (EMBED_DIM, 3 * EMBED_DIM), jnp.float32),
            qn_w=jnp.ones((HEAD_DIM,), jnp.float32),
            qn_b=jnp.zeros((HEAD_DIM,), jnp.float32),
            kn_w=jnp.ones((HEAD_DIM,), jnp.float32),
            kn_b=jnp.zeros((HEAD_DIM,), jnp.float32),
            wo=0.02 * jax.random.normal(bk[1], (EMBED_DIM, EMBED_DIM), jnp.float32),
            bo=jnp.zeros((EMBED_DIM,), jnp.float32),
            ln2_w=jnp.ones((EMBED_DIM,), jnp.float32),
            ln2_b=jnp.zeros((EMBED_DIM,), jnp.float32),
            w1=0.02 * jax.random.normal(bk[2], (EMBED_DIM, HIDDEN), jnp.float32),
            b1=jnp.zeros((HIDDEN,), jnp.float32),
            w2=0.02 * jax.random.normal(bk[3], (HIDDEN, EMBED_DIM), jnp.float32),
            b2=jnp.zeros((EMBED_DIM,), jnp.float32),
        ))
    return p


def pack_params(p):
    """Wrapper-side layout plumbing: fold cls/pos/patch-bias (+ final LN) into
    one token slab, tile + pre-scale the shared per-head qk-norm vectors across
    heads (folding in the hd**-0.5 attention scale), merge per-block matrices
    into a single bf16 lane slab per block plus fc2, pack the ten (D,)-vectors
    per block into one slab, and build the constant index matrices once here
    (hoisted out of the kernel)."""
    scale = HEAD_DIM ** -0.5
    add_tok = jnp.concatenate(
        [p["cls"] + p["pos"][0:1],                        # cls slot
         p["pos"][1:] + p["patch_b"][None, :]], axis=0)   # patch slots (+ conv bias)
    tok = jnp.concatenate(
        [add_tok, p["norm_w"][None, :], p["norm_b"][None, :]], axis=0)  # (SEQ+2, D)

    def tile(v):  # (HEAD_DIM,) -> (EMBED_DIM,): same LN weights for every head
        return jnp.tile(v, NUM_HEADS)

    big_w, w2, vecs, b1 = [], [], [], []
    for blk in p["blocks"]:
        big_w.append(jnp.concatenate([blk["wqkv"], blk["wo"], blk["w1"]], axis=1))
        w2.append(blk["w2"])
        b1.append(blk["b1"][None, :])
        vecs.append(jnp.stack([
            blk["ln1_w"], blk["ln1_b"],
            tile(blk["qn_w"]) * scale, tile(blk["qn_b"]) * scale,
            tile(blk["kn_w"]), tile(blk["kn_b"]),
            blk["bo"], blk["ln2_w"], blk["ln2_b"], blk["b2"],
        ], axis=0))                                       # (NUM_VEC, D)

    # ----- constant index matrices (hoisted; plain %/// so any NUM_HEADS works)
    rows = jnp.arange(EMBED_DIM)
    seg_mean = jnp.where(
        (rows[:, None] // HEAD_DIM) == (rows[None, :] // HEAD_DIM),
        1.0 / HEAD_DIM, 0.0).astype(jnp.float32)                      # (D, D)
    c = jnp.arange(HN)
    dd = jnp.arange(EMBED_DIM)
    jj = jnp.arange(SEQ)
    mask_v = ((c[:, None] % NUM_HEADS) == (dd[None, :] // HEAD_DIM)
              ).astype(jnp.float32)                                   # (HN, D)
    rep_mat = ((c[:, None] // NUM_HEADS) == jj[None, :]
               ).astype(jnp.float32)                                  # (HN, SEQ)
    seg_sum = ((c[:, None] % NUM_HEADS) == (c[None, :] % NUM_HEADS)
               ).astype(jnp.float32)                                  # (HN, HN)

    return dict(
        patch_w=p["patch_w"].astype(W_DTYPE),             # (PATCH_DIM, D) bf16
        tok=tok,                                          # (SEQ+2, D)
        big_w=jnp.stack(big_w).astype(W_DTYPE),           # (DEPTH, D, 4D+HIDDEN) bf16
        w2=jnp.stack(w2).astype(W_DTYPE),                 # (DEPTH, HIDDEN, D) bf16
        vecs=jnp.stack(vecs),                             # (DEPTH, NUM_VEC, D)
        b1=jnp.stack(b1),                                 # (DEPTH, 1, HIDDEN)
        idx_d=jnp.concatenate([seg_mean, mask_v], axis=0),    # (D+HN, D)
        idx_hn=jnp.concatenate([seg_sum, rep_mat], axis=1),   # (HN, HN+SEQ)
    )


def vision_transformer_forward(packed, x, multi_core=False):
    """Mirrors VisionTransformer.forward with default args (router=None,
    dropout p=0 -> identity, num_classes=0 -> head=Identity, img_size matches
    so interpolate_pos_encoding is a no-op returning pos_embed)."""
    patches = extract_patches(x).astype(jnp.float32)        # (B, Np, C*p*p)  XLA glue
    # zero row in the cls slot so the in-kernel patch matmul leaves it 0 and
    # the additive slab supplies cls_token + pos[0] without any concatenate.
    patches = jnp.pad(patches, ((0, 0), (1, 0), (0, 0)))    # (B, SEQ, C*p*p)
    return vit_forward_fused(patches, packed, multi_core)


def _multi_tensorcore() -> bool:
    """True on chips with >1 TensorCore per device (v7x, v4/v5p megacore);
    perf-only heuristic — either branch is numerically identical."""
    try:
        kind = jax.devices()[0].device_kind.lower()
    except Exception:
        return False
    return ("v7" in kind) or ("v5p" in kind) or ("v4" in kind and "lite" not in kind)


if __name__ == "__main__":
    key = jax.random.PRNGKey(0)
    pkey, xkey = jax.random.split(key)
    params = init_params(pkey)
    packed = pack_params(params)
    x = jax.random.normal(xkey, (B, IN_CHANS, IMG, IMG), jnp.float32)   # NCHW like PyTorch
    mc = _multi_tensorcore()
    forward = jax.jit(functools.partial(vision_transformer_forward, multi_core=mc))
    out = forward(packed, x)
    out = jax.block_until_ready(out)
    assert out.shape == (B, EMBED_DIM) and out.dtype == jnp.float32
    assert bool(jnp.all(jnp.isfinite(out)))
    print("KERNEL_OK")
</pallas_src>

<mosaic_0001>
module attributes {stable_mosaic.version = 11 : i64} {
  func.func @_vit_forward_kernel(%arg0: i32, %arg1: memref<2x5x256xf32, #tpu.memory_space<vmem>>, %arg2: memref<256x32xbf16, #tpu.memory_space<vmem>>, %arg3: memref<7x32xf32, #tpu.memory_space<vmem>>, %arg4: memref<2x32x256xbf16, #tpu.memory_space<vmem>>, %arg5: memref<2x128x32xbf16, #tpu.memory_space<vmem>>, %arg6: memref<2x10x32xf32, #tpu.memory_space<vmem>>, %arg7: memref<2x1x128xf32, #tpu.memory_space<vmem>>, %arg8: memref<52x32xf32, #tpu.memory_space<vmem>>, %arg9: memref<20x25xf32, #tpu.memory_space<vmem>>, %arg10: memref<2x1x32xf32, #tpu.memory_space<vmem>>) attributes {dimension_semantics = [#tpu.dimension_semantics<parallel>], iteration_bounds = array<i64: 1>, scalar_prefetch = 0 : i64, scratch_operands = 0 : i64, tpu.core_type = #tpu.core_type<tc>, window_params = [{pipeline_mode = #tpu.pipeline_mode<synchronous>, transform_indices = @transform_0, window_bounds = array<i64: 2, 5, 256>}, {pipeline_mode = #tpu.pipeline_mode<synchronous>, transform_indices = @transform_1, window_bounds = array<i64: 256, 32>}, {pipeline_mode = #tpu.pipeline_mode<synchronous>, transform_indices = @transform_2, window_bounds = array<i64: 7, 32>}, {pipeline_mode = #tpu.pipeline_mode<synchronous>, transform_indices = @transform_3, window_bounds = array<i64: 2, 32, 256>}, {pipeline_mode = #tpu.pipeline_mode<synchronous>, transform_indices = @transform_4, window_bounds = array<i64: 2, 128, 32>}, {pipeline_mode = #tpu.pipeline_mode<synchronous>, transform_indices = @transform_5, window_bounds = array<i64: 2, 10, 32>}, {pipeline_mode = #tpu.pipeline_mode<synchronous>, transform_indices = @transform_6, window_bounds = array<i64: 2, 1, 128>}, {pipeline_mode = #tpu.pipeline_mode<synchronous>, transform_indices = @transform_7, window_bounds = array<i64: 52, 32>}, {pipeline_mode = #tpu.pipeline_mode<synchronous>, transform_indices = @transform_8, window_bounds = array<i64: 20, 25>}, {pipeline_mode = #tpu.pipeline_mode<synchronous>, transform_indices = @transform_9, window_bounds = array<i64: 2, 1, 32>}]} {
    %c0 = arith.constant 0 : index
    %c0_0 = arith.constant 0 : index
    %0 = vector.load %arg8[%c0, %c0_0] : memref<52x32xf32, #tpu.memory_space<vmem>>, vector<32x32xf32>
    %c32 = arith.constant 32 : index
    %c0_1 = arith.constant 0 : index
    %1 = vector.load %arg8[%c32, %c0_1] : memref<52x32xf32, #tpu.memory_space<vmem>>, vector<20x32xf32>
    %c0_2 = arith.constant 0 : index
    %c0_3 = arith.constant 0 : index
    %2 = vector.load %arg9[%c0_2, %c0_3] : memref<20x25xf32, #tpu.memory_space<vmem>>, vector<20x20xf32>
    %c0_4 = arith.constant 0 : index
    %c20 = arith.constant 20 : index
    %3 = vector.load %arg9[%c0_4, %c20] : memref<20x25xf32, #tpu.memory_space<vmem>>, vector<20x5xf32>
    %c0_5 = arith.constant 0 : index
    %c0_6 = arith.constant 0 : index
    %4 = vector.load %arg3[%c0_5, %c0_6] : memref<7x32xf32, #tpu.memory_space<vmem>>, vector<5x32xf32>
    %c5 = arith.constant 5 : index
    %c0_7 = arith.constant 0 : index
    %5 = vector.load %arg3[%c5, %c0_7] : memref<7x32xf32, #tpu.memory_space<vmem>>, vector<1x32xf32>
    %c6 = arith.constant 6 : index
    %c0_8 = arith.constant 0 : index
    %6 = vector.load %arg3[%c6, %c0_8] : memref<7x32xf32, #tpu.memory_space<vmem>>, vector<1x32xf32>
    %c0_9 = arith.constant 0 : index
    %c0_10 = arith.constant 0 : index
    %c0_11 = arith.constant 0 : index
    %7 = vector.load %arg1[%c0_9, %c0_10, %c0_11] : memref<2x5x256xf32, #tpu.memory_space<vmem>>, vector<1x5x256xf32>
    %8 = vector.shape_cast %7 : vector<1x5x256xf32> to vector<5x256xf32>
    %9 = arith.truncf %8 : vector<5x256xf32> to vector<5x256xbf16>
    %c0_12 = arith.constant 0 : index
    %c0_13 = arith.constant 0 : index
    %10 = vector.load %arg2[%c0_12, %c0_13] : memref<256x32xbf16, #tpu.memory_space<vmem>>, vector<256x32xbf16>
    %cst = arith.constant dense<0.000000e+00> : vector<5x32xf32>
    %11 = tpu.matmul %9, %10, %cst {dimension_numbers = #tpu.dot_dimension_numbers<[1], [0], [0], [1], [0, 0, 1, 1], [], []>} : vector<5x256xbf16>, vector<256x32xbf16>, vector<5x32xf32> -> vector<5x32xf32>
    %12 = arith.addf %11, %4 : vector<5x32xf32>
    %c1 = arith.constant 1 : index
    %c0_14 = arith.constant 0 : index
    %c0_15 = arith.constant 0 : index
    %13 = vector.load %arg1[%c1, %c0_14, %c0_15] : memref<2x5x256xf32, #tpu.memory_space<vmem>>, vector<1x5x256xf32>
    %14 = vector.shape_cast %13 : vector<1x5x256xf32> to vector<5x256xf32>
    %15 = arith.truncf %14 : vector<5x256xf32> to vector<5x256xbf16>
    %c0_16 = arith.constant 0 : index
    %c0_17 = arith.constant 0 : index
    %16 = vector.load %arg2[%c0_16, %c0_17] : memref<256x32xbf16, #tpu.memory_space<vmem>>, vector<256x32xbf16>
    %cst_18 = arith.constant dense<0.000000e+00> : vector<5x32xf32>
    %17 = tpu.matmul %15, %16, %cst_18 {dimension_numbers = #tpu.dot_dimension_numbers<[1], [0], [0], [1], [0, 0, 1, 1], [], []>} : vector<5x256xbf16>, vector<256x32xbf16>, vector<5x32xf32> -> vector<5x32xf32>
    %18 = arith.addf %17, %4 : vector<5x32xf32>
    %c0_19 = arith.constant 0 : index
    %c0_20 = arith.constant 0 : index
    %c0_21 = arith.constant 0 : index
    %19 = vector.load %arg6[%c0_19, %c0_20, %c0_21] : memref<2x10x32xf32, #tpu.memory_space<vmem>>, vector<1x10x32xf32>
    %20 = vector.shape_cast %19 : vector<1x10x32xf32> to vector<10x32xf32>
    %21 = vector.extract_strided_slice %20 {offsets = [0, 0], sizes = [1, 32], strides = [1, 1]} : vector<10x32xf32> to vector<1x32xf32>
    %22 = vector.extract_strided_slice %20 {offsets = [1, 0], sizes = [1, 32], strides = [1, 1]} : vector<10x32xf32> to vector<1x32xf32>
    %23 = vector.extract_strided_slice %20 {offsets = [2, 0], sizes = [1, 32], strides = [1, 1]} : vector<10x32xf32> to vector<1x32xf32>
    %24 = vector.extract_strided_slice %20 {offsets = [3, 0], sizes = [1, 32], strides = [1, 1]} : vector<10x32xf32> to vector<1x32xf32>
    %25 = vector.extract_strided_slice %20 {offsets = [4, 0], sizes = [1, 32], strides = [1, 1]} : vector<10x32xf32> to vector<1x32xf32>
    %26 = vector.extract_strided_slice %20 {offsets = [5, 0], sizes = [1, 32], strides = [1, 1]} : vector<10x32xf32> to vector<1x32xf32>
    %27 = vector.extract_strided_slice %20 {offsets = [6, 0], sizes = [1, 32], strides = [1, 1]} : vector<10x32xf32> to vector<1x32xf32>
    %28 = vector.extract_strided_slice %20 {offsets = [7, 0], sizes = [1, 32], strides = [1, 1]} : vector<10x32xf32> to vector<1x32xf32>
    %29 = vector.extract_strided_slice %20 {offsets = [8, 0], sizes = [1, 32], strides = [1, 1]} : vector<10x32xf32> to vector<1x32xf32>
    %30 = vector.extract_strided_slice %20 {offsets = [9, 0], sizes = [1, 32], strides = [1, 1]} : vector<10x32xf32> to vector<1x32xf32>
    %c0_22 = arith.constant 0 : index
    %c0_23 = arith.constant 0 : index
    %c0_24 = arith.constant 0 : index
    %31 = vector.load %arg4[%c0_22, %c0_23, %c0_24] : memref<2x32x256xbf16, #tpu.memory_space<vmem>>, vector<1x32x96xbf16>
    %32 = vector.shape_cast %31 : vector<1x32x96xbf16> to vector<32x96xbf16>
    %c0_25 = arith.constant 0 : index
    %c0_26 = arith.constant 0 : index
    %c96 = arith.constant 96 : index
    %33 = vector.load %arg4[%c0_25, %c0_26, %c96] : memref<2x32x256xbf16, #tpu.memory_space<vmem>>, vector<1x32x32xbf16>
    %34 = vector.shape_cast %33 : vector<1x32x32xbf16> to vector<32x32xbf16>
    %c0_27 = arith.constant 0 : index
    %c0_28 = arith.constant 0 : index
    %c128 = arith.constant 128 : index
    %35 = vector.load %arg4[%c0_27, %c0_28, %c128] : memref<2x32x256xbf16, #tpu.memory_space<vmem>>, vector<1x32x128xbf16>
    %36 = vector.shape_cast %35 : vector<1x32x128xbf16> to vector<32x128xbf16>
    %c0_29 = arith.constant 0 : index
    %c0_30 = arith.constant 0 : index
    %c0_31 = arith.constant 0 : index
    %37 = vector.load %arg5[%c0_29, %c0_30, %c0_31] : memref<2x128x32xbf16, #tpu.memory_space<vmem>>, vector<1x128x32xbf16>
    %38 = vector.shape_cast %37 : vector<1x128x32xbf16> to vector<128x32xbf16>
    %c0_32 = arith.constant 0 : index
    %c0_33 = arith.constant 0 : index
    %c0_34 = arith.constant 0 : index
    %39 = vector.load %arg7[%c0_32, %c0_33, %c0_34] : memref<2x1x128xf32, #tpu.memory_space<vmem>>, vector<1x1x128xf32>
    %40 = vector.shape_cast %39 : vector<1x1x128xf32> to vector<1x128xf32>
    %cst_35 = arith.constant dense<0.000000e+00> : vector<5xf32>
    %41 = vector.multi_reduction <add>, %12, %cst_35 [1] : vector<5x32xf32> to vector<5xf32>
    %42 = vector.shape_cast %41 : vector<5xf32> to vector<5x1xf32>
    %cst_36 = arith.constant 3.200000e+01 : f32
    %43 = vector.broadcast %cst_36 : f32 to vector<5x1xf32>
    %44 = arith.divf %42, %43 : vector<5x1xf32>
    %45 = vector.broadcast %44 : vector<5x1xf32> to vector<5x32xf32>
    %46 = arith.subf %12, %45 : vector<5x32xf32>
    %47 = arith.mulf %46, %46 : vector<5x32xf32>
    %cst_37 = arith.constant dense<0.000000e+00> : vector<5xf32>
    %48 = vector.multi_reduction <add>, %47, %cst_37 [1] : vector<5x32xf32> to vector<5xf32>
    %49 = vector.shape_cast %48 : vector<5xf32> to vector<5x1xf32>
    %cst_38 = arith.constant 3.200000e+01 : f32
    %50 = vector.broadcast %cst_38 : f32 to vector<5x1xf32>
    %51 = arith.divf %49, %50 : vector<5x1xf32>
    %cst_39 = arith.constant 9.99999974E-6 : f32
    %52 = vector.broadcast %cst_39 : f32 to vector<5x1xf32>
    %53 = arith.addf %51, %52 : vector<5x1xf32>
    %54 = math.rsqrt %53 : vector<5x1xf32>
    %55 = vector.broadcast %54 : vector<5x1xf32> to vector<5x32xf32>
    %56 = arith.mulf %46, %55 : vector<5x32xf32>
    %57 = vector.broadcast %21 : vector<1x32xf32> to vector<5x32xf32>
    %58 = arith.mulf %56, %57 : vector<5x32xf32>
    %59 = vector.broadcast %22 : vector<1x32xf32> to vector<5x32xf32>
    %60 = arith.addf %58, %59 : vector<5x32xf32>
    %61 = arith.truncf %60 : vector<5x32xf32> to vector<5x32xbf16>
    %cst_40 = arith.constant dense<0.000000e+00> : vector<5x96xf32>
    %62 = tpu.matmul %61, %32, %cst_40 {dimension_numbers = #tpu.dot_dimension_numbers<[1], [0], [0], [1], [0, 0, 1, 1], [], []>} : vector<5x32xbf16>, vector<32x96xbf16>, vector<5x96xf32> -> vector<5x96xf32>
    %63 = vector.extract_strided_slice %62 {offsets = [0, 0], sizes = [5, 32], strides = [1, 1]} : vector<5x96xf32> to vector<5x32xf32>
    %64 = vector.extract_strided_slice %62 {offsets = [0, 32], sizes = [5, 32], strides = [1, 1]} : vector<5x96xf32> to vector<5x32xf32>
    %65 = vector.extract_strided_slice %62 {offsets = [0, 64], sizes = [5, 32], strides = [1, 1]} : vector<5x96xf32> to vector<5x32xf32>
    %cst_41 = arith.constant dense<0.000000e+00> : vector<5x32xf32>
    %66 = tpu.matmul %63, %0, %cst_41 {dimension_numbers = #tpu.dot_dimension_numbers<[1], [0], [0], [1], [0, 0, 1, 1], [], []>} : vector<5x32xf32>, vector<32x32xf32>, vector<5x32xf32> -> vector<5x32xf32>
    %67 = arith.mulf %63, %63 : vector<5x32xf32>
    %cst_42 = arith.constant dense<0.000000e+00> : vector<5x32xf32>
    %68 = tpu.matmul %67, %0, %cst_42 {dimension_numbers = #tpu.dot_dimension_numbers<[1], [0], [0], [1], [0, 0, 1, 1], [], []>} : vector<5x32xf32>, vector<32x32xf32>, vector<5x32xf32> -> vector<5x32xf32>
    %69 = arith.mulf %66, %66 : vector<5x32xf32>
    %70 = arith.subf %68, %69 : vector<5x32xf32>
    %cst_43 = arith.constant 0.000000e+00 : f32
    %71 = vector.broadcast %cst_43 : f32 to vector<5x32xf32>
    %72 = arith.maximumf %70, %71 : vector<5x32xf32>
    %73 = arith.subf %63, %66 : vector<5x32xf32>
    %cst_44 = arith.constant 9.99999974E-6 : f32
    %74 = vector.broadcast %cst_44 : f32 to vector<5x32xf32>
    %75 = arith.addf %72, %74 : vector<5x32xf32>
    %76 = math.rsqrt %75 : vector<5x32xf32>
    %77 = arith.mulf %73, %76 : vector<5x32xf32>
    %78 = vector.broadcast %23 : vector<1x32xf32> to vector<5x32xf32>
    %79 = arith.mulf %77, %78 : vector<5x32xf32>
    %80 = vector.broadcast %24 : vector<1x32xf32> to vector<5x32xf32>
    %81 = arith.addf %79, %80 : vector<5x32xf32>
    %cst_45 = arith.constant dense<0.000000e+00> : vector<5x32xf32>
    %82 = tpu.matmul %64, %0, %cst_45 {dimension_numbers = #tpu.dot_dimension_numbers<[1], [0], [0], [1], [0, 0, 1, 1], [], []>} : vector<5x32xf32>, vector<32x32xf32>, vector<5x32xf32> -> vector<5x32xf32>
    %83 = arith.mulf %64, %64 : vector<5x32xf32>
    %cst_46 = arith.constant dense<0.000000e+00> : vector<5x32xf32>
    %84 = tpu.matmul %83, %0, %cst_46 {dimension_numbers = #tpu.dot_dimension_numbers<[1], [0], [0], [1], [0, 0, 1, 1], [], []>} : vector<5x32xf32>, vector<32x32xf32>, vector<5x32xf32> -> vector<5x32xf32>
    %85 = arith.mulf %82, %82 : vector<5x32xf32>
    %86 = arith.subf %84, %85 : vector<5x32xf32>
    %cst_47 = arith.constant 0.000000e+00 : f32
    %87 = vector.broadcast %cst_47 : f32 to vector<5x32xf32>
    %88 = arith.maximumf %86, %87 : vector<5x32xf32>
    %89 = arith.subf %64, %82 : vector<5x32xf32>
    %cst_48 = arith.constant 9.99999974E-6 : f32
    %90 = vector.broadcast %cst_48 : f32 to vector<5x32xf32>
    %91 = arith.addf %88, %90 : vector<5x32xf32>
    %92 = math.rsqrt %91 : vector<5x32xf32>
    %93 = arith.mulf %89, %92 : vector<5x32xf32>
    %94 = vector.broadcast %25 : vector<1x32xf32> to vector<5x32xf32>
    %95 = arith.mulf %93, %94 : vector<5x32xf32>
    %96 = vector.broadcast %26 : vector<1x32xf32> to vector<5x32xf32>
    %97 = arith.addf %95, %96 : vector<5x32xf32>
    %cst_49 = arith.constant dense<0.000000e+00> : vector<20x32xf32>
    %98 = tpu.matmul %3, %97, %cst_49 {dimension_numbers = #tpu.dot_dimension_numbers<[1], [0], [0], [1], [0, 0, 1, 1], [], []>} : vector<20x5xf32>, vector<5x32xf32>, vector<20x32xf32> -> vector<20x32xf32>
    %99 = arith.mulf %98, %1 : vector<20x32xf32>
    %cst_50 = arith.constant dense<0.000000e+00> : vector<20x32xf32>
    %100 = tpu.matmul %3, %65, %cst_50 {dimension_numbers = #tpu.dot_dimension_numbers<[1], [0], [0], [1], [0, 0, 1, 1], [], []>} : vector<20x5xf32>, vector<5x32xf32>, vector<20x32xf32> -> vector<20x32xf32>
    %101 = arith.mulf %100, %1 : vector<20x32xf32>
    %cst_51 = arith.constant dense<0.000000e+00> : vector<5x20xf32>
    %102 = tpu.matmul %81, %99, %cst_51 {dimension_numbers = #tpu.dot_dimension_numbers<[1], [1], [0], [0], [0, 0, 1, 0], [], []>} : vector<5x32xf32>, vector<20x32xf32>, vector<5x20xf32> -> vector<5x20xf32>
    %cst_52 = arith.constant dense<0xFF800000> : vector<5xf32>
    %103 = vector.multi_reduction <maximumf>, %102, %cst_52 [1] : vector<5x20xf32> to vector<5xf32>
    %104 = vector.shape_cast %103 : vector<5xf32> to vector<5x1xf32>
    %105 = vector.broadcast %104 : vector<5x1xf32> to vector<5x20xf32>
    %106 = arith.subf %102, %105 : vector<5x20xf32>
    %107 = math.exp %106 : vector<5x20xf32>
    %cst_53 = arith.constant dense<0.000000e+00> : vector<5x20xf32>
    %108 = tpu.matmul %107, %2, %cst_53 {dimension_numbers = #tpu.dot_dimension_numbers<[1], [0], [0], [1], [0, 0, 1, 1], [], []>} : vector<5x20xf32>, vector<20x20xf32>, vector<5x20xf32> -> vector<5x20xf32>
    %cst_54 = arith.constant 9.99999968E-21 : f32
    %109 = vector.broadcast %cst_54 : f32 to vector<5x20xf32>
    %110 = arith.maximumf %108, %109 : vector<5x20xf32>
    %111 = tpu.reciprocal %110 {approx = true} : vector<5x20xf32> -> vector<5x20xf32>
    %112 = arith.mulf %107, %111 : vector<5x20xf32>
    %cst_55 = arith.constant dense<0.000000e+00> : vector<5x32xf32>
    %113 = tpu.matmul %112, %101, %cst_55 {dimension_numbers = #tpu.dot_dimension_numbers<[1], [0], [0], [1], [0, 0, 1, 1], [], []>} : vector<5x20xf32>, vector<20x32xf32>, vector<5x32xf32> -> vector<5x32xf32>
    %114 = arith.truncf %113 : vector<5x32xf32> to vector<5x32xbf16>
    %cst_56 = arith.constant dense<0.000000e+00> : vector<5x32xf32>
    %115 = tpu.matmul %114, %34, %cst_56 {dimension_numbers = #tpu.dot_dimension_numbers<[1], [0], [0], [1], [0, 0, 1, 1], [], []>} : vector<5x32xbf16>, vector<32x32xbf16>, vector<5x32xf32> -> vector<5x32xf32>
    %116 = arith.addf %12, %115 : vector<5x32xf32>
    %117 = vector.broadcast %27 : vector<1x32xf32> to vector<5x32xf32>
    %118 = arith.addf %116, %117 : vector<5x32xf32>
    %cst_57 = arith.constant dense<0.000000e+00> : vector<5xf32>
    %119 = vector.multi_reduction <add>, %118, %cst_57 [1] : vector<5x32xf32> to vector<5xf32>
    %120 = vector.shape_cast %119 : vector<5xf32> to vector<5x1xf32>
    %cst_58 = arith.constant 3.200000e+01 : f32
    %121 = vector.broadcast %cst_58 : f32 to vector<5x1xf32>
    %122 = arith.divf %120, %121 : vector<5x1xf32>
    %123 = vector.broadcast %122 : vector<5x1xf32> to vector<5x32xf32>
    %124 = arith.subf %118, %123 : vector<5x32xf32>
    %125 = arith.mulf %124, %124 : vector<5x32xf32>
    %cst_59 = arith.constant dense<0.000000e+00> : vector<5xf32>
    %126 = vector.multi_reduction <add>, %125, %cst_59 [1] : vector<5x32xf32> to vector<5xf32>
    %127 = vector.shape_cast %126 : vector<5xf32> to vector<5x1xf32>
    %cst_60 = arith.constant 3.200000e+01 : f32
    %128 = vector.broadcast %cst_60 : f32 to vector<5x1xf32>
    %129 = arith.divf %127, %128 : vector<5x1xf32>
    %cst_61 = arith.constant 9.99999974E-6 : f32
    %130 = vector.broadcast %cst_61 : f32 to vector<5x1xf32>
    %131 = arith.addf %129, %130 : vector<5x1xf32>
    %132 = math.rsqrt %131 : vector<5x1xf32>
    %133 = vector.broadcast %132 : vector<5x1xf32> to vector<5x32xf32>
    %134 = arith.mulf %124, %133 : vector<5x32xf32>
    %135 = vector.broadcast %28 : vector<1x32xf32> to vector<5x32xf32>
    %136 = arith.mulf %134, %135 : vector<5x32xf32>
    %137 = vector.broadcast %29 : vector<1x32xf32> to vector<5x32xf32>
    %138 = arith.addf %136, %137 : vector<5x32xf32>
    %139 = arith.truncf %138 : vector<5x32xf32> to vector<5x32xbf16>
    %cst_62 = arith.constant dense<0.000000e+00> : vector<5x128xf32>
    %140 = tpu.matmul %139, %36, %cst_62 {dimension_numbers = #tpu.dot_dimension_numbers<[1], [0], [0], [1], [0, 0, 1, 1], [], []>} : vector<5x32xbf16>, vector<32x128xbf16>, vector<5x128xf32> -> vector<5x128xf32>
    %141 = vector.broadcast %40 : vector<1x128xf32> to vector<5x128xf32>
    %142 = arith.addf %140, %141 : vector<5x128xf32>
    %143 = arith.mulf %142, %142 : vector<5x128xf32>
    %144 = arith.mulf %142, %143 : vector<5x128xf32>
    %cst_63 = arith.constant 4.471500e-02 : f32
    %145 = vector.broadcast %cst_63 : f32 to vector<5x128xf32>
    %146 = arith.mulf %145, %144 : vector<5x128xf32>
    %147 = arith.addf %142, %146 : vector<5x128xf32>
    %cst_64 = arith.constant 0.797884583 : f32
    %148 = vector.broadcast %cst_64 : f32 to vector<5x128xf32>
    %149 = arith.mulf %148, %147 : vector<5x128xf32>
    %150 = math.tanh %149 : vector<5x128xf32>
    %cst_65 = arith.constant 1.000000e+00 : f32
    %151 = vector.broadcast %cst_65 : f32 to vector<5x128xf32>
    %152 = arith.addf %151, %150 : vector<5x128xf32>
    %cst_66 = arith.constant 5.000000e-01 : f32
    %153 = vector.broadcast %cst_66 : f32 to vector<5x128xf32>
    %154 = arith.mulf %153, %152 : vector<5x128xf32>
    %155 = arith.mulf %142, %154 : vector<5x128xf32>
    %156 = arith.truncf %155 : vector<5x128xf32> to vector<5x128xbf16>
    %cst_67 = arith.constant dense<0.000000e+00> : vector<5x32xf32>
    %157 = tpu.matmul %156, %38, %cst_67 {dimension_numbers = #tpu.dot_dimension_numbers<[1], [0], [0], [1], [0, 0, 1, 1], [], []>} : vector<5x128xbf16>, vector<128x32xbf16>, vector<5x32xf32> -> vector<5x32xf32>
    %158 = vector.broadcast %30 : vector<1x32xf32> to vector<5x32xf32>
    %159 = arith.addf %157, %158 : vector<5x32xf32>
    %160 = arith.addf %118, %159 : vector<5x32xf32>
    %cst_68 = arith.constant dense<0.000000e+00> : vector<5xf32>
    %161 = vector.multi_reduction <add>, %18, %cst_68 [1] : vector<5x32xf32> to vector<5xf32>
    %162 = vector.shape_cast %161 : vector<5xf32> to vector<5x1xf32>
    %cst_69 = arith.constant 3.200000e+01 : f32
    %163 = vector.broadcast %cst_69 : f32 to vector<5x1xf32>
    %164 = arith.divf %162, %163 : vector<5x1xf32>
    %165 = vector.broadcast %164 : vector<5x1xf32> to vector<5x32xf32>
    %166 = arith.subf %18, %165 : vector<5x32xf32>
    %167 = arith.mulf %166, %166 : vector<5x32xf32>
    %cst_70 = arith.constant dense<0.000000e+00> : vector<5xf32>
    %168 = vector.multi_reduction <add>, %167, %cst_70 [1] : vector<5x32xf32> to vector<5xf32>
    %169 = vector.shape_cast %168 : vector<5xf32> to vector<5x1xf32>
    %cst_71 = arith.constant 3.200000e+01 : f32
    %170 = vector.broadcast %cst_71 : f32 to vector<5x1xf32>
    %171 = arith.divf %169, %170 : vector<5x1xf32>
    %cst_72 = arith.constant 9.99999974E-6 : f32
    %172 = vector.broadcast %cst_72 : f32 to vector<5x1xf32>
    %173 = arith.addf %171, %172 : vector<5x1xf32>
    %174 = math.rsqrt %173 : vector<5x1xf32>
    %175 = vector.broadcast %174 : vector<5x1xf32> to vector<5x32xf32>
    %176 = arith.mulf %166, %175 : vector<5x32xf32>
    %177 = vector.broadcast %21 : vector<1x32xf32> to vector<5x32xf32>
    %178 = arith.mulf %176, %177 : vector<5x32xf32>
    %179 = vector.broadcast %22 : vector<1x32xf32> to vector<5x32xf32>
    %180 = arith.addf %178, %179 : vector<5x32xf32>
    %181 = arith.truncf %180 : vector<5x32xf32> to vector<5x32xbf16>
    %cst_73 = arith.constant dense<0.000000e+00> : vector<5x96xf32>
    %182 = tpu.matmul %181, %32, %cst_73 {dimension_numbers = #tpu.dot_dimension_numbers<[1], [0], [0], [1], [0, 0, 1, 1], [], []>} : vector<5x32xbf16>, vector<32x96xbf16>, vector<5x96xf32> -> vector<5x96xf32>
    %183 = vector.extract_strided_slice %182 {offsets = [0, 0], sizes = [5, 32], strides = [1, 1]} : vector<5x96xf32> to vector<5x32xf32>
    %184 = vector.extract_strided_slice %182 {offsets = [0, 32], sizes = [5, 32], strides = [1, 1]} : vector<5x96xf32> to vector<5x32xf32>
    %185 = vector.extract_strided_slice %182 {offsets = [0, 64], sizes = [5, 32], strides = [1, 1]} : vector<5x96xf32> to vector<5x32xf32>
    %cst_74 = arith.constant dense<0.000000e+00> : vector<5x32xf32>
    %186 = tpu.matmul %183, %0, %cst_74 {dimension_numbers = #tpu.dot_dimension_numbers<[1], [0], [0], [1], [0, 0, 1, 1], [], []>} : vector<5x32xf32>, vector<32x32xf32>, vector<5x32xf32> -> vector<5x32xf32>
    %187 = arith.mulf %183, %183 : vector<5x32xf32>
    %cst_75 = arith.constant dense<0.000000e+00> : vector<5x32xf32>
    %188 = tpu.matmul %187, %0, %cst_75 {dimension_numbers = #tpu.dot_dimension_numbers<[1], [0], [0], [1], [0, 0, 1, 1], [], []>} : vector<5x32xf32>, vector<32x32xf32>, vector<5x32xf32> -> vector<5x32xf32>
    %189 = arith.mulf %186, %186 : vector<5x32xf32>
    %190 = arith.subf %188, %189 : vector<5x32xf32>
    %cst_76 = arith.constant 0.000000e+00 : f32
    %191 = vector.broadcast %cst_76 : f32 to vector<5x32xf32>
    %192 = arith.maximumf %190, %191 : vector<5x32xf32>
    %193 = arith.subf %183, %186 : vector<5x32xf32>
    %cst_77 = arith.constant 9.99999974E-6 : f32
    %194 = vector.broadcast %cst_77 : f32 to vector<5x32xf32>
    %195 = arith.addf %192, %194 : vector<5x32xf32>
    %196 = math.rsqrt %195 : vector<5x32xf32>
    %197 = arith.mulf %193, %196 : vector<5x32xf32>
    %198 = vector.broadcast %23 : vector<1x32xf32> to vector<5x32xf32>
    %199 = arith.mulf %197, %198 : vector<5x32xf32>
    %200 = vector.broadcast %24 : vector<1x32xf32> to vector<5x32xf32>
    %201 = arith.addf %199, %200 : vector<5x32xf32>
    %cst_78 = arith.constant dense<0.000000e+00> : vector<5x32xf32>
    %202 = tpu.matmul %184, %0, %cst_78 {dimension_numbers = #tpu.dot_dimension_numbers<[1], [0], [0], [1], [0, 0, 1, 1], [], []>} : vector<5x32xf32>, vector<32x32xf32>, vector<5x32xf32> -> vector<5x32xf32>
    %203 = arith.mulf %184, %184 : vector<5x32xf32>
    %cst_79 = arith.constant dense<0.000000e+00> : vector<5x32xf32>
    %204 = tpu.matmul %203, %0, %cst_79 {dimension_numbers = #tpu.dot_dimension_numbers<[1], [0], [0], [1], [0, 0, 1, 1], [], []>} : vector<5x32xf32>, vector<32x32xf32>, vector<5x32xf32> -> vector<5x32xf32>
    %205 = arith.mulf %202, %202 : vector<5x32xf32>
    %206 = arith.subf %204, %205 : vector<5x32xf32>
    %cst_80 = arith.constant 0.000000e+00 : f32
    %207 = vector.broadcast %cst_80 : f32 to vector<5x32xf32>
    %208 = arith.maximumf %206, %207 : vector<5x32xf32>
    %209 = arith.subf %184, %202 : vector<5x32xf32>
    %cst_81 = arith.constant 9.99999974E-6 : f32
    %210 = vector.broadcast %cst_81 : f32 to vector<5x32xf32>
    %211 = arith.addf %208, %210 : vector<5x32xf32>
    %212 = math.rsqrt %211 : vector<5x32xf32>
    %213 = arith.mulf %209, %212 : vector<5x32xf32>
    %214 = vector.broadcast %25 : vector<1x32xf32> to vector<5x32xf32>
    %215 = arith.mulf %213, %214 : vector<5x32xf32>
    %216 = vector.broadcast %26 : vector<1x32xf32> to vector<5x32xf32>
    %217 = arith.addf %215, %216 : vector<5x32xf32>
    %cst_82 = arith.constant dense<0.000000e+00> : vector<20x32xf32>
    %218 = tpu.matmul %3, %217, %cst_82 {dimension_numbers = #tpu.dot_dimension_numbers<[1], [0], [0], [1], [0, 0, 1, 1], [], []>} : vector<20x5xf32>, vector<5x32xf32>, vector<20x32xf32> -> vector<20x32xf32>
    %219 = arith.mulf %218, %1 : vector<20x32xf32>
    %cst_83 = arith.constant dense<0.000000e+00> : vector<20x32xf32>
    %220 = tpu.matmul %3, %185, %cst_83 {dimension_numbers = #tpu.dot_dimension_numbers<[1], [0], [0], [1], [0, 0, 1, 1], [], []>} : vector<20x5xf32>, vector<5x32xf32>, vector<20x32xf32> -> vector<20x32xf32>
    %221 = arith.mulf %220, %1 : vector<20x32xf32>
    %cst_84 = arith.constant dense<0.000000e+00> : vector<5x20xf32>
    %222 = tpu.matmul %201, %219, %cst_84 {dimension_numbers = #tpu.dot_dimension_numbers<[1], [1], [0], [0], [0, 0, 1, 0], [], []>} : vector<5x32xf32>, vector<20x32xf32>, vector<5x20xf32> -> vector<5x20xf32>
    %cst_85 = arith.constant dense<0xFF800000> : vector<5xf32>
    %223 = vector.multi_reduction <maximumf>, %222, %cst_85 [1] : vector<5x20xf32> to vector<5xf32>
    %224 = vector.shape_cast %223 : vector<5xf32> to vector<5x1xf32>
    %225 = vector.broadcast %224 : vector<5x1xf32> to vector<5x20xf32>
    %226 = arith.subf %222, %225 : vector<5x20xf32>
    %227 = math.exp %226 : vector<5x20xf32>
    %cst_86 = arith.constant dense<0.000000e+00> : vector<5x20xf32>
    %228 = tpu.matmul %227, %2, %cst_86 {dimension_numbers = #tpu.dot_dimension_numbers<[1], [0], [0], [1], [0, 0, 1, 1], [], []>} : vector<5x20xf32>, vector<20x20xf32>, vector<5x20xf32> -> vector<5x20xf32>
    %cst_87 = arith.constant 9.99999968E-21 : f32
    %229 = vector.broadcast %cst_87 : f32 to vector<5x20xf32>
    %230 = arith.maximumf %228, %229 : vector<5x20xf32>
    %231 = tpu.reciprocal %230 {approx = true} : vector<5x20xf32> -> vector<5x20xf32>
    %232 = arith.mulf %227, %231 : vector<5x20xf32>
    %cst_88 = arith.constant dense<0.000000e+00> : vector<5x32xf32>
    %233 = tpu.matmul %232, %221, %cst_88 {dimension_numbers = #tpu.dot_dimension_numbers<[1], [0], [0], [1], [0, 0, 1, 1], [], []>} : vector<5x20xf32>, vector<20x32xf32>, vector<5x32xf32> -> vector<5x32xf32>
    %234 = arith.truncf %233 : vector<5x32xf32> to vector<5x32xbf16>
    %cst_89 = arith.constant dense<0.000000e+00> : vector<5x32xf32>
    %235 = tpu.matmul %234, %34, %cst_89 {dimension_numbers = #tpu.dot_dimension_numbers<[1], [0], [0], [1], [0, 0, 1, 1], [], []>} : vector<5x32xbf16>, vector<32x32xbf16>, vector<5x32xf32> -> vector<5x32xf32>
    %236 = arith.addf %18, %235 : vector<5x32xf32>
    %237 = vector.broadcast %27 : vector<1x32xf32> to vector<5x32xf32>
    %238 = arith.addf %236, %237 : vector<5x32xf32>
    %cst_90 = arith.constant dense<0.000000e+00> : vector<5xf32>
    %239 = vector.multi_reduction <add>, %238, %cst_90 [1] : vector<5x32xf32> to vector<5xf32>
    %240 = vector.shape_cast %239 : vector<5xf32> to vector<5x1xf32>
    %cst_91 = arith.constant 3.200000e+01 : f32
    %241 = vector.broadcast %cst_91 : f32 to vector<5x1xf32>
    %242 = arith.divf %240, %241 : vector<5x1xf32>
    %243 = vector.broadcast %242 : vector<5x1xf32> to vector<5x32xf32>
    %244 = arith.subf %238, %243 : vector<5x32xf32>
    %245 = arith.mulf %244, %244 : vector<5x32xf32>
    %cst_92 = arith.constant dense<0.000000e+00> : vector<5xf32>
    %246 = vector.multi_reduction <add>, %245, %cst_92 [1] : vector<5x32xf32> to vector<5xf32>
    %247 = vector.shape_cast %246 : vector<5xf32> to vector<5x1xf32>
    %cst_93 = arith.constant 3.200000e+01 : f32
    %248 = vector.broadcast %cst_93 : f32 to vector<5x1xf32>
    %249 = arith.divf %247, %248 : vector<5x1xf32>
    %cst_94 = arith.constant 9.99999974E-6 : f32
    %250 = vector.broadcast %cst_94 : f32 to vector<5x1xf32>
    %251 = arith.addf %249, %250 : vector<5x1xf32>
    %252 = math.rsqrt %251 : vector<5x1xf32>
    %253 = vector.broadcast %252 : vector<5x1xf32> to vector<5x32xf32>
    %254 = arith.mulf %244, %253 : vector<5x32xf32>
    %255 = vector.broadcast %28 : vector<1x32xf32> to vector<5x32xf32>
    %256 = arith.mulf %254, %255 : vector<5x32xf32>
    %257 = vector.broadcast %29 : vector<1x32xf32> to vector<5x32xf32>
    %258 = arith.addf %256, %257 : vector<5x32xf32>
    %259 = arith.truncf %258 : vector<5x32xf32> to vector<5x32xbf16>
    %cst_95 = arith.constant dense<0.000000e+00> : vector<5x128xf32>
    %260 = tpu.matmul %259, %36, %cst_95 {dimension_numbers = #tpu.dot_dimension_numbers<[1], [0], [0], [1], [0, 0, 1, 1], [], []>} : vector<5x32xbf16>, vector<32x128xbf16>, vector<5x128xf32> -> vector<5x128xf32>
    %261 = vector.broadcast %40 : vector<1x128xf32> to vector<5x128xf32>
    %262 = arith.addf %260, %261 : vector<5x128xf32>
    %263 = arith.mulf %262, %262 : vector<5x128xf32>
    %264 = arith.mulf %262, %263 : vector<5x128xf32>
    %cst_96 = arith.constant 4.471500e-02 : f32
    %265 = vector.broadcast %cst_96 : f32 to vector<5x128xf32>
    %266 = arith.mulf %265, %264 : vector<5x128xf32>
    %267 = arith.addf %262, %266 : vector<5x128xf32>
    %cst_97 = arith.constant 0.797884583 : f32
    %268 = vector.broadcast %cst_97 : f32 to vector<5x128xf32>
    %269 = arith.mulf %268, %267 : vector<5x128xf32>
    %270 = math.tanh %269 : vector<5x128xf32>
    %cst_98 = arith.constant 1.000000e+00 : f32
    %271 = vector.broadcast %cst_98 : f32 to vector<5x128xf32>
    %272 = arith.addf %271, %270 : vector<5x128xf32>
    %cst_99 = arith.constant 5.000000e-01 : f32
    %273 = vector.broadcast %cst_99 : f32 to vector<5x128xf32>
    %274 = arith.mulf %273, %272 : vector<5x128xf32>
    %275 = arith.mulf %262, %274 : vector<5x128xf32>
    %276 = arith.truncf %275 : vector<5x128xf32> to vector<5x128xbf16>
    %cst_100 = arith.constant dense<0.000000e+00> : vector<5x32xf32>
    %277 = tpu.matmul %276, %38, %cst_100 {dimension_numbers = #tpu.dot_dimension_numbers<[1], [0], [0], [1], [0, 0, 1, 1], [], []>} : vector<5x128xbf16>, vector<128x32xbf16>, vector<5x32xf32> -> vector<5x32xf32>
    %278 = vector.broadcast %30 : vector<1x32xf32> to vector<5x32xf32>
    %279 = arith.addf %277, %278 : vector<5x32xf32>
    %280 = arith.addf %238, %279 : vector<5x32xf32>
    %c1_101 = arith.constant 1 : index
    %c0_102 = arith.constant 0 : index
    %c0_103 = arith.constant 0 : index
    %281 = vector.load %arg6[%c1_101, %c0_102, %c0_103] : memref<2x10x32xf32, #tpu.memory_space<vmem>>, vector<1x10x32xf32>
    %282 = vector.shape_cast %281 : vector<1x10x32xf32> to vector<10x32xf32>
    %283 = vector.extract_strided_slice %282 {offsets = [0, 0], sizes = [1, 32], strides = [1, 1]} : vector<10x32xf32> to vector<1x32xf32>
    %284 = vector.extract_strided_slice %282 {offsets = [1, 0], sizes = [1, 32], strides = [1, 1]} : vector<10x32xf32> to vector<1x32xf32>
    %285 = vector.extract_strided_slice %282 {offsets = [2, 0], sizes = [1, 32], strides = [1, 1]} : vector<10x32xf32> to vector<1x32xf32>
    %286 = vector.extract_strided_slice %282 {offsets = [3, 0], sizes = [1, 32], strides = [1, 1]} : vector<10x32xf32> to vector<1x32xf32>
    %287 = vector.extract_strided_slice %282 {offsets = [4, 0], sizes = [1, 32], strides = [1, 1]} : vector<10x32xf32> to vector<1x32xf32>
    %288 = vector.extract_strided_slice %282 {offsets = [5, 0], sizes = [1, 32], strides = [1, 1]} : vector<10x32xf32> to vector<1x32xf32>
    %289 = vector.extract_strided_slice %282 {offsets = [6, 0], sizes = [1, 32], strides = [1, 1]} : vector<10x32xf32> to vector<1x32xf32>
    %290 = vector.extract_strided_slice %282 {offsets = [7, 0], sizes = [1, 32], strides = [1, 1]} : vector<10x32xf32> to vector<1x32xf32>
    %291 = vector.extract_strided_slice %282 {offsets = [8, 0], sizes = [1, 32], strides = [1, 1]} : vector<10x32xf32> to vector<1x32xf32>
    %292 = vector.extract_strided_slice %282 {offsets = [9, 0], sizes = [1, 32], strides = [1, 1]} : vector<10x32xf32> to vector<1x32xf32>
    %c1_104 = arith.constant 1 : index
    %c0_105 = arith.constant 0 : index
    %c0_106 = arith.constant 0 : index
    %293 = vector.load %arg4[%c1_104, %c0_105, %c0_106] : memref<2x32x256xbf16, #tpu.memory_space<vmem>>, vector<1x32x96xbf16>
    %294 = vector.shape_cast %293 : vector<1x32x96xbf16> to vector<32x96xbf16>
    %c1_107 = arith.constant 1 : index
    %c0_108 = arith.constant 0 : index
    %c96_109 = arith.constant 96 : index
    %295 = vector.load %arg4[%c1_107, %c0_108, %c96_109] : memref<2x32x256xbf16, #tpu.memory_space<vmem>>, vector<1x32x32xbf16>
    %296 = vector.shape_cast %295 : vector<1x32x32xbf16> to vector<32x32xbf16>
    %c1_110 = arith.constant 1 : index
    %c0_111 = arith.constant 0 : index
    %c128_112 = arith.constant 128 : index
    %297 = vector.load %arg4[%c1_110, %c0_111, %c128_112] : memref<2x32x256xbf16, #tpu.memory_space<vmem>>, vector<1x32x128xbf16>
    %298 = vector.shape_cast %297 : vector<1x32x128xbf16> to vector<32x128xbf16>
    %c1_113 = arith.constant 1 : index
    %c0_114 = arith.constant 0 : index
    %c0_115 = arith.constant 0 : index
    %299 = vector.load %arg5[%c1_113, %c0_114, %c0_115] : memref<2x128x32xbf16, #tpu.memory_space<vmem>>, vector<1x128x32xbf16>
    %300 = vector.shape_cast %299 : vector<1x128x32xbf16> to vector<128x32xbf16>
    %c1_116 = arith.constant 1 : index
    %c0_117 = arith.constant 0 : index
    %c0_118 = arith.constant 0 : index
    %301 = vector.load %arg7[%c1_116, %c0_117, %c0_118] : memref<2x1x128xf32, #tpu.memory_space<vmem>>, vector<1x1x128xf32>
    %302 = vector.shape_cast %301 : vector<1x1x128xf32> to vector<1x128xf32>
    %cst_119 = arith.constant dense<0.000000e+00> : vector<5xf32>
    %303 = vector.multi_reduction <add>, %160, %cst_119 [1] : vector<5x32xf32> to vector<5xf32>
    %304 = vector.shape_cast %303 : vector<5xf32> to vector<5x1xf32>
    %cst_120 = arith.constant 3.200000e+01 : f32
    %305 = vector.broadcast %cst_120 : f32 to vector<5x1xf32>
    %306 = arith.divf %304, %305 : vector<5x1xf32>
    %307 = vector.broadcast %306 : vector<5x1xf32> to vector<5x32xf32>
    %308 = arith.subf %160, %307 : vector<5x32xf32>
    %309 = arith.mulf %308, %308 : vector<5x32xf32>
    %cst_121 = arith.constant dense<0.000000e+00> : vector<5xf32>
    %310 = vector.multi_reduction <add>, %309, %cst_121 [1] : vector<5x32xf32> to vector<5xf32>
    %311 = vector.shape_cast %310 : vector<5xf32> to vector<5x1xf32>
    %cst_122 = arith.constant 3.200000e+01 : f32
    %312 = vector.broadcast %cst_122 : f32 to vector<5x1xf32>
    %313 = arith.divf %311, %312 : vector<5x1xf32>
    %cst_123 = arith.constant 9.99999974E-6 : f32
    %314 = vector.broadcast %cst_123 : f32 to vector<5x1xf32>
    %315 = arith.addf %313, %314 : vector<5x1xf32>
    %316 = math.rsqrt %315 : vector<5x1xf32>
    %317 = vector.broadcast %316 : vector<5x1xf32> to vector<5x32xf32>
    %318 = arith.mulf %308, %317 : vector<5x32xf32>
    %319 = vector.broadcast %283 : vector<1x32xf32> to vector<5x32xf32>
    %320 = arith.mulf %318, %319 : vector<5x32xf32>
    %321 = vector.broadcast %284 : vector<1x32xf32> to vector<5x32xf32>
    %322 = arith.addf %320, %321 : vector<5x32xf32>
    %323 = arith.truncf %322 : vector<5x32xf32> to vector<5x32xbf16>
    %cst_124 = arith.constant dense<0.000000e+00> : vector<5x96xf32>
    %324 = tpu.matmul %323, %294, %cst_124 {dimension_numbers = #tpu.dot_dimension_numbers<[1], [0], [0], [1], [0, 0, 1, 1], [], []>} : vector<5x32xbf16>, vector<32x96xbf16>, vector<5x96xf32> -> vector<5x96xf32>
    %325 = vector.extract_strided_slice %324 {offsets = [0, 0], sizes = [5, 32], strides = [1, 1]} : vector<5x96xf32> to vector<5x32xf32>
    %326 = vector.extract_strided_slice %324 {offsets = [0, 32], sizes = [5, 32], strides = [1, 1]} : vector<5x96xf32> to vector<5x32xf32>
    %327 = vector.extract_strided_slice %324 {offsets = [0, 64], sizes = [5, 32], strides = [1, 1]} : vector<5x96xf32> to vector<5x32xf32>
    %cst_125 = arith.constant dense<0.000000e+00> : vector<5x32xf32>
    %328 = tpu.matmul %325, %0, %cst_125 {dimension_numbers = #tpu.dot_dimension_numbers<[1], [0], [0], [1], [0, 0, 1, 1], [], []>} : vector<5x32xf32>, vector<32x32xf32>, vector<5x32xf32> -> vector<5x32xf32>
    %329 = arith.mulf %325, %325 : vector<5x32xf32>
    %cst_126 = arith.constant dense<0.000000e+00> : vector<5x32xf32>
    %330 = tpu.matmul %329, %0, %cst_126 {dimension_numbers = #tpu.dot_dimension_numbers<[1], [0], [0], [1], [0, 0, 1, 1], [], []>} : vector<5x32xf32>, vector<32x32xf32>, vector<5x32xf32> -> vector<5x32xf32>
    %331 = arith.mulf %328, %328 : vector<5x32xf32>
    %332 = arith.subf %330, %331 : vector<5x32xf32>
    %cst_127 = arith.constant 0.000000e+00 : f32
    %333 = vector.broadcast %cst_127 : f32 to vector<5x32xf32>
    %334 = arith.maximumf %332, %333 : vector<5x32xf32>
    %335 = arith.subf %325, %328 : vector<5x32xf32>
    %cst_128 = arith.constant 9.99999974E-6 : f32
    %336 = vector.broadcast %cst_128 : f32 to vector<5x32xf32>
    %337 = arith.addf %334, %336 : vector<5x32xf32>
    %338 = math.rsqrt %337 : vector<5x32xf32>
    %339 = arith.mulf %335, %338 : vector<5x32xf32>
    %340 = vector.broadcast %285 : vector<1x32xf32> to vector<5x32xf32>
    %341 = arith.mulf %339, %340 : vector<5x32xf32>
    %342 = vector.broadcast %286 : vector<1x32xf32> to vector<5x32xf32>
    %343 = arith.addf %341, %342 : vector<5x32xf32>
    %cst_129 = arith.constant dense<0.000000e+00> : vector<5x32xf32>
    %344 = tpu.matmul %326, %0, %cst_129 {dimension_numbers = #tpu.dot_dimension_numbers<[1], [0], [0], [1], [0, 0, 1, 1], [], []>} : vector<5x32xf32>, vector<32x32xf32>, vector<5x32xf32> -> vector<5x32xf32>
    %345 = arith.mulf %326, %326 : vector<5x32xf32>
    %cst_130 = arith.constant dense<0.000000e+00> : vector<5x32xf32>
    %346 = tpu.matmul %345, %0, %cst_130 {dimension_numbers = #tpu.dot_dimension_numbers<[1], [0], [0], [1], [0, 0, 1, 1], [], []>} : vector<5x32xf32>, vector<32x32xf32>, vector<5x32xf32> -> vector<5x32xf32>
    %347 = arith.mulf %344, %344 : vector<5x32xf32>
    %348 = arith.subf %346, %347 : vector<5x32xf32>
    %cst_131 = arith.constant 0.000000e+00 : f32
    %349 = vector.broadcast %cst_131 : f32 to vector<5x32xf32>
    %350 = arith.maximumf %348, %349 : vector<5x32xf32>
    %351 = arith.subf %326, %344 : vector<5x32xf32>
    %cst_132 = arith.constant 9.99999974E-6 : f32
    %352 = vector.broadcast %cst_132 : f32 to vector<5x32xf32>
    %353 = arith.addf %350, %352 : vector<5x32xf32>
    %354 = math.rsqrt %353 : vector<5x32xf32>
    %355 = arith.mulf %351, %354 : vector<5x32xf32>
    %356 = vector.broadcast %287 : vector<1x32xf32> to vector<5x32xf32>
    %357 = arith.mulf %355, %356 : vector<5x32xf32>
    %358 = vector.broadcast %288 : vector<1x32xf32> to vector<5x32xf32>
    %359 = arith.addf %357, %358 : vector<5x32xf32>
    %cst_133 = arith.constant dense<0.000000e+00> : vector<20x32xf32>
    %360 = tpu.matmul %3, %359, %cst_133 {dimension_numbers = #tpu.dot_dimension_numbers<[1], [0], [0], [1], [0, 0, 1, 1], [], []>} : vector<20x5xf32>, vector<5x32xf32>, vector<20x32xf32> -> vector<20x32xf32>
    %361 = arith.mulf %360, %1 : vector<20x32xf32>
    %cst_134 = arith.constant dense<0.000000e+00> : vector<20x32xf32>
    %362 = tpu.matmul %3, %327, %cst_134 {dimension_numbers = #tpu.dot_dimension_numbers<[1], [0], [0], [1], [0, 0, 1, 1], [], []>} : vector<20x5xf32>, vector<5x32xf32>, vector<20x32xf32> -> vector<20x32xf32>
    %363 = arith.mulf %362, %1 : vector<20x32xf32>
    %cst_135 = arith.constant dense<0.000000e+00> : vector<5x20xf32>
    %364 = tpu.matmul %343, %361, %cst_135 {dimension_numbers = #tpu.dot_dimension_numbers<[1], [1], [0], [0], [0, 0, 1, 0], [], []>} : vector<5x32xf32>, vector<20x32xf32>, vector<5x20xf32> -> vector<5x20xf32>
    %cst_136 = arith.constant dense<0xFF800000> : vector<5xf32>
    %365 = vector.multi_reduction <maximumf>, %364, %cst_136 [1] : vector<5x20xf32> to vector<5xf32>
    %366 = vector.shape_cast %365 : vector<5xf32> to vector<5x1xf32>
    %367 = vector.broadcast %366 : vector<5x1xf32> to vector<5x20xf32>
    %368 = arith.subf %364, %367 : vector<5x20xf32>
    %369 = math.exp %368 : vector<5x20xf32>
    %cst_137 = arith.constant dense<0.000000e+00> : vector<5x20xf32>
    %370 = tpu.matmul %369, %2, %cst_137 {dimension_numbers = #tpu.dot_dimension_numbers<[1], [0], [0], [1], [0, 0, 1, 1], [], []>} : vector<5x20xf32>, vector<20x20xf32>, vector<5x20xf32> -> vector<5x20xf32>
    %cst_138 = arith.constant 9.99999968E-21 : f32
    %371 = vector.broadcast %cst_138 : f32 to vector<5x20xf32>
    %372 = arith.maximumf %370, %371 : vector<5x20xf32>
    %373 = tpu.reciprocal %372 {approx = true} : vector<5x20xf32> -> vector<5x20xf32>
    %374 = arith.mulf %369, %373 : vector<5x20xf32>
    %cst_139 = arith.constant dense<0.000000e+00> : vector<5x32xf32>
    %375 = tpu.matmul %374, %363, %cst_139 {dimension_numbers = #tpu.dot_dimension_numbers<[1], [0], [0], [1], [0, 0, 1, 1], [], []>} : vector<5x20xf32>, vector<20x32xf32>, vector<5x32xf32> -> vector<5x32xf32>
    %376 = arith.truncf %375 : vector<5x32xf32> to vector<5x32xbf16>
    %cst_140 = arith.constant dense<0.000000e+00> : vector<5x32xf32>
    %377 = tpu.matmul %376, %296, %cst_140 {dimension_numbers = #tpu.dot_dimension_numbers<[1], [0], [0], [1], [0, 0, 1, 1], [], []>} : vector<5x32xbf16>, vector<32x32xbf16>, vector<5x32xf32> -> vector<5x32xf32>
    %378 = arith.addf %160, %377 : vector<5x32xf32>
    %379 = vector.broadcast %289 : vector<1x32xf32> to vector<5x32xf32>
    %380 = arith.addf %378, %379 : vector<5x32xf32>
    %cst_141 = arith.constant dense<0.000000e+00> : vector<5xf32>
    %381 = vector.multi_reduction <add>, %380, %cst_141 [1] : vector<5x32xf32> to vector<5xf32>
    %382 = vector.shape_cast %381 : vector<5xf32> to vector<5x1xf32>
    %cst_142 = arith.constant 3.200000e+01 : f32
    %383 = vector.broadcast %cst_142 : f32 to vector<5x1xf32>
    %384 = arith.divf %382, %383 : vector<5x1xf32>
    %385 = vector.broadcast %384 : vector<5x1xf32> to vector<5x32xf32>
    %386 = arith.subf %380, %385 : vector<5x32xf32>
    %387 = arith.mulf %386, %386 : vector<5x32xf32>
    %cst_143 = arith.constant dense<0.000000e+00> : vector<5xf32>
    %388 = vector.multi_reduction <add>, %387, %cst_143 [1] : vector<5x32xf32> to vector<5xf32>
    %389 = vector.shape_cast %388 : vector<5xf32> to vector<5x1xf32>
    %cst_144 = arith.constant 3.200000e+01 : f32
    %390 = vector.broadcast %cst_144 : f32 to vector<5x1xf32>
    %391 = arith.divf %389, %390 : vector<5x1xf32>
    %cst_145 = arith.constant 9.99999974E-6 : f32
    %392 = vector.broadcast %cst_145 : f32 to vector<5x1xf32>
    %393 = arith.addf %391, %392 : vector<5x1xf32>
    %394 = math.rsqrt %393 : vector<5x1xf32>
    %395 = vector.broadcast %394 : vector<5x1xf32> to vector<5x32xf32>
    %396 = arith.mulf %386, %395 : vector<5x32xf32>
    %397 = vector.broadcast %290 : vector<1x32xf32> to vector<5x32xf32>
    %398 = arith.mulf %396, %397 : vector<5x32xf32>
    %399 = vector.broadcast %291 : vector<1x32xf32> to vector<5x32xf32>
    %400 = arith.addf %398, %399 : vector<5x32xf32>
    %401 = arith.truncf %400 : vector<5x32xf32> to vector<5x32xbf16>
    %cst_146 = arith.constant dense<0.000000e+00> : vector<5x128xf32>
    %402 = tpu.matmul %401, %298, %cst_146 {dimension_numbers = #tpu.dot_dimension_numbers<[1], [0], [0], [1], [0, 0, 1, 1], [], []>} : vector<5x32xbf16>, vector<32x128xbf16>, vector<5x128xf32> -> vector<5x128xf32>
    %403 = vector.broadcast %302 : vector<1x128xf32> to vector<5x128xf32>
    %404 = arith.addf %402, %403 : vector<5x128xf32>
    %405 = arith.mulf %404, %404 : vector<5x128xf32>
    %406 = arith.mulf %404, %405 : vector<5x128xf32>
    %cst_147 = arith.constant 4.471500e-02 : f32
    %407 = vector.broadcast %cst_147 : f32 to vector<5x128xf32>
    %408 = arith.mulf %407, %406 : vector<5x128xf32>
    %409 = arith.addf %404, %408 : vector<5x128xf32>
    %cst_148 = arith.constant 0.797884583 : f32
    %410 = vector.broadcast %cst_148 : f32 to vector<5x128xf32>
    %411 = arith.mulf %410, %409 : vector<5x128xf32>
    %412 = math.tanh %411 : vector<5x128xf32>
    %cst_149 = arith.constant 1.000000e+00 : f32
    %413 = vector.broadcast %cst_149 : f32 to vector<5x128xf32>
    %414 = arith.addf %413, %412 : vector<5x128xf32>
    %cst_150 = arith.constant 5.000000e-01 : f32
    %415 = vector.broadcast %cst_150 : f32 to vector<5x128xf32>
    %416 = arith.mulf %415, %414 : vector<5x128xf32>
    %417 = arith.mulf %404, %416 : vector<5x128xf32>
    %418 = arith.truncf %417 : vector<5x128xf32> to vector<5x128xbf16>
    %cst_151 = arith.constant dense<0.000000e+00> : vector<5x32xf32>
    %419 = tpu.matmul %418, %300, %cst_151 {dimension_numbers = #tpu.dot_dimension_numbers<[1], [0], [0], [1], [0, 0, 1, 1], [], []>} : vector<5x128xbf16>, vector<128x32xbf16>, vector<5x32xf32> -> vector<5x32xf32>
    %420 = vector.broadcast %292 : vector<1x32xf32> to vector<5x32xf32>
    %421 = arith.addf %419, %420 : vector<5x32xf32>
    %422 = arith.addf %380, %421 : vector<5x32xf32>
    %cst_152 = arith.constant dense<0.000000e+00> : vector<5xf32>
    %423 = vector.multi_reduction <add>, %280, %cst_152 [1] : vector<5x32xf32> to vector<5xf32>
    %424 = vector.shape_cast %423 : vector<5xf32> to vector<5x1xf32>
    %cst_153 = arith.constant 3.200000e+01 : f32
    %425 = vector.broadcast %cst_153 : f32 to vector<5x1xf32>
    %426 = arith.divf %424, %425 : vector<5x1xf32>
    %427 = vector.broadcast %426 : vector<5x1xf32> to vector<5x32xf32>
    %428 = arith.subf %280, %427 : vector<5x32xf32>
    %429 = arith.mulf %428, %428 : vector<5x32xf32>
    %cst_154 = arith.constant dense<0.000000e+00> : vector<5xf32>
    %430 = vector.multi_reduction <add>, %429, %cst_154 [1] : vector<5x32xf32> to vector<5xf32>
    %431 = vector.shape_cast %430 : vector<5xf32> to vector<5x1xf32>
    %cst_155 = arith.constant 3.200000e+01 : f32
    %432 = vector.broadcast %cst_155 : f32 to vector<5x1xf32>
    %433 = arith.divf %431, %432 : vector<5x1xf32>
    %cst_156 = arith.constant 9.99999974E-6 : f32
    %434 = vector.broadcast %cst_156 : f32 to vector<5x1xf32>
    %435 = arith.addf %433, %434 : vector<5x1xf32>
    %436 = math.rsqrt %435 : vector<5x1xf32>
    %437 = vector.broadcast %436 : vector<5x1xf32> to vector<5x32xf32>
    %438 = arith.mulf %428, %437 : vector<5x32xf32>
    %439 = vector.broadcast %283 : vector<1x32xf32> to vector<5x32xf32>
    %440 = arith.mulf %438, %439 : vector<5x32xf32>
    %441 = vector.broadcast %284 : vector<1x32xf32> to vector<5x32xf32>
    %442 = arith.addf %440, %441 : vector<5x32xf32>
    %443 = arith.truncf %442 : vector<5x32xf32> to vector<5x32xbf16>
    %cst_157 = arith.constant dense<0.000000e+00> : vector<5x96xf32>
    %444 = tpu.matmul %443, %294, %cst_157 {dimension_numbers = #tpu.dot_dimension_numbers<[1], [0], [0], [1], [0, 0, 1, 1], [], []>} : vector<5x32xbf16>, vector<32x96xbf16>, vector<5x96xf32> -> vector<5x96xf32>
    %445 = vector.extract_strided_slice %444 {offsets = [0, 0], sizes = [5, 32], strides = [1, 1]} : vector<5x96xf32> to vector<5x32xf32>
    %446 = vector.extract_strided_slice %444 {offsets = [0, 32], sizes = [5, 32], strides = [1, 1]} : vector<5x96xf32> to vector<5x32xf32>
    %447 = vector.extract_strided_slice %444 {offsets = [0, 64], sizes = [5, 32], strides = [1, 1]} : vector<5x96xf32> to vector<5x32xf32>
    %cst_158 = arith.constant dense<0.000000e+00> : vector<5x32xf32>
    %448 = tpu.matmul %445, %0, %cst_158 {dimension_numbers = #tpu.dot_dimension_numbers<[1], [0], [0], [1], [0, 0, 1, 1], [], []>} : vector<5x32xf32>, vector<32x32xf32>, vector<5x32xf32> -> vector<5x32xf32>
    %449 = arith.mulf %445, %445 : vector<5x32xf32>
    %cst_159 = arith.constant dense<0.000000e+00> : vector<5x32xf32>
    %450 = tpu.matmul %449, %0, %cst_159 {dimension_numbers = #tpu.dot_dimension_numbers<[1], [0], [0], [1], [0, 0, 1, 1], [], []>} : vector<5x32xf32>, vector<32x32xf32>, vector<5x32xf32> -> vector<5x32xf32>
    %451 = arith.mulf %448, %448 : vector<5x32xf32>
    %452 = arith.subf %450, %451 : vector<5x32xf32>
    %cst_160 = arith.constant 0.000000e+00 : f32
    %453 = vector.broadcast %cst_160 : f32 to vector<5x32xf32>
    %454 = arith.maximumf %452, %453 : vector<5x32xf32>
    %455 = arith.subf %445, %448 : vector<5x32xf32>
    %cst_161 = arith.constant 9.99999974E-6 : f32
    %456 = vector.broadcast %cst_161 : f32 to vector<5x32xf32>
    %457 = arith.addf %454, %456 : vector<5x32xf32>
    %458 = math.rsqrt %457 : vector<5x32xf32>
    %459 = arith.mulf %455, %458 : vector<5x32xf32>
    %460 = vector.broadcast %285 : vector<1x32xf32> to vector<5x32xf32>
    %461 = arith.mulf %459, %460 : vector<5x32xf32>
    %462 = vector.broadcast %286 : vector<1x32xf32> to vector<5x32xf32>
    %463 = arith.addf %461, %462 : vector<5x32xf32>
    %cst_162 = arith.constant dense<0.000000e+00> : vector<5x32xf32>
    %464 = tpu.matmul %446, %0, %cst_162 {dimension_numbers = #tpu.dot_dimension_numbers<[1], [0], [0], [1], [0, 0, 1, 1], [], []>} : vector<5x32xf32>, vector<32x32xf32>, vector<5x32xf32> -> vector<5x32xf32>
    %465 = arith.mulf %446, %446 : vector<5x32xf32>
    %cst_163 = arith.constant dense<0.000000e+00> : vector<5x32xf32>
    %466 = tpu.matmul %465, %0, %cst_163 {dimension_numbers = #tpu.dot_dimension_numbers<[1], [0], [0], [1], [0, 0, 1, 1], [], []>} : vector<5x32xf32>, vector<32x32xf32>, vector<5x32xf32> -> vector<5x32xf32>
    %467 = arith.mulf %464, %464 : vector<5x32xf32>
    %468 = arith.subf %466, %467 : vector<5x32xf32>
    %cst_164 = arith.constant 0.000000e+00 : f32
    %469 = vector.broadcast %cst_164 : f32 to vector<5x32xf32>
    %470 = arith.maximumf %468, %469 : vector<5x32xf32>
    %471 = arith.subf %446, %464 : vector<5x32xf32>
    %cst_165 = arith.constant 9.99999974E-6 : f32
    %472 = vector.broadcast %cst_165 : f32 to vector<5x32xf32>
    %473 = arith.addf %470, %472 : vector<5x32xf32>
    %474 = math.rsqrt %473 : vector<5x32xf32>
    %475 = arith.mulf %471, %474 : vector<5x32xf32>
    %476 = vector.broadcast %287 : vector<1x32xf32> to vector<5x32xf32>
    %477 = arith.mulf %475, %476 : vector<5x32xf32>
    %478 = vector.broadcast %288 : vector<1x32xf32> to vector<5x32xf32>
    %479 = arith.addf %477, %478 : vector<5x32xf32>
    %cst_166 = arith.constant dense<0.000000e+00> : vector<20x32xf32>
    %480 = tpu.matmul %3, %479, %cst_166 {dimension_numbers = #tpu.dot_dimension_numbers<[1], [0], [0], [1], [0, 0, 1, 1], [], []>} : vector<20x5xf32>, vector<5x32xf32>, vector<20x32xf32> -> vector<20x32xf32>
    %481 = arith.mulf %480, %1 : vector<20x32xf32>
    %cst_167 = arith.constant dense<0.000000e+00> : vector<20x32xf32>
    %482 = tpu.matmul %3, %447, %cst_167 {dimension_numbers = #tpu.dot_dimension_numbers<[1], [0], [0], [1], [0, 0, 1, 1], [], []>} : vector<20x5xf32>, vector<5x32xf32>, vector<20x32xf32> -> vector<20x32xf32>
    %483 = arith.mulf %482, %1 : vector<20x32xf32>
    %cst_168 = arith.constant dense<0.000000e+00> : vector<5x20xf32>
    %484 = tpu.matmul %463, %481, %cst_168 {dimension_numbers = #tpu.dot_dimension_numbers<[1], [1], [0], [0], [0, 0, 1, 0], [], []>} : vector<5x32xf32>, vector<20x32xf32>, vector<5x20xf32> -> vector<5x20xf32>
    %cst_169 = arith.constant dense<0xFF800000> : vector<5xf32>
    %485 = vector.multi_reduction <maximumf>, %484, %cst_169 [1] : vector<5x20xf32> to vector<5xf32>
    %486 = vector.shape_cast %485 : vector<5xf32> to vector<5x1xf32>
    %487 = vector.broadcast %486 : vector<5x1xf32> to vector<5x20xf32>
    %488 = arith.subf %484, %487 : vector<5x20xf32>
    %489 = math.exp %488 : vector<5x20xf32>
    %cst_170 = arith.constant dense<0.000000e+00> : vector<5x20xf32>
    %490 = tpu.matmul %489, %2, %cst_170 {dimension_numbers = #tpu.dot_dimension_numbers<[1], [0], [0], [1], [0, 0, 1, 1], [], []>} : vector<5x20xf32>, vector<20x20xf32>, vector<5x20xf32> -> vector<5x20xf32>
    %cst_171 = arith.constant 9.99999968E-21 : f32
    %491 = vector.broadcast %cst_171 : f32 to vector<5x20xf32>
    %492 = arith.maximumf %490, %491 : vector<5x20xf32>
    %493 = tpu.reciprocal %492 {approx = true} : vector<5x20xf32> -> vector<5x20xf32>
    %494 = arith.mulf %489, %493 : vector<5x20xf32>
    %cst_172 = arith.constant dense<0.000000e+00> : vector<5x32xf32>
    %495 = tpu.matmul %494, %483, %cst_172 {dimension_numbers = #tpu.dot_dimension_numbers<[1], [0], [0], [1], [0, 0, 1, 1], [], []>} : vector<5x20xf32>, vector<20x32xf32>, vector<5x32xf32> -> vector<5x32xf32>
    %496 = arith.truncf %495 : vector<5x32xf32> to vector<5x32xbf16>
    %cst_173 = arith.constant dense<0.000000e+00> : vector<5x32xf32>
    %497 = tpu.matmul %496, %296, %cst_173 {dimension_numbers = #tpu.dot_dimension_numbers<[1], [0], [0], [1], [0, 0, 1, 1], [], []>} : vector<5x32xbf16>, vector<32x32xbf16>, vector<5x32xf32> -> vector<5x32xf32>
    %498 = arith.addf %280, %497 : vector<5x32xf32>
    %499 = vector.broadcast %289 : vector<1x32xf32> to vector<5x32xf32>
    %500 = arith.addf %498, %499 : vector<5x32xf32>
    %cst_174 = arith.constant dense<0.000000e+00> : vector<5xf32>
    %501 = vector.multi_reduction <add>, %500, %cst_174 [1] : vector<5x32xf32> to vector<5xf32>
    %502 = vector.shape_cast %501 : vector<5xf32> to vector<5x1xf32>
    %cst_175 = arith.constant 3.200000e+01 : f32
    %503 = vector.broadcast %cst_175 : f32 to vector<5x1xf32>
    %504 = arith.divf %502, %503 : vector<5x1xf32>
    %505 = vector.broadcast %504 : vector<5x1xf32> to vector<5x32xf32>
    %506 = arith.subf %500, %505 : vector<5x32xf32>
    %507 = arith.mulf %506, %506 : vector<5x32xf32>
    %cst_176 = arith.constant dense<0.000000e+00> : vector<5xf32>
    %508 = vector.multi_reduction <add>, %507, %cst_176 [1] : vector<5x32xf32> to vector<5xf32>
    %509 = vector.shape_cast %508 : vector<5xf32> to vector<5x1xf32>
    %cst_177 = arith.constant 3.200000e+01 : f32
    %510 = vector.broadcast %cst_177 : f32 to vector<5x1xf32>
    %511 = arith.divf %509, %510 : vector<5x1xf32>
    %cst_178 = arith.constant 9.99999974E-6 : f32
    %512 = vector.broadcast %cst_178 : f32 to vector<5x1xf32>
    %513 = arith.addf %511, %512 : vector<5x1xf32>
    %514 = math.rsqrt %513 : vector<5x1xf32>
    %515 = vector.broadcast %514 : vector<5x1xf32> to vector<5x32xf32>
    %516 = arith.mulf %506, %515 : vector<5x32xf32>
    %517 = vector.broadcast %290 : vector<1x32xf32> to vector<5x32xf32>
    %518 = arith.mulf %516, %517 : vector<5x32xf32>
    %519 = vector.broadcast %291 : vector<1x32xf32> to vector<5x32xf32>
    %520 = arith.addf %518, %519 : vector<5x32xf32>
    %521 = arith.truncf %520 : vector<5x32xf32> to vector<5x32xbf16>
    %cst_179 = arith.constant dense<0.000000e+00> : vector<5x128xf32>
    %522 = tpu.matmul %521, %298, %cst_179 {dimension_numbers = #tpu.dot_dimension_numbers<[1], [0], [0], [1], [0, 0, 1, 1], [], []>} : vector<5x32xbf16>, vector<32x128xbf16>, vector<5x128xf32> -> vector<5x128xf32>
    %523 = vector.broadcast %302 : vector<1x128xf32> to vector<5x128xf32>
    %524 = arith.addf %522, %523 : vector<5x128xf32>
    %525 = arith.mulf %524, %524 : vector<5x128xf32>
    %526 = arith.mulf %524, %525 : vector<5x128xf32>
    %cst_180 = arith.constant 4.471500e-02 : f32
    %527 = vector.broadcast %cst_180 : f32 to vector<5x128xf32>
    %528 = arith.mulf %527, %526 : vector<5x128xf32>
    %529 = arith.addf %524, %528 : vector<5x128xf32>
    %cst_181 = arith.constant 0.797884583 : f32
    %530 = vector.broadcast %cst_181 : f32 to vector<5x128xf32>
    %531 = arith.mulf %530, %529 : vector<5x128xf32>
    %532 = math.tanh %531 : vector<5x128xf32>
    %cst_182 = arith.constant 1.000000e+00 : f32
    %533 = vector.broadcast %cst_182 : f32 to vector<5x128xf32>
    %534 = arith.addf %533, %532 : vector<5x128xf32>
    %cst_183 = arith.constant 5.000000e-01 : f32
    %535 = vector.broadcast %cst_183 : f32 to vector<5x128xf32>
    %536 = arith.mulf %535, %534 : vector<5x128xf32>
    %537 = arith.mulf %524, %536 : vector<5x128xf32>
    %538 = arith.truncf %537 : vector<5x128xf32> to vector<5x128xbf16>
    %cst_184 = arith.constant dense<0.000000e+00> : vector<5x32xf32>
    %539 = tpu.matmul %538, %300, %cst_184 {dimension_numbers = #tpu.dot_dimension_numbers<[1], [0], [0], [1], [0, 0, 1, 1], [], []>} : vector<5x128xbf16>, vector<128x32xbf16>, vector<5x32xf32> -> vector<5x32xf32>
    %540 = vector.broadcast %292 : vector<1x32xf32> to vector<5x32xf32>
    %541 = arith.addf %539, %540 : vector<5x32xf32>
    %542 = arith.addf %500, %541 : vector<5x32xf32>
    %543 = vector.extract_strided_slice %422 {offsets = [0, 0], sizes = [1, 32], strides = [1, 1]} : vector<5x32xf32> to vector<1x32xf32>
    %cst_185 = arith.constant dense<0.000000e+00> : vector<1xf32>
    %544 = vector.multi_reduction <add>, %543, %cst_185 [1] : vector<1x32xf32> to vector<1xf32>
    %545 = vector.shape_cast %544 : vector<1xf32> to vector<1x1xf32>
    %cst_186 = arith.constant 3.200000e+01 : f32
    %546 = vector.broadcast %cst_186 : f32 to vector<1x1xf32>
    %547 = arith.divf %545, %546 : vector<1x1xf32>
    %548 = vector.broadcast %547 : vector<1x1xf32> to vector<1x32xf32>
    %549 = arith.subf %543, %548 : vector<1x32xf32>
    %550 = arith.mulf %549, %549 : vector<1x32xf32>
    %cst_187 = arith.constant dense<0.000000e+00> : vector<1xf32>
    %551 = vector.multi_reduction <add>, %550, %cst_187 [1] : vector<1x32xf32> to vector<1xf32>
    %552 = vector.shape_cast %551 : vector<1xf32> to vector<1x1xf32>
    %cst_188 = arith.constant 3.200000e+01 : f32
    %553 = vector.broadcast %cst_188 : f32 to vector<1x1xf32>
    %554 = arith.divf %552, %553 : vector<1x1xf32>
    %cst_189 = arith.constant 9.99999974E-6 : f32
    %555 = vector.broadcast %cst_189 : f32 to vector<1x1xf32>
    %556 = arith.addf %554, %555 : vector<1x1xf32>
    %557 = math.rsqrt %556 : vector<1x1xf32>
    %558 = vector.broadcast %557 : vector<1x1xf32> to vector<1x32xf32>
    %559 = arith.mulf %549, %558 : vector<1x32xf32>
    %560 = arith.mulf %559, %5 : vector<1x32xf32>
    %561 = arith.addf %560, %6 : vector<1x32xf32>
    %c0_190 = arith.constant 0 : index
    %c0_191 = arith.constant 0 : index
    %c0_192 = arith.constant 0 : index
    %562 = vector.load %arg10[%c0_190, %c0_191, %c0_192] : memref<2x1x32xf32, #tpu.memory_space<vmem>>, vector<1x1x32xf32>
    %563 = vector.shape_cast %562 : vector<1x1x32xf32> to vector<1x32xf32>
    %564 = vector.shape_cast %561 : vector<1x32xf32> to vector<1x1x32xf32>
    tpu.vector_store %arg10[%c0_190, %c0_191, %c0_192], %564 {strides = array<i32>} : memref<2x1x32xf32, #tpu.memory_space<vmem>>, vector<1x1x32xf32>,
    %565 = vector.extract_strided_slice %542 {offsets = [0, 0], sizes = [1, 32], strides = [1, 1]} : vector<5x32xf32> to vector<1x32xf32>
    %cst_193 = arith.constant dense<0.000000e+00> : vector<1xf32>
    %566 = vector.multi_reduction <add>, %565, %cst_193 [1] : vector<1x32xf32> to vector<1xf32>
    %567 = vector.shape_cast %566 : vector<1xf32> to vector<1x1xf32>
    %cst_194 = arith.constant 3.200000e+01 : f32
    %568 = vector.broadcast %cst_194 : f32 to vector<1x1xf32>
    %569 = arith.divf %567, %568 : vector<1x1xf32>
    %570 = vector.broadcast %569 : vector<1x1xf32> to vector<1x32xf32>
    %571 = arith.subf %565, %570 : vector<1x32xf32>
    %572 = arith.mulf %571, %571 : vector<1x32xf32>
    %cst_195 = arith.constant dense<0.000000e+00> : vector<1xf32>
    %573 = vector.multi_reduction <add>, %572, %cst_195 [1] : vector<1x32xf32> to vector<1xf32>
    %574 = vector.shape_cast %573 : vector<1xf32> to vector<1x1xf32>
    %cst_196 = arith.constant 3.200000e+01 : f32
    %575 = vector.broadcast %cst_196 : f32 to vector<1x1xf32>
    %576 = arith.divf %574, %575 : vector<1x1xf32>
    %cst_197 = arith.constant 9.99999974E-6 : f32
    %577 = vector.broadcast %cst_197 : f32 to vector<1x1xf32>
    %578 = arith.addf %576, %577 : vector<1x1xf32>
    %579 = math.rsqrt %578 : vector<1x1xf32>
    %580 = vector.broadcast %579 : vector<1x1xf32> to vector<1x32xf32>
    %581 = arith.mulf %571, %580 : vector<1x32xf32>
    %582 = arith.mulf %581, %5 : vector<1x32xf32>
    %583 = arith.addf %582, %6 : vector<1x32xf32>
    %c1_198 = arith.constant 1 : index
    %c0_199 = arith.constant 0 : index
    %c0_200 = arith.constant 0 : index
    %584 = vector.load %arg10[%c1_198, %c0_199, %c0_200] : memref<2x1x32xf32, #tpu.memory_space<vmem>>, vector<1x1x32xf32>
    %585 = vector.shape_cast %584 : vector<1x1x32xf32> to vector<1x32xf32>
    %586 = vector.shape_cast %583 : vector<1x32xf32> to vector<1x1x32xf32>
    tpu.vector_store %arg10[%c1_198, %c0_199, %c0_200], %586 {strides = array<i32>} : memref<2x1x32xf32, #tpu.memory_space<vmem>>, vector<1x1x32xf32>,
    return
  }
  func.func @transform_0(%arg0: i32) -> (i32, i32, i32) {
    %c0_i32 = arith.constant 0 : i32
    %c0_i32_0 = arith.constant 0 : i32
    %c0_i32_1 = arith.constant 0 : i32
    %c0_i32_2 = arith.constant 0 : i32
    return %c0_i32, %c0_i32_0, %c0_i32_1 : i32, i32, i32
  }
  func.func @transform_1(%arg0: i32) -> (i32, i32) {
    %c0_i32 = arith.constant 0 : i32
    %c0_i32_0 = arith.constant 0 : i32
    %c0_i32_1 = arith.constant 0 : i32
    return %c0_i32, %c0_i32_0 : i32, i32
  }
  func.func @transform_2(%arg0: i32) -> (i32, i32) {
    %c0_i32 = arith.constant 0 : i32
    %c0_i32_0 = arith.constant 0 : i32
    %c0_i32_1 = arith.constant 0 : i32
    return %c0_i32, %c0_i32_0 : i32, i32
  }
  func.func @transform_3(%arg0: i32) -> (i32, i32, i32) {
    %c0_i32 = arith.constant 0 : i32
    %c0_i32_0 = arith.constant 0 : i32
    %c0_i32_1 = arith.constant 0 : i32
    %c0_i32_2 = arith.constant 0 : i32
    return %c0_i32, %c0_i32_0, %c0_i32_1 : i32, i32, i32
  }
  func.func @transform_4(%arg0: i32) -> (i32, i32, i32) {
    %c0_i32 = arith.constant 0 : i32
    %c0_i32_0 = arith.constant 0 : i32
    %c0_i32_1 = arith.constant 0 : i32
    %c0_i32_2 = arith.constant 0 : i32
    return %c0_i32, %c0_i32_0, %c0_i32_1 : i32, i32, i32
  }
  func.func @transform_5(%arg0: i32) -> (i32, i32, i32) {
    %c0_i32 = arith.constant 0 : i32
    %c0_i32_0 = arith.constant 0 : i32
    %c0_i32_1 = arith.constant 0 : i32
    %c0_i32_2 = arith.constant 0 : i32
    return %c0_i32, %c0_i32_0, %c0_i32_1 : i32, i32, i32
  }
  func.func @transform_6(%arg0: i32) -> (i32, i32, i32) {
    %c0_i32 = arith.constant 0 : i32
    %c0_i32_0 = arith.constant 0 : i32
    %c0_i32_1 = arith.constant 0 : i32
    %c0_i32_2 = arith.constant 0 : i32
    return %c0_i32, %c0_i32_0, %c0_i32_1 : i32, i32, i32
  }
  func.func @transform_7(%arg0: i32) -> (i32, i32) {
    %c0_i32 = arith.constant 0 : i32
    %c0_i32_0 = arith.constant 0 : i32
    %c0_i32_1 = arith.constant 0 : i32
    return %c0_i32, %c0_i32_0 : i32, i32
  }
  func.func @transform_8(%arg0: i32) -> (i32, i32) {
    %c0_i32 = arith.constant 0 : i32
    %c0_i32_0 = arith.constant 0 : i32
    %c0_i32_1 = arith.constant 0 : i32
    return %c0_i32, %c0_i32_0 : i32, i32
  }
  func.func @transform_9(%arg0: i32) -> (i32, i32, i32) {
    %c0_i32 = arith.constant 0 : i32
    %c0_i32_0 = arith.constant 0 : i32
    %c0_i32_1 = arith.constant 0 : i32
    %c0_i32_2 = arith.constant 0 : i32
    return %c0_i32, %c0_i32_0, %c0_i32_1 : i32, i32, i32
  }
}

</mosaic_0001>

<llo_original>
// kernel: vision_transformer_forward.1
$region0: #{vision_transformer_forward.1}
  #allocation0 [shape = 'u32[]', space=smem, size = 0x4, offset = 0x4, fixed_abs, tag = 'smem constant byte address 0x4 - core index']
  #allocation1 [shape = 'u32[144,128]{1,0:T(1,128)}', space=vmem, size = 0x12000, scoped, tag = 'internal scratch']
  %s0 = inlined_call_operand.vmem [shape: f32[2,5,256], index: 0, kind: input, shape index: {}]
  %s1 = inlined_call_operand.vmem [shape: bf16[256,32], index: 1, kind: input, shape index: {}]
  %s2 = inlined_call_operand.vmem [shape: f32[7,32], index: 2, kind: input, shape index: {}]
  %s3 = inlined_call_operand.vmem [shape: bf16[2,32,256], index: 3, kind: input, shape index: {}]
  %s4 = inlined_call_operand.vmem [shape: bf16[2,128,32], index: 4, kind: input, shape index: {}]
  %s5 = inlined_call_operand.vmem [shape: f32[2,10,32], index: 5, kind: input, shape index: {}]
  %s6 = inlined_call_operand.vmem [shape: f32[2,1,128], index: 6, kind: input, shape index: {}]
  %s7 = inlined_call_operand.vmem [shape: f32[52,32], index: 7, kind: input, shape index: {}]
  %s8 = inlined_call_operand.vmem [shape: f32[20,25], index: 8, kind: input, shape index: {}]
  %s9 = inlined_call_operand.hbm [shape: f32[2,1,32], index: 9, kind: output, shape index: {}]
  %s10 = sld [smem:[#allocation0]]
  $region46: #{vision_transformer_forward.1} parent=0
    _
  %s12 = ssub.s32 1, %s10
  %s13 = scalar_select 0, %s12, %s10
  $region1: #{vision_transformer_forward.1} parent=0
    #allocation2 [shape = 'u8[1024]{0}', space=vmem, size = 0x400, scoped, tag = 'output window, operand 0, single buffered']
    #allocation3 [shape = 's32[1]{0}', space=sflag, size = 0x4, scoped, tag = 'scoped memory for vision_transformer_forward.1']
    %14 = vsyncpa [#allocation3], 0
    // Predicated region
    $region2: #{vision_transformer_forward.1} parent=1 // pred_check
      _
    $region3: #{vision_transformer_forward.1} parent=1 // pred_check_branch
      %16 = sbr.rel (0) target = $region5
    $region4: #{vision_transformer_forward.1} parent=1 // pred_region
      _
    $region5: #{vision_transformer_forward.1} parent=1 // pred_fallthru
      _
    // Predicated region
    $region6: #{vision_transformer_forward.1} parent=1 // pred_check
      _
    $region7: #{vision_transformer_forward.1} parent=1 // pred_check_branch
      %18 = sbr.rel (0) target = $region9
    $region8: #{vision_transformer_forward.1} parent=1 // pred_region
      _
    $region9: #{vision_transformer_forward.1} parent=1 // pred_fallthru
      _
    // Predicated region
    $region10: #{vision_transformer_forward.1} parent=1 // pred_check
      _
    $region11: #{vision_transformer_forward.1} parent=1 // pred_check_branch
      %20 = sbr.rel (0) target = $region13
    $region12: #{vision_transformer_forward.1} parent=1 // pred_region
      _
    $region13: #{vision_transformer_forward.1} parent=1 // pred_fallthru
      _
    // Predicated region
    $region14: #{vision_transformer_forward.1} parent=1 // pred_check
      _
    $region15: #{vision_transformer_forward.1} parent=1 // pred_check_branch
      %22 = sbr.rel (0) target = $region17
    $region16: #{vision_transformer_forward.1} parent=1 // pred_region
      _
    $region17: #{vision_transformer_forward.1} parent=1 // pred_fallthru
      _
    // Predicated region
    $region18: #{vision_transformer_forward.1} parent=1 // pred_check
      _
    $region19: #{vision_transformer_forward.1} parent=1 // pred_check_branch
      %24 = sbr.rel (0) target = $region21
    $region20: #{vision_transformer_forward.1} parent=1 // pred_region
      _
    $region21: #{vision_transformer_forward.1} parent=1 // pred_fallthru
      _
    // Predicated region
    $region22: #{vision_transformer_forward.1} parent=1 // pred_check
      _
    $region23: #{vision_transformer_forward.1} parent=1 // pred_check_branch
      %26 = sbr.rel (0) target = $region25
    $region24: #{vision_transformer_forward.1} parent=1 // pred_region
      _
    $region25: #{vision_transformer_forward.1} parent=1 // pred_fallthru
      _
    // Predicated region
    $region26: #{vision_transformer_forward.1} parent=1 // pred_check
      _
    $region27: #{vision_transformer_forward.1} parent=1 // pred_check_branch
      %28 = sbr.rel (0) target = $region29
    $region28: #{vision_transformer_forward.1} parent=1 // pred_region
      _
    $region29: #{vision_transformer_forward.1} parent=1 // pred_fallthru
      _
    // Predicated region
    $region30: #{vision_transformer_forward.1} parent=1 // pred_check
      _
    $region31: #{vision_transformer_forward.1} parent=1 // pred_check_branch
      %30 = sbr.rel (0) target = $region33
    $region32: #{vision_transformer_forward.1} parent=1 // pred_region
      _
    $region33: #{vision_transformer_forward.1} parent=1 // pred_fallthru
      _
    // Predicated region
    $region34: #{vision_transformer_forward.1} parent=1 // pred_check
      _
    $region35: #{vision_transformer_forward.1} parent=1 // pred_check_branch
      %32 = sbr.rel (0) target = $region37
    $region36: #{vision_transformer_forward.1} parent=1 // pred_region
      _
    $region37: #{vision_transformer_forward.1} parent=1 // pred_fallthru
      _
    %v34 = vld [vmem:[%s7] sm:$0xff]
    %v35 = vld [vmem:[%s7 + $0x8] sm:$0xff]
    %v36 = vld [vmem:[%s7 + $0x10] sm:$0xff]
    %v37 = vld [vmem:[%s7 + $0x18] sm:$0xff]
    %v38 = vld [vmem:[%s7 + $0x20] sm:$0xff]
    %v39 = vld [vmem:[%s7 + $0x28] sm:$0xff]
    %v40 = vld [vmem:[%s7 + $0x30] sm:$0xf]
    %v41 = vld [vmem:[%s8] sm:$0xff]
    %v42 = vld [vmem:[%s8 + $0x8] sm:$0xff]
    %v43 = vld [vmem:[%s8 + $0x10] sm:$0xf]
    %v44 = vld [vmem:[%s2] sm:$0x1f]
    %v45 = vld [vmem:[%s2 + $0x5] sm:$0x1]
    %v46 = vld [vmem:[%s2 + $0x6] sm:$0x1]
    %v47 = vld [vmem:[%s0] sm:$0x1f]
    %v48 = vld [vmem:[%s0 + $0x8] sm:$0x1f]
    %v49 = vpack.c.bf16 %v47, %v47
    %v50 = vpack.c.bf16 %v48, %v48
    %v51 = vld [vmem:[%s1] sm:$0xf]
    %v52 = vld [vmem:[%s1 + $0x4] sm:$0xf]
    %v53 = vld [vmem:[%s1 + $0x8] sm:$0xf]
    %v54 = vld [vmem:[%s1 + $0xc] sm:$0xf]
    %v55 = vld [vmem:[%s1 + $0x10] sm:$0xf]
    %v56 = vld [vmem:[%s1 + $0x14] sm:$0xf]
    %v57 = vld [vmem:[%s1 + $0x18] sm:$0xf]
    %v58 = vld [vmem:[%s1 + $0x1c] sm:$0xf]
    %v59 = vld [vmem:[%s1 + $0x20] sm:$0xf]
    %v60 = vld [vmem:[%s1 + $0x24] sm:$0xf]
    %v61 = vld [vmem:[%s1 + $0x28] sm:$0xf]
    %v62 = vld [vmem:[%s1 + $0x2c] sm:$0xf]
    %v63 = vld [vmem:[%s1 + $0x30] sm:$0xf]
    %v64 = vld [vmem:[%s1 + $0x34] sm:$0xf]
    %v65 = vld [vmem:[%s1 + $0x38] sm:$0xf]
    %v66 = vld [vmem:[%s1 + $0x3c] sm:$0xf]
    %v67 = vld [vmem:[%s1 + $0x40] sm:$0xf]
    %v68 = vld [vmem:[%s1 + $0x44] sm:$0xf]
    %v69 = vld [vmem:[%s1 + $0x48] sm:$0xf]
    %v70 = vld [vmem:[%s1 + $0x4c] sm:$0xf]
    %v71 = vld [vmem:[%s1 + $0x50] sm:$0xf]
    %v72 = vld [vmem:[%s1 + $0x54] sm:$0xf]
    %v73 = vld [vmem:[%s1 + $0x58] sm:$0xf]
    %v74 = vld [vmem:[%s1 + $0x5c] sm:$0xf]
    %v75 = vld [vmem:[%s1 + $0x60] sm:$0xf]
    %v76 = vld [vmem:[%s1 + $0x64] sm:$0xf]
    %v77 = vld [vmem:[%s1 + $0x68] sm:$0xf]
    %v78 = vld [vmem:[%s1 + $0x6c] sm:$0xf]
    %v79 = vld [vmem:[%s1 + $0x70] sm:$0xf]
    %v80 = vld [vmem:[%s1 + $0x74] sm:$0xf]
    %v81 = vld [vmem:[%s1 + $0x78] sm:$0xf]
    %v82 = vld [vmem:[%s1 + $0x7c] sm:$0xf]
    %v115 = vunpack.c.l.b16 %v51
    %v116 = vunpack.c.l.b16 %v52
    %v117 = vunpack.c.l.b16 %v53
    %v118 = vunpack.c.l.b16 %v54
    %v119 = vunpack.c.l.b16 %v55
    %v120 = vunpack.c.l.b16 %v56
    %v121 = vunpack.c.l.b16 %v57
    %v122 = vunpack.c.l.b16 %v58
    %v123 = vunpack.c.l.b16 %v59
    %v124 = vunpack.c.l.b16 %v60
    %v125 = vunpack.c.l.b16 %v61
    %v126 = vunpack.c.l.b16 %v62
    %v127 = vunpack.c.l.b16 %v63
    %v128 = vunpack.c.l.b16 %v64
    %v129 = vunpack.c.l.b16 %v65
    %v130 = vunpack.c.l.b16 %v66
    %v131 = vunpack.c.l.b16 %v67
    %v132 = vunpack.c.l.b16 %v68
    %v133 = vunpack.c.l.b16 %v69
    %v134 = vunpack.c.l.b16 %v70
    %v135 = vunpack.c.l.b16 %v71
    %v136 = vunpack.c.l.b16 %v72
    %v137 = vunpack.c.l.b16 %v73
    %v138 = vunpack.c.l.b16 %v74
    %v139 = vunpack.c.l.b16 %v75
    %v140 = vunpack.c.l.b16 %v76
    %v141 = vunpack.c.l.b16 %v77
    %v142 = vunpack.c.l.b16 %v78
    %v143 = vunpack.c.l.b16 %v79
    %v144 = vunpack.c.l.b16 %v80
    %v145 = vunpack.c.l.b16 %v81
    %v146 = vunpack.c.l.b16 %v82
    %v147 = vpack.c.b16 %v116, %v115
    %v148 = vpack.c.b16 %v118, %v117
    %v149 = vpack.c.b16 %v120, %v119
    %v150 = vpack.c.b16 %v122, %v121
    %v151 = vpack.c.b16 %v124, %v123
    %v152 = vpack.c.b16 %v126, %v125
    %v153 = vpack.c.b16 %v128, %v127
    %v154 = vpack.c.b16 %v130, %v129
    %v155 = vpack.c.b16 %v132, %v131
    %v156 = vpack.c.b16 %v134, %v133
    %v157 = vpack.c.b16 %v136, %v135
    %v158 = vpack.c.b16 %v138, %v137
    %v159 = vpack.c.b16 %v140, %v139
    %v160 = vpack.c.b16 %v142, %v141
    %v161 = vpack.c.b16 %v144, %v143
    %v162 = vpack.c.b16 %v146, %v145
    %179 = vmatprep.subr.bf16.mxu0 0
    %180 = vmatpush1.bf16.msra.mxu0 %v147
    %181 = vmatprep.subr.bf16.mxu0 0
    %182 = vmatpush1.bf16.msra.mxu0 %v148
    %183 = vmatprep.subr.bf16.mxu0 0
    %184 = vmatpush1.bf16.msra.mxu0 %v149
    %185 = vmatprep.subr.bf16.mxu0 0
    %186 = vmatpush1.bf16.msra.mxu0 %v150
    %187 = vmatprep.subr.bf16.mxu0 0
    %188 = vmatpush1.bf16.msra.mxu0 %v151
    %189 = vmatprep.subr.bf16.mxu0 0
    %190 = vmatpush1.bf16.msra.mxu0 %v152
    %191 = vmatprep.subr.bf16.mxu0 0
    %192 = vmatpush1.bf16.msra.mxu0 %v153
    %193 = vmatprep.subr.bf16.mxu0 0
    %194 = vmatpush1.bf16.msra.mxu0 %v154
    %195 = vmatprep.subr.bf16.mxu0 0
    %196 = vmatpush1.bf16.msra.mxu0 %v155
    %197 = vmatprep.subr.bf16.mxu0 0
    %198 = vmatpush1.bf16.msra.mxu0 %v156
    %199 = vmatprep.subr.bf16.mxu0 0
    %200 = vmatpush1.bf16.msra.mxu0 %v157
    %201 = vmatprep.subr.bf16.mxu0 0
    %202 = vmatpush1.bf16.msra.mxu0 %v158
    %203 = vmatprep.subr.bf16.mxu0 0
    %204 = vmatpush1.bf16.msra.mxu0 %v159
    %205 = vmatprep.subr.bf16.mxu0 0
    %206 = vmatpush1.bf16.msra.mxu0 %v160
    %207 = vmatprep.subr.bf16.mxu0 0
    %208 = vmatpush1.bf16.msra.mxu0 %v161
    %209 = vmatprep.subr.bf16.mxu0 0
    %210 = vmatpush1.bf16.msra.mxu0 %v162
    %211 = vmatprep.mubr.bf16.mxu0 %v50
    %212 = vmatmul.mubr.bf16.gmra.mrb[0].mxu0 %v49
    %v213 = vpop.f32.mrb[0].mxu0
    %v214 = vadd.f32 %v44, %v213
    %v215 = vpop.f32.mrb[0].mxu0
    %v216 = vpop.f32.mrb[0].mxu0
    %v217 = vpop.f32.mrb[0].mxu0
    %218 = vdwg.mxu0
    %s219 = scalar_lea.vmem %s0, 16
    %v220 = vld [vmem:[%s219] sm:$0x1f]
    %v221 = vld [vmem:[%s219 + $0x8] sm:$0x1f]
    %v222 = vpack.c.bf16 %v220, %v220
    %v223 = vpack.c.bf16 %v221, %v221
    %224 = vmatprep.subr.bf16.mxu0 0
    %225 = vmatpush1.bf16.msra.mxu0 %v147
    %226 = vmatprep.subr.bf16.mxu0 0
    %227 = vmatpush1.bf16.msra.mxu0 %v148
    %228 = vmatprep.subr.bf16.mxu0 0
    %229 = vmatpush1.bf16.msra.mxu0 %v149
    %230 = vmatprep.subr.bf16.mxu0 0
    %231 = vmatpush1.bf16.msra.mxu0 %v150
    %232 = vmatprep.subr.bf16.mxu0 0
    %233 = vmatpush1.bf16.msra.mxu0 %v151
    %234 = vmatprep.subr.bf16.mxu0 0
    %235 = vmatpush1.bf16.msra.mxu0 %v152
    %236 = vmatprep.subr.bf16.mxu0 0
    %237 = vmatpush1.bf16.msra.mxu0 %v153
    %238 = vmatprep.subr.bf16.mxu0 0
    %239 = vmatpush1.bf16.msra.mxu0 %v154
    %240 = vmatprep.subr.bf16.mxu0 0
    %241 = vmatpush1.bf16.msra.mxu0 %v155
    %242 = vmatprep.subr.bf16.mxu0 0
    %243 = vmatpush1.bf16.msra.mxu0 %v156
    %244 = vmatprep.subr.bf16.mxu0 0
    %245 = vmatpush1.bf16.msra.mxu0 %v157
    %246 = vmatprep.subr.bf16.mxu0 0
    %247 = vmatpush1.bf16.msra.mxu0 %v158
    %248 = vmatprep.subr.bf16.mxu0 0
    %249 = vmatpush1.bf16.msra.mxu0 %v159
    %250 = vmatprep.subr.bf16.mxu0 0
    %251 = vmatpush1.bf16.msra.mxu0 %v160
    %252 = vmatprep.subr.bf16.mxu0 0
    %253 = vmatpush1.bf16.msra.mxu0 %v161
    %254 = vmatprep.subr.bf16.mxu0 0
    %255 = vmatpush1.bf16.msra.mxu0 %v162
    %256 = vmatprep.mubr.bf16.mxu0 %v223
    %257 = vmatmul.mubr.bf16.gmra.mrb[0].mxu0 %v222
    %v258 = vpop.f32.mrb[0].mxu0
    %v259 = vadd.f32 %v44, %v258
    %v260 = vpop.f32.mrb[0].mxu0
    %v261 = vpop.f32.mrb[0].mxu0
    %v262 = vpop.f32.mrb[0].mxu0
    %263 = vdwg.mxu0
    %v264 = vld [vmem:[%s5] sm:$0xff]
    %v265 = vld [vmem:[%s5 + $0x8] sm:$0x3]
    %v266 = vld [vmem:[%s3] sm:$0xf]
    %v267 = vld [vmem:[%s3 + $0x8] sm:$0xf]
    %v268 = vld [vmem:[%s3 + $0x10] sm:$0xf]
    %v269 = vld [vmem:[%s3 + $0x18] sm:$0xf]
    %v270 = vld [vmem:[%s3 + $0x4] sm:$0xf]
    %v271 = vld [vmem:[%s3 + $0xc] sm:$0xf]
    %v272 = vld [vmem:[%s3 + $0x14] sm:$0xf]
    %v273 = vld [vmem:[%s3 + $0x1c] sm:$0xf]
    %v274 = vld [vmem:[%s4] sm:$0xf]
    %v275 = vld [vmem:[%s4 + $0x4] sm:$0xf]
    %v276 = vld [vmem:[%s4 + $0x8] sm:$0xf]
    %v277 = vld [vmem:[%s4 + $0xc] sm:$0xf]
    %v278 = vld [vmem:[%s4 + $0x10] sm:$0xf]
    %v279 = vld [vmem:[%s4 + $0x14] sm:$0xf]
    %v280 = vld [vmem:[%s4 + $0x18] sm:$0xf]
    %v281 = vld [vmem:[%s4 + $0x1c] sm:$0xf]
    %v282 = vld [vmem:[%s4 + $0x20] sm:$0xf]
    %v283 = vld [vmem:[%s4 + $0x24] sm:$0xf]
    %v284 = vld [vmem:[%s4 + $0x28] sm:$0xf]
    %v285 = vld [vmem:[%s4 + $0x2c] sm:$0xf]
    %v286 = vld [vmem:[%s4 + $0x30] sm:$0xf]
    %v287 = vld [vmem:[%s4 + $0x34] sm:$0xf]
    %v288 = vld [vmem:[%s4 + $0x38] sm:$0xf]
    %v289 = vld [vmem:[%s4 + $0x3c] sm:$0xf]
    %v290 = vld [vmem:[%s6] sm:$0x1]
    %vm291 = vcmask 258048
    %v292 = vsel %vm291, %v214, 0.0
    %293 = vadd.xlane.f32.xlu0 %v292
    %v294 = vpop.xlane.xlu0 %293
    %v295 = vrcp.pop 32.0
    %v296 = vmul.f32 %v294, %v295
    %v297 = vsub.f32 %v214, %v296
    %v298 = vmul.f32 %v297, %v297
    %v299 = vsel %vm291, %v298, 0.0
    %300 = vadd.xlane.f32.xlu0 %v299
    %v301 = vpop.xlane.xlu0 %300
    %v302 = vmul.f32 %v301, %v295
    %v303 = vadd.f32 %v302, 1e-05
    %v304 = vrsqrt.pop %v303
    %v305 = vmul.f32 %v297, %v304
    %v306 = vlaneseq
    %v307 = vshrl.u32 %v306, 7
    %v308 = vsub.s32 0, %v307
    %v309 = vrot.slane %v264, %v308
    %v310 = vmul.f32 %v305, %v309
    %v311 = vlaneseq
    %v312 = vshrl.u32 %v311, 7
    %v313 = vsub.s32 1, %v312
    %v314 = vrot.slane %v264, %v313
    %v315 = vadd.f32 %v310, %v314
    %v316 = vpack.c.bf16 %v315, %v315
    %v321 = vunpack.c.l.b16 %v266
    %v322 = vunpack.c.l.b16 %v267
    %v323 = vunpack.c.l.b16 %v268
    %v324 = vunpack.c.l.b16 %v269
    %v325 = vpack.c.b16 %v322, %v321
    %v326 = vpack.c.b16 %v324, %v323
    %vm329 = vcmask 261120
    %v331 = vsel %vm329, %v316, 0
    %333 = vmatprep.subr.bf16.mxu0 0
    %334 = vmatpush1.bf16.msra.mxu0 %v325
    %335 = vmatprep.subr.bf16.mxu0 0
    %336 = vmatpush1.bf16.msra.mxu0 %v326
    %337 = vmatprep.subr.bf16.mxu0 0
    %338 = vmatpush1.bf16.msra.mxu0 0
    %339 = vmatprep.subr.bf16.mxu0 0
    %340 = vmatpush1.bf16.msra.mxu0 0
    %341 = vmatprep.subr.bf16.mxu0 0
    %342 = vmatpush1.bf16.msra.mxu0 0
    %343 = vmatprep.subr.bf16.mxu0 0
    %344 = vmatpush1.bf16.msra.mxu0 0
    %345 = vmatprep.subr.bf16.mxu0 0
    %346 = vmatpush1.bf16.msra.mxu0 0
    %347 = vmatprep.subr.bf16.mxu0 0
    %348 = vmatpush1.bf16.msra.mxu0 0
    %349 = vmatprep.subr.bf16.mxu0 0
    %350 = vmatpush1.bf16.msra.mxu0 0
    %351 = vmatprep.subr.bf16.mxu0 0
    %352 = vmatpush1.bf16.msra.mxu0 0
    %353 = vmatprep.subr.bf16.mxu0 0
    %354 = vmatpush1.bf16.msra.mxu0 0
    %355 = vmatprep.subr.bf16.mxu0 0
    %356 = vmatpush1.bf16.msra.mxu0 0
    %357 = vmatprep.subr.bf16.mxu0 0
    %358 = vmatpush1.bf16.msra.mxu0 0
    %359 = vmatprep.subr.bf16.mxu0 0
    %360 = vmatpush1.bf16.msra.mxu0 0
    %361 = vmatprep.subr.bf16.mxu0 0
    %362 = vmatpush1.bf16.msra.mxu0 0
    %363 = vmatprep.subr.bf16.mxu0 0
    %364 = vmatpush1.bf16.msra.mxu0 0
    %365 = vmatprep.mubr.bf16.mxu0 0
    %366 = vmatmul.mubr.bf16.gmra.mrb[0].mxu0 %v331
    %v367 = vpop.f32.mrb[0].mxu0
    %v368 = vadd.f32 0.0, %v367
    %v369 = vpop.f32.mrb[0].mxu0
    %v370 = vpop.f32.mrb[0].mxu0
    %v371 = vpop.f32.mrb[0].mxu0
    %372 = vdwg.mxu0
    %v374 = vsel %vm329, %v368, 0
    %376 = vmatprep.subr.mxu0 0.0
    %377 = vmatpush1.msra.mxu0 %v34
    %378 = vmatprep.subr.mxu0 0.0
    %379 = vmatpush1.msra.mxu0 %v35
    %380 = vmatprep.subr.mxu0 0.0
    %381 = vmatpush1.msra.mxu0 %v36
    %382 = vmatprep.subr.mxu0 0.0
    %383 = vmatpush1.msra.mxu0 %v37
    %384 = vmatprep.subr.mxu0 0.0
    %385 = vmatpush1.msra.mxu0 0.0
    %386 = vmatprep.subr.mxu0 0.0
    %387 = vmatpush1.msra.mxu0 0.0
    %388 = vmatprep.subr.mxu0 0.0
    %389 = vmatpush1.msra.mxu0 0.0
    %390 = vmatprep.subr.mxu0 0.0
    %391 = vmatpush1.msra.mxu0 0.0
    %392 = vmatprep.subr.mxu0 0.0
    %393 = vmatpush1.msra.mxu0 0.0
    %394 = vmatprep.subr.mxu0 0.0
    %395 = vmatpush1.msra.mxu0 0.0
    %396 = vmatprep.subr.mxu0 0.0
    %397 = vmatpush1.msra.mxu0 0.0
    %398 = vmatprep.subr.mxu0 0.0
    %399 = vmatpush1.msra.mxu0 0.0
    %400 = vmatprep.subr.mxu0 0.0
    %401 = vmatpush1.msra.mxu0 0.0
    %402 = vmatprep.subr.mxu0 0.0
    %403 = vmatpush1.msra.mxu0 0.0
    %404 = vmatprep.subr.mxu0 0.0
    %405 = vmatpush1.msra.mxu0 0.0
    %406 = vmatprep.subr.mxu0 0.0
    %407 = vmatpush1.msra.mxu0 0.0
    %408 = vmatprep.subr.mxu0 0.0
    %409 = vmatpush1.msra.mxu0 0.0
    %410 = vmatprep.subr.mxu0 0.0
    %411 = vmatpush1.msra.mxu0 0.0
    %412 = vmatprep.subr.mxu0 0.0
    %413 = vmatpush1.msra.mxu0 0.0
    %414 = vmatprep.subr.mxu0 0.0
    %415 = vmatpush1.msra.mxu0 0.0
    %416 = vmatprep.subr.mxu0 0.0
    %417 = vmatpush1.msra.mxu0 0.0
    %418 = vmatprep.subr.mxu0 0.0
    %419 = vmatpush1.msra.mxu0 0.0
    %420 = vmatprep.subr.mxu0 0.0
    %421 = vmatpush1.msra.mxu0 0.0
    %422 = vmatprep.subr.mxu0 0.0
    %423 = vmatpush1.msra.mxu0 0.0
    %424 = vmatprep.subr.mxu0 0.0
    %425 = vmatpush1.msra.mxu0 0.0
    %426 = vmatprep.subr.mxu0 0.0
    %427 = vmatpush1.msra.mxu0 0.0
    %428 = vmatprep.subr.mxu0 0.0
    %429 = vmatpush1.msra.mxu0 0.0
    %430 = vmatprep.subr.mxu0 0.0
    %431 = vmatpush1.msra.mxu0 0.0
    %432 = vmatprep.subr.mxu0 0.0
    %433 = vmatpush1.msra.mxu0 0.0
    %434 = vmatprep.subr.mxu0 0.0
    %435 = vmatpush1.msra.mxu0 0.0
    %436 = vmatprep.subr.mxu0 0.0
    %437 = vmatpush1.msra.mxu0 0.0
    %438 = vmatprep.subr.mxu0 0.0
    %439 = vmatpush1.msra.mxu0 0.0
    %440 = vmatprep.mubr.f32.mxu0 0.0
    %441 = vmatmul.mubr.f32.gmra.mrb[0].mxu0 %v374
    %v442 = vpop.f32.mrb[0].mxu0
    %v443 = vadd.f32 0.0, %v442
    %v444 = vpop.f32.mrb[0].mxu0
    %445 = vdwg.mxu0
    %v446 = vmul.f32 %v368, %v368
    %v448 = vsel %vm329, %v446, 0
    %450 = vmatprep.subr.mxu0 0.0
    %451 = vmatpush1.msra.mxu0 %v34
    %452 = vmatprep.subr.mxu0 0.0
    %453 = vmatpush1.msra.mxu0 %v35
    %454 = vmatprep.subr.mxu0 0.0
    %455 = vmatpush1.msra.mxu0 %v36
    %456 = vmatprep.subr.mxu0 0.0
    %457 = vmatpush1.msra.mxu0 %v37
    %458 = vmatprep.subr.mxu0 0.0
    %459 = vmatpush1.msra.mxu0 0.0
    %460 = vmatprep.subr.mxu0 0.0
    %461 = vmatpush1.msra.mxu0 0.0
    %462 = vmatprep.subr.mxu0 0.0
    %463 = vmatpush1.msra.mxu0 0.0
    %464 = vmatprep.subr.mxu0 0.0
    %465 = vmatpush1.msra.mxu0 0.0
    %466 = vmatprep.subr.mxu0 0.0
    %467 = vmatpush1.msra.mxu0 0.0
    %468 = vmatprep.subr.mxu0 0.0
    %469 = vmatpush1.msra.mxu0 0.0
    %470 = vmatprep.subr.mxu0 0.0
    %471 = vmatpush1.msra.mxu0 0.0
    %472 = vmatprep.subr.mxu0 0.0
    %473 = vmatpush1.msra.mxu0 0.0
    %474 = vmatprep.subr.mxu0 0.0
    %475 = vmatpush1.msra.mxu0 0.0
    %476 = vmatprep.subr.mxu0 0.0
    %477 = vmatpush1.msra.mxu0 0.0
    %478 = vmatprep.subr.mxu0 0.0
    %479 = vmatpush1.msra.mxu0 0.0
    %480 = vmatprep.subr.mxu0 0.0
    %481 = vmatpush1.msra.mxu0 0.0
    %482 = vmatprep.subr.mxu0 0.0
    %483 = vmatpush1.msra.mxu0 0.0
    %484 = vmatprep.subr.mxu0 0.0
    %485 = vmatpush1.msra.mxu0 0.0
    %486 = vmatprep.subr.mxu0 0.0
    %487 = vmatpush1.msra.mxu0 0.0
    %488 = vmatprep.subr.mxu0 0.0
    %489 = vmatpush1.msra.mxu0 0.0
    %490 = vmatprep.subr.mxu0 0.0
    %491 = vmatpush1.msra.mxu0 0.0
    %492 = vmatprep.subr.mxu0 0.0
    %493 = vmatpush1.msra.mxu0 0.0
    %494 = vmatprep.subr.mxu0 0.0
    %495 = vmatpush1.msra.mxu0 0.0
    %496 = vmatprep.subr.mxu0 0.0
    %497 = vmatpush1.msra.mxu0 0.0
    %498 = vmatprep.subr.mxu0 0.0
    %499 = vmatpush1.msra.mxu0 0.0
    %500 = vmatprep.subr.mxu0 0.0
    %501 = vmatpush1.msra.mxu0 0.0
    %502 = vmatprep.subr.mxu0 0.0
    %503 = vmatpush1.msra.mxu0 0.0
    %504 = vmatprep.subr.mxu0 0.0
    %505 = vmatpush1.msra.mxu0 0.0
    %506 = vmatprep.subr.mxu0 0.0
    %507 = vmatpush1.msra.mxu0 0.0
    %508 = vmatprep.subr.mxu0 0.0
    %509 = vmatpush1.msra.mxu0 0.0
    %510 = vmatprep.subr.mxu0 0.0
    %511 = vmatpush1.msra.mxu0 0.0
    %512 = vmatprep.subr.mxu0 0.0
    %513 = vmatpush1.msra.mxu0 0.0
    %514 = vmatprep.mubr.f32.mxu0 0.0
    %515 = vmatmul.mubr.f32.gmra.mrb[0].mxu0 %v448
    %v516 = vpop.f32.mrb[0].mxu0
    %v517 = vadd.f32 0.0, %v516
    %v518 = vpop.f32.mrb[0].mxu0
    %519 = vdwg.mxu0
    %v520 = vmul.f32 %v443, %v443
    %v521 = vsub.f32 %v517, %v520
    %v522 = vmax.f32 %v521, 0.0
    %v523 = vsub.f32 %v368, %v443
    %v524 = vadd.f32 %v522, 1e-05
    %v525 = vrsqrt.pop %v524
    %v526 = vmul.f32 %v523, %v525
    %v527 = vlaneseq
    %v528 = vshrl.u32 %v527, 7
    %v529 = vsub.s32 2, %v528
    %v530 = vrot.slane %v264, %v529
    %v531 = vmul.f32 %v526, %v530
    %v532 = vlaneseq
    %v533 = vshrl.u32 %v532, 7
    %v534 = vsub.s32 3, %v533
    %v535 = vrot.slane %v264, %v534
    %v536 = vadd.f32 %v531, %v535
    %537 = vrot.lane.b32.xlu0 %v368, 96
    %v538 = vpop.permute.xlu0 %537
    %v539 = vsel %vm329, %v538, 0
    %541 = vmatprep.subr.mxu0 0.0
    %542 = vmatpush1.msra.mxu0 %v34
    %543 = vmatprep.subr.mxu0 0.0
    %544 = vmatpush1.msra.mxu0 %v35
    %545 = vmatprep.subr.mxu0 0.0
    %546 = vmatpush1.msra.mxu0 %v36
    %547 = vmatprep.subr.mxu0 0.0
    %548 = vmatpush1.msra.mxu0 %v37
    %549 = vmatprep.subr.mxu0 0.0
    %550 = vmatpush1.msra.mxu0 0.0
    %551 = vmatprep.subr.mxu0 0.0
    %552 = vmatpush1.msra.mxu0 0.0
    %553 = vmatprep.subr.mxu0 0.0
    %554 = vmatpush1.msra.mxu0 0.0
    %555 = vmatprep.subr.mxu0 0.0
    %556 = vmatpush1.msra.mxu0 0.0
    %557 = vmatprep.subr.mxu0 0.0
    %558 = vmatpush1.msra.mxu0 0.0
    %559 = vmatprep.subr.mxu0 0.0
    %560 = vmatpush1.msra.mxu0 0.0
    %561 = vmatprep.subr.mxu0 0.0
    %562 = vmatpush1.msra.mxu0 0.0
    %563 = vmatprep.subr.mxu0 0.0
    %564 = vmatpush1.msra.mxu0 0.0
    %565 = vmatprep.subr.mxu0 0.0
    %566 = vmatpush1.msra.mxu0 0.0
    %567 = vmatprep.subr.mxu0 0.0
    %568 = vmatpush1.msra.mxu0 0.0
    %569 = vmatprep.subr.mxu0 0.0
    %570 = vmatpush1.msra.mxu0 0.0
    %571 = vmatprep.subr.mxu0 0.0
    %572 = vmatpush1.msra.mxu0 0.0
    %573 = vmatprep.subr.mxu0 0.0
    %574 = vmatpush1.msra.mxu0 0.0
    %575 = vmatprep.subr.mxu0 0.0
    %576 = vmatpush1.msra.mxu0 0.0
    %577 = vmatprep.subr.mxu0 0.0
    %578 = vmatpush1.msra.mxu0 0.0
    %579 = vmatprep.subr.mxu0 0.0
    %580 = vmatpush1.msra.mxu0 0.0
    %581 = vmatprep.subr.mxu0 0.0
    %582 = vmatpush1.msra.mxu0 0.0
    %583 = vmatprep.subr.mxu0 0.0
    %584 = vmatpush1.msra.mxu0 0.0
    %585 = vmatprep.subr.mxu0 0.0
    %586 = vmatpush1.msra.mxu0 0.0
    %587 = vmatprep.subr.mxu0 0.0
    %588 = vmatpush1.msra.mxu0 0.0
    %589 = vmatprep.subr.mxu0 0.0
    %590 = vmatpush1.msra.mxu0 0.0
    %591 = vmatprep.subr.mxu0 0.0
    %592 = vmatpush1.msra.mxu0 0.0
    %593 = vmatprep.subr.mxu0 0.0
    %594 = vmatpush1.msra.mxu0 0.0
    %595 = vmatprep.subr.mxu0 0.0
    %596 = vmatpush1.msra.mxu0 0.0
    %597 = vmatprep.subr.mxu0 0.0
    %598 = vmatpush1.msra.mxu0 0.0
    %599 = vmatprep.subr.mxu0 0.0
    %600 = vmatpush1.msra.mxu0 0.0
    %601 = vmatprep.subr.mxu0 0.0
    %602 = vmatpush1.msra.mxu0 0.0
    %603 = vmatprep.subr.mxu0 0.0
    %604 = vmatpush1.msra.mxu0 0.0
    %605 = vmatprep.mubr.f32.mxu0 0.0
    %606 = vmatmul.mubr.f32.gmra.mrb[0].mxu0 %v539
    %v607 = vpop.f32.mrb[0].mxu0
    %v608 = vadd.f32 0.0, %v607
    %v609 = vpop.f32.mrb[0].mxu0
    %610 = vdwg.mxu0
    %611 = vrot.lane.b32.xlu0 %v446, 96
    %v612 = vpop.permute.xlu0 %611
    %v613 = vsel %vm329, %v612, 0
    %615 = vmatprep.subr.mxu0 0.0
    %616 = vmatpush1.msra.mxu0 %v34
    %617 = vmatprep.subr.mxu0 0.0
    %618 = vmatpush1.msra.mxu0 %v35
    %619 = vmatprep.subr.mxu0 0.0
    %620 = vmatpush1.msra.mxu0 %v36
    %621 = vmatprep.subr.mxu0 0.0
    %622 = vmatpush1.msra.mxu0 %v37
    %623 = vmatprep.subr.mxu0 0.0
    %624 = vmatpush1.msra.mxu0 0.0
    %625 = vmatprep.subr.mxu0 0.0
    %626 = vmatpush1.msra.mxu0 0.0
    %627 = vmatprep.subr.mxu0 0.0
    %628 = vmatpush1.msra.mxu0 0.0
    %629 = vmatprep.subr.mxu0 0.0
    %630 = vmatpush1.msra.mxu0 0.0
    %631 = vmatprep.subr.mxu0 0.0
    %632 = vmatpush1.msra.mxu0 0.0
    %633 = vmatprep.subr.mxu0 0.0
    %634 = vmatpush1.msra.mxu0 0.0
    %635 = vmatprep.subr.mxu0 0.0
    %636 = vmatpush1.msra.mxu0 0.0
    %637 = vmatprep.subr.mxu0 0.0
    %638 = vmatpush1.msra.mxu0 0.0
    %639 = vmatprep.subr.mxu0 0.0
    %640 = vmatpush1.msra.mxu0 0.0
    %641 = vmatprep.subr.mxu0 0.0
    %642 = vmatpush1.msra.mxu0 0.0
    %643 = vmatprep.subr.mxu0 0.0
    %644 = vmatpush1.msra.mxu0 0.0
    %645 = vmatprep.subr.mxu0 0.0
    %646 = vmatpush1.msra.mxu0 0.0
    %647 = vmatprep.subr.mxu0 0.0
    %648 = vmatpush1.msra.mxu0 0.0
    %649 = vmatprep.subr.mxu0 0.0
    %650 = vmatpush1.msra.mxu0 0.0
    %651 = vmatprep.subr.mxu0 0.0
    %652 = vmatpush1.msra.mxu0 0.0
    %653 = vmatprep.subr.mxu0 0.0
    %654 = vmatpush1.msra.mxu0 0.0
    %655 = vmatprep.subr.mxu0 0.0
    %656 = vmatpush1.msra.mxu0 0.0
    %657 = vmatprep.subr.mxu0 0.0
    %658 = vmatpush1.msra.mxu0 0.0
    %659 = vmatprep.subr.mxu0 0.0
    %660 = vmatpush1.msra.mxu0 0.0
    %661 = vmatprep.subr.mxu0 0.0
    %662 = vmatpush1.msra.mxu0 0.0
    %663 = vmatprep.subr.mxu0 0.0
    %664 = vmatpush1.msra.mxu0 0.0
    %665 = vmatprep.subr.mxu0 0.0
    %666 = vmatpush1.msra.mxu0 0.0
    %667 = vmatprep.subr.mxu0 0.0
    %668 = vmatpush1.msra.mxu0 0.0
    %669 = vmatprep.subr.mxu0 0.0
    %670 = vmatpush1.msra.mxu0 0.0
    %671 = vmatprep.subr.mxu0 0.0
    %672 = vmatpush1.msra.mxu0 0.0
    %673 = vmatprep.subr.mxu0 0.0
    %674 = vmatpush1.msra.mxu0 0.0
    %675 = vmatprep.subr.mxu0 0.0
    %676 = vmatpush1.msra.mxu0 0.0
    %677 = vmatprep.subr.mxu0 0.0
    %678 = vmatpush1.msra.mxu0 0.0
    %679 = vmatprep.mubr.f32.mxu0 0.0
    %680 = vmatmul.mubr.f32.gmra.mrb[0].mxu0 %v613
    %v681 = vpop.f32.mrb[0].mxu0
    %v682 = vadd.f32 0.0, %v681
    %v683 = vpop.f32.mrb[0].mxu0
    %684 = vdwg.mxu0
    %v685 = vmul.f32 %v608, %v608
    %v686 = vsub.f32 %v682, %v685
    %v687 = vmax.f32 %v686, 0.0
    %689 = vrot.lane.b32.xlu0 %v608, 32
    %v690 = vpop.permute.xlu0 %689
    %v692 = vsub.f32 %v368, %v690
    %v693 = vadd.f32 %v687, 1e-05
    %v694 = vrsqrt.pop %v693
    %696 = vrot.lane.b32.xlu0 %v694, 32
    %v697 = vpop.permute.xlu0 %696
    %v699 = vmul.f32 %v692, %v697
    %v700 = vlaneseq
    %v701 = vshrl.u32 %v700, 7
    %v702 = vsub.s32 4, %v701
    %v703 = vrot.slane %v264, %v702
    %705 = vrot.lane.b32.xlu0 %v703, 32
    %v706 = vpop.permute.xlu0 %705
    %v708 = vmul.f32 %v699, %v706
    %v709 = vlaneseq
    %v710 = vshrl.u32 %v709, 7
    %v711 = vsub.s32 5, %v710
    %v712 = vrot.slane %v264, %v711
    %714 = vrot.lane.b32.xlu0 %v712, 32
    %v715 = vpop.permute.xlu0 %714
    %v717 = vadd.f32 %v708, %v715
    %721 = vrot.lane.b32.xlu0 %v41, 108
    %v722 = vpop.permute.xlu0 %721
    %723 = vrot.lane.b32.xlu0 %v42, 108
    %v724 = vpop.permute.xlu0 %723
    %725 = vrot.lane.b32.xlu0 %v43, 108
    %v726 = vpop.permute.xlu0 %725
    %728 = vrot.lane.b32.xlu0 %v717, 96
    %v729 = vpop.permute.xlu0 %728
    %vm730 = vcmask 39936
    %v731 = vsel %vm730, %v722, 0
    %v733 = vsel %vm730, %v724, 0
    %v735 = vsel %vm730, %v726, 0
    %vm737 = vcmask 1044480
    %v738 = vsel %vm737, %v729, 0
    %740 = vmatprep.subr.mxu0 0.0
    %741 = vmatpush1.msra.mxu0 %v738
    %742 = vmatprep.subr.mxu0 0.0
    %743 = vmatpush1.msra.mxu0 0.0
    %744 = vmatprep.subr.mxu0 0.0
    %745 = vmatpush1.msra.mxu0 0.0
    %746 = vmatprep.subr.mxu0 0.0
    %747 = vmatpush1.msra.mxu0 0.0
    %748 = vmatprep.subr.mxu0 0.0
    %749 = vmatpush1.msra.mxu0 0.0
    %750 = vmatprep.subr.mxu0 0.0
    %751 = vmatpush1.msra.mxu0 0.0
    %752 = vmatprep.subr.mxu0 0.0
    %753 = vmatpush1.msra.mxu0 0.0
    %754 = vmatprep.subr.mxu0 0.0
    %755 = vmatpush1.msra.mxu0 0.0
    %756 = vmatprep.subr.mxu0 0.0
    %757 = vmatpush1.msra.mxu0 0.0
    %758 = vmatprep.subr.mxu0 0.0
    %759 = vmatpush1.msra.mxu0 0.0
    %760 = vmatprep.subr.mxu0 0.0
    %761 = vmatpush1.msra.mxu0 0.0
    %762 = vmatprep.subr.mxu0 0.0
    %763 = vmatpush1.msra.mxu0 0.0
    %764 = vmatprep.subr.mxu0 0.0
    %765 = vmatpush1.msra.mxu0 0.0
    %766 = vmatprep.subr.mxu0 0.0
    %767 = vmatpush1.msra.mxu0 0.0
    %768 = vmatprep.subr.mxu0 0.0
    %769 = vmatpush1.msra.mxu0 0.0
    %770 = vmatprep.subr.mxu0 0.0
    %771 = vmatpush1.msra.mxu0 0.0
    %772 = vmatprep.subr.mxu0 0.0
    %773 = vmatpush1.msra.mxu0 0.0
    %774 = vmatprep.subr.mxu0 0.0
    %775 = vmatpush1.msra.mxu0 0.0
    %776 = vmatprep.subr.mxu0 0.0
    %777 = vmatpush1.msra.mxu0 0.0
    %778 = vmatprep.subr.mxu0 0.0
    %779 = vmatpush1.msra.mxu0 0.0
    %780 = vmatprep.subr.mxu0 0.0
    %781 = vmatpush1.msra.mxu0 0.0
    %782 = vmatprep.subr.mxu0 0.0
    %783 = vmatpush1.msra.mxu0 0.0
    %784 = vmatprep.subr.mxu0 0.0
    %785 = vmatpush1.msra.mxu0 0.0
    %786 = vmatprep.subr.mxu0 0.0
    %787 = vmatpush1.msra.mxu0 0.0
    %788 = vmatprep.subr.mxu0 0.0
    %789 = vmatpush1.msra.mxu0 0.0
    %790 = vmatprep.subr.mxu0 0.0
    %791 = vmatpush1.msra.mxu0 0.0
    %792 = vmatprep.subr.mxu0 0.0
    %793 = vmatpush1.msra.mxu0 0.0
    %794 = vmatprep.subr.mxu0 0.0
    %795 = vmatpush1.msra.mxu0 0.0
    %796 = vmatprep.subr.mxu0 0.0
    %797 = vmatpush1.msra.mxu0 0.0
    %798 = vmatprep.subr.mxu0 0.0
    %799 = vmatpush1.msra.mxu0 0.0
    %800 = vmatprep.subr.mxu0 0.0
    %801 = vmatpush1.msra.mxu0 0.0
    %802 = vmatprep.subr.mxu0 0.0
    %803 = vmatpush1.msra.mxu0 0.0
    %804 = vmatprep.mubr.f32.mxu0 0.0
    %805 = vmatmul.mubr.f32.gmra.mrb[0].mxu0 %v731
    %v806 = vpop.f32.mrb[0].mxu0
    %v807 = vadd.f32 0.0, %v806
    %v808 = vpop.f32.mrb[0].mxu0
    %809 = vmatprep.mubr.f32.mxu0 0.0
    %810 = vmatmul.mubr.f32.gmra.mrb[0].mxu0 %v733
    %v811 = vpop.f32.mrb[0].mxu0
    %v812 = vadd.f32 0.0, %v811
    %v813 = vpop.f32.mrb[0].mxu0
    %814 = vmatprep.mubr.f32.mxu0 0.0
    %815 = vmatmul.mubr.f32.gmra.mrb[0].mxu0 %v735
    %v816 = vpop.f32.mrb[0].mxu0
    %v817 = vadd.f32 0.0, %v816
    %v818 = vpop.f32.mrb[0].mxu0
    %819 = vdwg.mxu0
    %v820 = vmul.f32 %v807, %v38
    %v821 = vmul.f32 %v812, %v39
    %v822 = vmul.f32 %v817, %v40
    %823 = vrot.lane.b32.xlu0 %v368, 64
    %v824 = vpop.permute.xlu0 %823
    %v825 = vsel %vm737, %v824, 0
    %827 = vmatprep.subr.mxu0 0.0
    %828 = vmatpush1.msra.mxu0 %v825
    %829 = vmatprep.subr.mxu0 0.0
    %830 = vmatpush1.msra.mxu0 0.0
    %831 = vmatprep.subr.mxu0 0.0
    %832 = vmatpush1.msra.mxu0 0.0
    %833 = vmatprep.subr.mxu0 0.0
    %834 = vmatpush1.msra.mxu0 0.0
    %835 = vmatprep.subr.mxu0 0.0
    %836 = vmatpush1.msra.mxu0 0.0
    %837 = vmatprep.subr.mxu0 0.0
    %838 = vmatpush1.msra.mxu0 0.0
    %839 = vmatprep.subr.mxu0 0.0
    %840 = vmatpush1.msra.mxu0 0.0
    %841 = vmatprep.subr.mxu0 0.0
    %842 = vmatpush1.msra.mxu0 0.0
    %843 = vmatprep.subr.mxu0 0.0
    %844 = vmatpush1.msra.mxu0 0.0
    %845 = vmatprep.subr.mxu0 0.0
    %846 = vmatpush1.msra.mxu0 0.0
    %847 = vmatprep.subr.mxu0 0.0
    %848 = vmatpush1.msra.mxu0 0.0
    %849 = vmatprep.subr.mxu0 0.0
    %850 = vmatpush1.msra.mxu0 0.0
    %851 = vmatprep.subr.mxu0 0.0
    %852 = vmatpush1.msra.mxu0 0.0
    %853 = vmatprep.subr.mxu0 0.0
    %854 = vmatpush1.msra.mxu0 0.0
    %855 = vmatprep.subr.mxu0 0.0
    %856 = vmatpush1.msra.mxu0 0.0
    %857 = vmatprep.subr.mxu0 0.0
    %858 = vmatpush1.msra.mxu0 0.0
    %859 = vmatprep.subr.mxu0 0.0
    %860 = vmatpush1.msra.mxu0 0.0
    %861 = vmatprep.subr.mxu0 0.0
    %862 = vmatpush1.msra.mxu0 0.0
    %863 = vmatprep.subr.mxu0 0.0
    %864 = vmatpush1.msra.mxu0 0.0
    %865 = vmatprep.subr.mxu0 0.0
    %866 = vmatpush1.msra.mxu0 0.0
    %867 = vmatprep.subr.mxu0 0.0
    %868 = vmatpush1.msra.mxu0 0.0
    %869 = vmatprep.subr.mxu0 0.0
    %870 = vmatpush1.msra.mxu0 0.0
    %871 = vmatprep.subr.mxu0 0.0
    %872 = vmatpush1.msra.mxu0 0.0
    %873 = vmatprep.subr.mxu0 0.0
    %874 = vmatpush1.msra.mxu0 0.0
    %875 = vmatprep.subr.mxu0 0.0
    %876 = vmatpush1.msra.mxu0 0.0
    %877 = vmatprep.subr.mxu0 0.0
    %878 = vmatpush1.msra.mxu0 0.0
    %879 = vmatprep.subr.mxu0 0.0
    %880 = vmatpush1.msra.mxu0 0.0
    %881 = vmatprep.subr.mxu0 0.0
    %882 = vmatpush1.msra.mxu0 0.0
    %883 = vmatprep.subr.mxu0 0.0
    %884 = vmatpush1.msra.mxu0 0.0
    %885 = vmatprep.subr.mxu0 0.0
    %886 = vmatpush1.msra.mxu0 0.0
    %887 = vmatprep.subr.mxu0 0.0
    %888 = vmatpush1.msra.mxu0 0.0
    %889 = vmatprep.subr.mxu0 0.0
    %890 = vmatpush1.msra.mxu0 0.0
    %891 = vmatprep.mubr.f32.mxu0 0.0
    %892 = vmatmul.mubr.f32.gmra.mrb[0].mxu0 %v731
    %v893 = vpop.f32.mrb[0].mxu0
    %v894 = vadd.f32 0.0, %v893
    %v895 = vpop.f32.mrb[0].mxu0
    %896 = vmatprep.mubr.f32.mxu0 0.0
    %897 = vmatmul.mubr.f32.gmra.mrb[0].mxu0 %v733
    %v898 = vpop.f32.mrb[0].mxu0
    %v899 = vadd.f32 0.0, %v898
    %v900 = vpop.f32.mrb[0].mxu0
    %901 = vmatprep.mubr.f32.mxu0 0.0
    %902 = vmatmul.mubr.f32.gmra.mrb[0].mxu0 %v735
    %v903 = vpop.f32.mrb[0].mxu0
    %v904 = vadd.f32 0.0, %v903
    %v905 = vpop.f32.mrb[0].mxu0
    %906 = vdwg.mxu0
    %v907 = vmul.f32 %v894, %v38
    %v908 = vmul.f32 %v899, %v39
    %v909 = vmul.f32 %v904, %v40
    %v911 = vsel %vm329, %v536, 0
    %v914 = vsel %vm329, %v820, 0
    %v917 = vsel %vm329, %v821, 0
    %v920 = vsel %vm329, %v822, 0
    %922 = vmatprep.subr.mxu0 0.0
    %923 = vmatpush1.xpose.msra.mxu0 %v914
    %924 = vmatprep.subr.mxu0 0.0
    %925 = vmatpush1.xpose.msra.mxu0 %v917
    %926 = vmatprep.subr.mxu0 0.0
    %927 = vmatpush1.xpose.msra.mxu0 %v920
    %928 = vmatprep.subr.mxu0 0.0
    %929 = vmatpush1.xpose.msra.mxu0 0.0
    %930 = vmatprep.subr.mxu0 0.0
    %931 = vmatpush1.xpose.msra.mxu0 0.0
    %932 = vmatprep.subr.mxu0 0.0
    %933 = vmatpush1.xpose.msra.mxu0 0.0
    %934 = vmatprep.subr.mxu0 0.0
    %935 = vmatpush1.xpose.msra.mxu0 0.0
    %936 = vmatprep.subr.mxu0 0.0
    %937 = vmatpush1.xpose.msra.mxu0 0.0
    %938 = vmatprep.subr.mxu0 0.0
    %939 = vmatpush1.xpose.msra.mxu0 0.0
    %940 = vmatprep.subr.mxu0 0.0
    %941 = vmatpush1.xpose.msra.mxu0 0.0
    %942 = vmatprep.subr.mxu0 0.0
    %943 = vmatpush1.xpose.msra.mxu0 0.0
    %944 = vmatprep.subr.mxu0 0.0
    %945 = vmatpush1.xpose.msra.mxu0 0.0
    %946 = vmatprep.subr.mxu0 0.0
    %947 = vmatpush1.xpose.msra.mxu0 0.0
    %948 = vmatprep.subr.mxu0 0.0
    %949 = vmatpush1.xpose.msra.mxu0 0.0
    %950 = vmatprep.subr.mxu0 0.0
    %951 = vmatpush1.xpose.msra.mxu0 0.0
    %952 = vmatprep.subr.mxu0 0.0
    %953 = vmatpush1.xpose.msra.mxu0 0.0
    %954 = vmatprep.subr.mxu0 0.0
    %955 = vmatpush1.xpose.msra.mxu0 0.0
    %956 = vmatprep.subr.mxu0 0.0
    %957 = vmatpush1.xpose.msra.mxu0 0.0
    %958 = vmatprep.subr.mxu0 0.0
    %959 = vmatpush1.xpose.msra.mxu0 0.0
    %960 = vmatprep.subr.mxu0 0.0
    %961 = vmatpush1.xpose.msra.mxu0 0.0
    %962 = vmatprep.subr.mxu0 0.0
    %963 = vmatpush1.xpose.msra.mxu0 0.0
    %964 = vmatprep.subr.mxu0 0.0
    %965 = vmatpush1.xpose.msra.mxu0 0.0
    %966 = vmatprep.subr.mxu0 0.0
    %967 = vmatpush1.xpose.msra.mxu0 0.0
    %968 = vmatprep.subr.mxu0 0.0
    %969 = vmatpush1.xpose.msra.mxu0 0.0
    %970 = vmatprep.subr.mxu0 0.0
    %971 = vmatpush1.xpose.msra.mxu0 0.0
    %972 = vmatprep.subr.mxu0 0.0
    %973 = vmatpush1.xpose.msra.mxu0 0.0
    %974 = vmatprep.subr.mxu0 0.0
    %975 = vmatpush1.xpose.msra.mxu0 0.0
    %976 = vmatprep.subr.mxu0 0.0
    %977 = vmatpush1.xpose.msra.mxu0 0.0
    %978 = vmatprep.subr.mxu0 0.0
    %979 = vmatpush1.xpose.msra.mxu0 0.0
    %980 = vmatprep.subr.mxu0 0.0
    %981 = vmatpush1.xpose.msra.mxu0 0.0
    %982 = vmatprep.subr.mxu0 0.0
    %983 = vmatpush1.xpose.msra.mxu0 0.0
    %984 = vmatprep.subr.mxu0 0.0
    %985 = vmatpush1.xpose.msra.mxu0 0.0
    %986 = vmatprep.mubr.f32.mxu0 0.0
    %987 = vmatmul.mubr.f32.gmra.mrb[0].mxu0 %v911
    %v988 = vpop.f32.mrb[0].mxu0
    %v989 = vadd.f32 0.0, %v988
    %v990 = vpop.f32.mrb[0].mxu0
    %991 = vdwg.mxu0
    %vm992 = vcmask 159744
    %v993 = vsel %vm992, %v989, -inf
    %994 = vmax.xlane.f32.xlu0 %v993
    %v995 = vpop.xlane.xlu0 %994
    %v996 = vsub.f32 %v989, %v995
    %v997 = vmul.f32 %v996, 1.442695
    %v998 = vpow.pop %v997
    %vm999 = vcmask 162816
    %v1001 = vsel %vm999, %v998, 0
    %vm1003 = vcmask 1043456
    %v1004 = vsel %vm1003, %v43, 0
    %1006 = vmatprep.subr.mxu0 0.0
    %1007 = vmatpush1.msra.mxu0 %v41
    %1008 = vmatprep.subr.mxu0 0.0
    %1009 = vmatpush1.msra.mxu0 %v42
    %1010 = vmatprep.subr.mxu0 0.0
    %1011 = vmatpush1.msra.mxu0 %v1004
    %1012 = vmatprep.subr.mxu0 0.0
    %1013 = vmatpush1.msra.mxu0 0.0
    %1014 = vmatprep.subr.mxu0 0.0
    %1015 = vmatpush1.msra.mxu0 0.0
    %1016 = vmatprep.subr.mxu0 0.0
    %1017 = vmatpush1.msra.mxu0 0.0
    %1018 = vmatprep.subr.mxu0 0.0
    %1019 = vmatpush1.msra.mxu0 0.0
    %1020 = vmatprep.subr.mxu0 0.0
    %1021 = vmatpush1.msra.mxu0 0.0
    %1022 = vmatprep.subr.mxu0 0.0
    %1023 = vmatpush1.msra.mxu0 0.0
    %1024 = vmatprep.subr.mxu0 0.0
    %1025 = vmatpush1.msra.mxu0 0.0
    %1026 = vmatprep.subr.mxu0 0.0
    %1027 = vmatpush1.msra.mxu0 0.0
    %1028 = vmatprep.subr.mxu0 0.0
    %1029 = vmatpush1.msra.mxu0 0.0
    %1030 = vmatprep.subr.mxu0 0.0
    %1031 = vmatpush1.msra.mxu0 0.0
    %1032 = vmatprep.subr.mxu0 0.0
    %1033 = vmatpush1.msra.mxu0 0.0
    %1034 = vmatprep.subr.mxu0 0.0
    %1035 = vmatpush1.msra.mxu0 0.0
    %1036 = vmatprep.subr.mxu0 0.0
    %1037 = vmatpush1.msra.mxu0 0.0
    %1038 = vmatprep.subr.mxu0 0.0
    %1039 = vmatpush1.msra.mxu0 0.0
    %1040 = vmatprep.subr.mxu0 0.0
    %1041 = vmatpush1.msra.mxu0 0.0
    %1042 = vmatprep.subr.mxu0 0.0
    %1043 = vmatpush1.msra.mxu0 0.0
    %1044 = vmatprep.subr.mxu0 0.0
    %1045 = vmatpush1.msra.mxu0 0.0
    %1046 = vmatprep.subr.mxu0 0.0
    %1047 = vmatpush1.msra.mxu0 0.0
    %1048 = vmatprep.subr.mxu0 0.0
    %1049 = vmatpush1.msra.mxu0 0.0
    %1050 = vmatprep.subr.mxu0 0.0
    %1051 = vmatpush1.msra.mxu0 0.0
    %1052 = vmatprep.subr.mxu0 0.0
    %1053 = vmatpush1.msra.mxu0 0.0
    %1054 = vmatprep.subr.mxu0 0.0
    %1055 = vmatpush1.msra.mxu0 0.0
    %1056 = vmatprep.subr.mxu0 0.0
    %1057 = vmatpush1.msra.mxu0 0.0
    %1058 = vmatprep.subr.mxu0 0.0
    %1059 = vmatpush1.msra.mxu0 0.0
    %1060 = vmatprep.subr.mxu0 0.0
    %1061 = vmatpush1.msra.mxu0 0.0
    %1062 = vmatprep.subr.mxu0 0.0
    %1063 = vmatpush1.msra.mxu0 0.0
    %1064 = vmatprep.subr.mxu0 0.0
    %1065 = vmatpush1.msra.mxu0 0.0
    %1066 = vmatprep.subr.mxu0 0.0
    %1067 = vmatpush1.msra.mxu0 0.0
    %1068 = vmatprep.subr.mxu0 0.0
    %1069 = vmatpush1.msra.mxu0 0.0
    %1070 = vmatprep.mubr.f32.mxu0 0.0
    %1071 = vmatmul.mubr.f32.gmra.mrb[0].mxu0 %v1001
    %v1072 = vpop.f32.mrb[0].mxu0
    %v1073 = vadd.f32 0.0, %v1072
    %v1074 = vpop.f32.mrb[0].mxu0
    %1075 = vdwg.mxu0
    %v1076 = vmax.f32 %v1073, 1e-20
    %v1077 = vrcp.pop %v1076
    %v1078 = vmul.f32 %v998, %v1077
    %v1080 = vsel %vm999, %v1078, 0
    %v1083 = vsel %vm1003, %v909, 0
    %1085 = vmatprep.subr.mxu0 0.0
    %1086 = vmatpush1.msra.mxu0 %v907
    %1087 = vmatprep.subr.mxu0 0.0
    %1088 = vmatpush1.msra.mxu0 %v908
    %1089 = vmatprep.subr.mxu0 0.0
    %1090 = vmatpush1.msra.mxu0 %v1083
    %1091 = vmatprep.subr.mxu0 0.0
    %1092 = vmatpush1.msra.mxu0 0.0
    %1093 = vmatprep.subr.mxu0 0.0
    %1094 = vmatpush1.msra.mxu0 0.0
    %1095 = vmatprep.subr.mxu0 0.0
    %1096 = vmatpush1.msra.mxu0 0.0
    %1097 = vmatprep.subr.mxu0 0.0
    %1098 = vmatpush1.msra.mxu0 0.0
    %1099 = vmatprep.subr.mxu0 0.0
    %1100 = vmatpush1.msra.mxu0 0.0
    %1101 = vmatprep.subr.mxu0 0.0
    %1102 = vmatpush1.msra.mxu0 0.0
    %1103 = vmatprep.subr.mxu0 0.0
    %1104 = vmatpush1.msra.mxu0 0.0
    %1105 = vmatprep.subr.mxu0 0.0
    %1106 = vmatpush1.msra.mxu0 0.0
    %1107 = vmatprep.subr.mxu0 0.0
    %1108 = vmatpush1.msra.mxu0 0.0
    %1109 = vmatprep.subr.mxu0 0.0
    %1110 = vmatpush1.msra.mxu0 0.0
    %1111 = vmatprep.subr.mxu0 0.0
    %1112 = vmatpush1.msra.mxu0 0.0
    %1113 = vmatprep.subr.mxu0 0.0
    %1114 = vmatpush1.msra.mxu0 0.0
    %1115 = vmatprep.subr.mxu0 0.0
    %1116 = vmatpush1.msra.mxu0 0.0
    %1117 = vmatprep.subr.mxu0 0.0
    %1118 = vmatpush1.msra.mxu0 0.0
    %1119 = vmatprep.subr.mxu0 0.0
    %1120 = vmatpush1.msra.mxu0 0.0
    %1121 = vmatprep.subr.mxu0 0.0
    %1122 = vmatpush1.msra.mxu0 0.0
    %1123 = vmatprep.subr.mxu0 0.0
    %1124 = vmatpush1.msra.mxu0 0.0
    %1125 = vmatprep.subr.mxu0 0.0
    %1126 = vmatpush1.msra.mxu0 0.0
    %1127 = vmatprep.subr.mxu0 0.0
    %1128 = vmatpush1.msra.mxu0 0.0
    %1129 = vmatprep.subr.mxu0 0.0
    %1130 = vmatpush1.msra.mxu0 0.0
    %1131 = vmatprep.subr.mxu0 0.0
    %1132 = vmatpush1.msra.mxu0 0.0
    %1133 = vmatprep.subr.mxu0 0.0
    %1134 = vmatpush1.msra.mxu0 0.0
    %1135 = vmatprep.subr.mxu0 0.0
    %1136 = vmatpush1.msra.mxu0 0.0
    %1137 = vmatprep.subr.mxu0 0.0
    %1138 = vmatpush1.msra.mxu0 0.0
    %1139 = vmatprep.subr.mxu0 0.0
    %1140 = vmatpush1.msra.mxu0 0.0
    %1141 = vmatprep.subr.mxu0 0.0
    %1142 = vmatpush1.msra.mxu0 0.0
    %1143 = vmatprep.subr.mxu0 0.0
    %1144 = vmatpush1.msra.mxu0 0.0
    %1145 = vmatprep.subr.mxu0 0.0
    %1146 = vmatpush1.msra.mxu0 0.0
    %1147 = vmatprep.subr.mxu0 0.0
    %1148 = vmatpush1.msra.mxu0 0.0
    %1149 = vmatprep.mubr.f32.mxu0 0.0
    %1150 = vmatmul.mubr.f32.gmra.mrb[0].mxu0 %v1080
    %v1151 = vpop.f32.mrb[0].mxu0
    %v1152 = vadd.f32 0.0, %v1151
    %v1153 = vpop.f32.mrb[0].mxu0
    %1154 = vdwg.mxu0
    %v1155 = vpack.c.bf16 %v1152, %v1152
    %1156 = vrot.lane.b32.xlu0 %v325, 32
    %v1157 = vpop.permute.xlu0 %1156
    %1158 = vrot.lane.b32.xlu0 %v326, 32
    %v1159 = vpop.permute.xlu0 %1158
    %v1163 = vsel %vm329, %v1155, 0
    %1165 = vmatprep.subr.bf16.mxu0 0
    %1166 = vmatpush1.bf16.msra.mxu0 %v1157
    %1167 = vmatprep.subr.bf16.mxu0 0
    %1168 = vmatpush1.bf16.msra.mxu0 %v1159
    %1169 = vmatprep.subr.bf16.mxu0 0
    %1170 = vmatpush1.bf16.msra.mxu0 0
    %1171 = vmatprep.subr.bf16.mxu0 0
    %1172 = vmatpush1.bf16.msra.mxu0 0
    %1173 = vmatprep.subr.bf16.mxu0 0
    %1174 = vmatpush1.bf16.msra.mxu0 0
    %1175 = vmatprep.subr.bf16.mxu0 0
    %1176 = vmatpush1.bf16.msra.mxu0 0
    %1177 = vmatprep.subr.bf16.mxu0 0
    %1178 = vmatpush1.bf16.msra.mxu0 0
    %1179 = vmatprep.subr.bf16.mxu0 0
    %1180 = vmatpush1.bf16.msra.mxu0 0
    %1181 = vmatprep.subr.bf16.mxu0 0
    %1182 = vmatpush1.bf16.msra.mxu0 0
    %1183 = vmatprep.subr.bf16.mxu0 0
    %1184 = vmatpush1.bf16.msra.mxu0 0
    %1185 = vmatprep.subr.bf16.mxu0 0
    %1186 = vmatpush1.bf16.msra.mxu0 0
    %1187 = vmatprep.subr.bf16.mxu0 0
    %1188 = vmatpush1.bf16.msra.mxu0 0
    %1189 = vmatprep.subr.bf16.mxu0 0
    %1190 = vmatpush1.bf16.msra.mxu0 0
    %1191 = vmatprep.subr.bf16.mxu0 0
    %1192 = vmatpush1.bf16.msra.mxu0 0
    %1193 = vmatprep.subr.bf16.mxu0 0
    %1194 = vmatpush1.bf16.msra.mxu0 0
    %1195 = vmatprep.subr.bf16.mxu0 0
    %1196 = vmatpush1.bf16.msra.mxu0 0
    %1197 = vmatprep.mubr.bf16.mxu0 0
    %1198 = vmatmul.mubr.bf16.gmra.mrb[0].mxu0 %v1163
    %v1199 = vpop.f32.mrb[0].mxu0
    %v1200 = vadd.f32 0.0, %v1199
    %v1201 = vpop.f32.mrb[0].mxu0
    %v1202 = vpop.f32.mrb[0].mxu0
    %v1203 = vpop.f32.mrb[0].mxu0
    %1204 = vdwg.mxu0
    %v1205 = vadd.f32 %v214, %v1200
    %v1206 = vlaneseq
    %v1207 = vshrl.u32 %v1206, 7
    %v1208 = vsub.s32 6, %v1207
    %v1209 = vrot.slane %v264, %v1208
    %v1210 = vadd.f32 %v1205, %v1209
    %v1211 = vsel %vm291, %v1210, 0.0
    %1212 = vadd.xlane.f32.xlu0 %v1211
    %v1213 = vpop.xlane.xlu0 %1212
    %v1214 = vmul.f32 %v1213, %v295
    %v1215 = vsub.f32 %v1210, %v1214
    %v1216 = vmul.f32 %v1215, %v1215
    %v1217 = vsel %vm291, %v1216, 0.0
    %1218 = vadd.xlane.f32.xlu0 %v1217
    %v1219 = vpop.xlane.xlu0 %1218
    %v1220 = vmul.f32 %v1219, %v295
    %v1221 = vadd.f32 %v1220, 1e-05
    %v1222 = vrsqrt.pop %v1221
    %v1223 = vmul.f32 %v1215, %v1222
    %v1224 = vlaneseq
    %v1225 = vshrl.u32 %v1224, 7
    %v1226 = vsub.s32 7, %v1225
    %v1227 = vrot.slane %v264, %v1226
    %v1228 = vmul.f32 %v1223, %v1227
    %v1229 = vlaneseq
    %v1230 = vshrl.u32 %v1229, 7
    %v1231 = vsub.s32 0, %v1230
    %v1232 = vrot.slane %v265, %v1231
    %v1233 = vadd.f32 %v1228, %v1232
    %v1234 = vpack.c.bf16 %v1233, %v1233
    %v1236 = vlaneseq
    %v1237 = vshrl.u32 %v1236, 7
    %v1238 = vsub.s32 0, %v1237
    %v1239 = vrot.slane %v290, %v1238
    %v1245 = vunpack.c.l.b16 %v270
    %v1246 = vunpack.c.l.b16 %v271
    %v1247 = vunpack.c.l.b16 %v272
    %v1248 = vunpack.c.l.b16 %v273
    %v1249 = vpack.c.b16 %v1246, %v1245
    %v1250 = vpack.c.b16 %v1248, %v1247
    %v1254 = vsel %vm329, %v1234, 0
    %1256 = vmatprep.subr.bf16.mxu0 0
    %1257 = vmatpush1.bf16.msra.mxu0 %v1249
    %1258 = vmatprep.subr.bf16.mxu0 0
    %1259 = vmatpush1.bf16.msra.mxu0 %v1250
    %1260 = vmatprep.subr.bf16.mxu0 0
    %1261 = vmatpush1.bf16.msra.mxu0 0
    %1262 = vmatprep.subr.bf16.mxu0 0
    %1263 = vmatpush1.bf16.msra.mxu0 0
    %1264 = vmatprep.subr.bf16.mxu0 0
    %1265 = vmatpush1.bf16.msra.mxu0 0
    %1266 = vmatprep.subr.bf16.mxu0 0
    %1267 = vmatpush1.bf16.msra.mxu0 0
    %1268 = vmatprep.subr.bf16.mxu0 0
    %1269 = vmatpush1.bf16.msra.mxu0 0
    %1270 = vmatprep.subr.bf16.mxu0 0
    %1271 = vmatpush1.bf16.msra.mxu0 0
    %1272 = vmatprep.subr.bf16.mxu0 0
    %1273 = vmatpush1.bf16.msra.mxu0 0
    %1274 = vmatprep.subr.bf16.mxu0 0
    %1275 = vmatpush1.bf16.msra.mxu0 0
    %1276 = vmatprep.subr.bf16.mxu0 0
    %1277 = vmatpush1.bf16.msra.mxu0 0
    %1278 = vmatprep.subr.bf16.mxu0 0
    %1279 = vmatpush1.bf16.msra.mxu0 0
    %1280 = vmatprep.subr.bf16.mxu0 0
    %1281 = vmatpush1.bf16.msra.mxu0 0
    %1282 = vmatprep.subr.bf16.mxu0 0
    %1283 = vmatpush1.bf16.msra.mxu0 0
    %1284 = vmatprep.subr.bf16.mxu0 0
    %1285 = vmatpush1.bf16.msra.mxu0 0
    %1286 = vmatprep.subr.bf16.mxu0 0
    %1287 = vmatpush1.bf16.msra.mxu0 0
    %1288 = vmatprep.mubr.bf16.mxu0 0
    %1289 = vmatmul.mubr.bf16.gmra.mrb[0].mxu0 %v1254
    %v1290 = vpop.f32.mrb[0].mxu0
    %v1291 = vadd.f32 %v1239, %v1290
    %v1292 = vpop.f32.mrb[0].mxu0
    %v1293 = vpop.f32.mrb[0].mxu0
    %v1294 = vpop.f32.mrb[0].mxu0
    %1295 = vdwg.mxu0
    %v1296 = vmul.f32 %v1291, %v1291
    %v1297 = vmul.f32 %v1291, %v1296
    %v1298 = vmul.f32 %v1297, 0.044715
    %v1299 = vadd.f32 %v1291, %v1298
    %v1300 = vmul.f32 %v1299, 0.7978846
    %v1301 = vtanh.pop %v1300
    %v1302 = vadd.f32 %v1301, 1.0
    %v1303 = vmul.f32 %v1302, 0.5
    %v1304 = vmul.f32 %v1291, %v1303
    %v1305 = vpack.c.bf16 %v1304, %v1304
    %v1306 = vlaneseq
    %v1307 = vshrl.u32 %v1306, 7
    %v1308 = vsub.s32 1, %v1307
    %v1309 = vrot.slane %v265, %v1308
    %v1326 = vunpack.c.l.b16 %v274
    %v1327 = vunpack.c.l.b16 %v275
    %v1328 = vunpack.c.l.b16 %v276
    %v1329 = vunpack.c.l.b16 %v277
    %v1330 = vunpack.c.l.b16 %v278
    %v1331 = vunpack.c.l.b16 %v279
    %v1332 = vunpack.c.l.b16 %v280
    %v1333 = vunpack.c.l.b16 %v281
    %v1334 = vunpack.c.l.b16 %v282
    %v1335 = vunpack.c.l.b16 %v283
    %v1336 = vunpack.c.l.b16 %v284
    %v1337 = vunpack.c.l.b16 %v285
    %v1338 = vunpack.c.l.b16 %v286
    %v1339 = vunpack.c.l.b16 %v287
    %v1340 = vunpack.c.l.b16 %v288
    %v1341 = vunpack.c.l.b16 %v289
    %v1342 = vpack.c.b16 %v1327, %v1326
    %v1343 = vpack.c.b16 %v1329, %v1328
    %v1344 = vpack.c.b16 %v1331, %v1330
    %v1345 = vpack.c.b16 %v1333, %v1332
    %v1346 = vpack.c.b16 %v1335, %v1334
    %v1347 = vpack.c.b16 %v1337, %v1336
    %v1348 = vpack.c.b16 %v1339, %v1338
    %v1349 = vpack.c.b16 %v1341, %v1340
    %1358 = vmatprep.subr.bf16.mxu0 0
    %1359 = vmatpush1.bf16.msra.mxu0 %v1342
    %1360 = vmatprep.subr.bf16.mxu0 0
    %1361 = vmatpush1.bf16.msra.mxu0 %v1343
    %1362 = vmatprep.subr.bf16.mxu0 0
    %1363 = vmatpush1.bf16.msra.mxu0 %v1344
    %1364 = vmatprep.subr.bf16.mxu0 0
    %1365 = vmatpush1.bf16.msra.mxu0 %v1345
    %1366 = vmatprep.subr.bf16.mxu0 0
    %1367 = vmatpush1.bf16.msra.mxu0 %v1346
    %1368 = vmatprep.subr.bf16.mxu0 0
    %1369 = vmatpush1.bf16.msra.mxu0 %v1347
    %1370 = vmatprep.subr.bf16.mxu0 0
    %1371 = vmatpush1.bf16.msra.mxu0 %v1348
    %1372 = vmatprep.subr.bf16.mxu0 0
    %1373 = vmatpush1.bf16.msra.mxu0 %v1349
    %1374 = vmatprep.subr.bf16.mxu0 0
    %1375 = vmatpush1.bf16.msra.mxu0 0
    %1376 = vmatprep.subr.bf16.mxu0 0
    %1377 = vmatpush1.bf16.msra.mxu0 0
    %1378 = vmatprep.subr.bf16.mxu0 0
    %1379 = vmatpush1.bf16.msra.mxu0 0
    %1380 = vmatprep.subr.bf16.mxu0 0
    %1381 = vmatpush1.bf16.msra.mxu0 0
    %1382 = vmatprep.subr.bf16.mxu0 0
    %1383 = vmatpush1.bf16.msra.mxu0 0
    %1384 = vmatprep.subr.bf16.mxu0 0
    %1385 = vmatpush1.bf16.msra.mxu0 0
    %1386 = vmatprep.subr.bf16.mxu0 0
    %1387 = vmatpush1.bf16.msra.mxu0 0
    %1388 = vmatprep.subr.bf16.mxu0 0
    %1389 = vmatpush1.bf16.msra.mxu0 0
    %1390 = vmatprep.mubr.bf16.mxu0 0
    %1391 = vmatmul.mubr.bf16.gmra.mrb[0].mxu0 %v1305
    %v1392 = vpop.f32.mrb[0].mxu0
    %v1393 = vadd.f32 %v1309, %v1392
    %v1394 = vpop.f32.mrb[0].mxu0
    %v1395 = vpop.f32.mrb[0].mxu0
    %v1396 = vpop.f32.mrb[0].mxu0
    %1397 = vdwg.mxu0
    %v1398 = vadd.f32 %v1210, %v1393
    %v1399 = vsel %vm291, %v259, 0.0
    %1400 = vadd.xlane.f32.xlu0 %v1399
    %v1401 = vpop.xlane.xlu0 %1400
    %v1402 = vmul.f32 %v1401, %v295
    %v1403 = vsub.f32 %v259, %v1402
    %v1404 = vmul.f32 %v1403, %v1403
    %v1405 = vsel %vm291, %v1404, 0.0
    %1406 = vadd.xlane.f32.xlu0 %v1405
    %v1407 = vpop.xlane.xlu0 %1406
    %v1408 = vmul.f32 %v1407, %v295
    %v1409 = vadd.f32 %v1408, 1e-05
    %v1410 = vrsqrt.pop %v1409
    %v1411 = vmul.f32 %v1403, %v1410
    %v1412 = vmul.f32 %v1411, %v309
    %v1413 = vadd.f32 %v1412, %v314
    %v1414 = vpack.c.bf16 %v1413, %v1413
    %v1416 = vsel %vm329, %v1414, 0
    %1418 = vmatprep.subr.bf16.mxu0 0
    %1419 = vmatpush1.bf16.msra.mxu0 %v325
    %1420 = vmatprep.subr.bf16.mxu0 0
    %1421 = vmatpush1.bf16.msra.mxu0 %v326
    %1422 = vmatprep.subr.bf16.mxu0 0
    %1423 = vmatpush1.bf16.msra.mxu0 0
    %1424 = vmatprep.subr.bf16.mxu0 0
    %1425 = vmatpush1.bf16.msra.mxu0 0
    %1426 = vmatprep.subr.bf16.mxu0 0
    %1427 = vmatpush1.bf16.msra.mxu0 0
    %1428 = vmatprep.subr.bf16.mxu0 0
    %1429 = vmatpush1.bf16.msra.mxu0 0
    %1430 = vmatprep.subr.bf16.mxu0 0
    %1431 = vmatpush1.bf16.msra.mxu0 0
    %1432 = vmatprep.subr.bf16.mxu0 0
    %1433 = vmatpush1.bf16.msra.mxu0 0
    %1434 = vmatprep.subr.bf16.mxu0 0
    %1435 = vmatpush1.bf16.msra.mxu0 0
    %1436 = vmatprep.subr.bf16.mxu0 0
    %1437 = vmatpush1.bf16.msra.mxu0 0
    %1438 = vmatprep.subr.bf16.mxu0 0
    %1439 = vmatpush1.bf16.msra.mxu0 0
    %1440 = vmatprep.subr.bf16.mxu0 0
    %1441 = vmatpush1.bf16.msra.mxu0 0
    %1442 = vmatprep.subr.bf16.mxu0 0
    %1443 = vmatpush1.bf16.msra.mxu0 0
    %1444 = vmatprep.subr.bf16.mxu0 0
    %1445 = vmatpush1.bf16.msra.mxu0 0
    %1446 = vmatprep.subr.bf16.mxu0 0
    %1447 = vmatpush1.bf16.msra.mxu0 0
    %1448 = vmatprep.subr.bf16.mxu0 0
    %1449 = vmatpush1.bf16.msra.mxu0 0
    %1450 = vmatprep.mubr.bf16.mxu0 0
    %1451 = vmatmul.mubr.bf16.gmra.mrb[0].mxu0 %v1416
    %v1452 = vpop.f32.mrb[0].mxu0
    %v1453 = vadd.f32 0.0, %v1452
    %v1454 = vpop.f32.mrb[0].mxu0
    %v1455 = vpop.f32.mrb[0].mxu0
    %v1456 = vpop.f32.mrb[0].mxu0
    %1457 = vdwg.mxu0
    %v1459 = vsel %vm329, %v1453, 0
    %1461 = vmatprep.subr.mxu0 0.0
    %1462 = vmatpush1.msra.mxu0 %v34
    %1463 = vmatprep.subr.mxu0 0.0
    %1464 = vmatpush1.msra.mxu0 %v35
    %1465 = vmatprep.subr.mxu0 0.0
    %1466 = vmatpush1.msra.mxu0 %v36
    %1467 = vmatprep.subr.mxu0 0.0
    %1468 = vmatpush1.msra.mxu0 %v37
    %1469 = vmatprep.subr.mxu0 0.0
    %1470 = vmatpush1.msra.mxu0 0.0
    %1471 = vmatprep.subr.mxu0 0.0
    %1472 = vmatpush1.msra.mxu0 0.0
    %1473 = vmatprep.subr.mxu0 0.0
    %1474 = vmatpush1.msra.mxu0 0.0
    %1475 = vmatprep.subr.mxu0 0.0
    %1476 = vmatpush1.msra.mxu0 0.0
    %1477 = vmatprep.subr.mxu0 0.0
    %1478 = vmatpush1.msra.mxu0 0.0
    %1479 = vmatprep.subr.mxu0 0.0
    %1480 = vmatpush1.msra.mxu0 0.0
    %1481 = vmatprep.subr.mxu0 0.0
    %1482 = vmatpush1.msra.mxu0 0.0
    %1483 = vmatprep.subr.mxu0 0.0
    %1484 = vmatpush1.msra.mxu0 0.0
    %1485 = vmatprep.subr.mxu0 0.0
    %1486 = vmatpush1.msra.mxu0 0.0
    %1487 = vmatprep.subr.mxu0 0.0
    %1488 = vmatpush1.msra.mxu0 0.0
    %1489 = vmatprep.subr.mxu0 0.0
    %1490 = vmatpush1.msra.mxu0 0.0
    %1491 = vmatprep.subr.mxu0 0.0
    %1492 = vmatpush1.msra.mxu0 0.0
    %1493 = vmatprep.subr.mxu0 0.0
    %1494 = vmatpush1.msra.mxu0 0.0
    %1495 = vmatprep.subr.mxu0 0.0
    %1496 = vmatpush1.msra.mxu0 0.0
    %1497 = vmatprep.subr.mxu0 0.0
    %1498 = vmatpush1.msra.mxu0 0.0
    %1499 = vmatprep.subr.mxu0 0.0
    %1500 = vmatpush1.msra.mxu0 0.0
    %1501 = vmatprep.subr.mxu0 0.0
    %1502 = vmatpush1.msra.mxu0 0.0
    %1503 = vmatprep.subr.mxu0 0.0
    %1504 = vmatpush1.msra.mxu0 0.0
    %1505 = vmatprep.subr.mxu0 0.0
    %1506 = vmatpush1.msra.mxu0 0.0
    %1507 = vmatprep.subr.mxu0 0.0
    %1508 = vmatpush1.msra.mxu0 0.0
    %1509 = vmatprep.subr.mxu0 0.0
    %1510 = vmatpush1.msra.mxu0 0.0
    %1511 = vmatprep.subr.mxu0 0.0
    %1512 = vmatpush1.msra.mxu0 0.0
    %1513 = vmatprep.subr.mxu0 0.0
    %1514 = vmatpush1.msra.mxu0 0.0
    %1515 = vmatprep.subr.mxu0 0.0
    %1516 = vmatpush1.msra.mxu0 0.0
    %1517 = vmatprep.subr.mxu0 0.0
    %1518 = vmatpush1.msra.mxu0 0.0
    %1519 = vmatprep.subr.mxu0 0.0
    %1520 = vmatpush1.msra.mxu0 0.0
    %1521 = vmatprep.subr.mxu0 0.0
    %1522 = vmatpush1.msra.mxu0 0.0
    %1523 = vmatprep.subr.mxu0 0.0
    %1524 = vmatpush1.msra.mxu0 0.0
    %1525 = vmatprep.mubr.f32.mxu0 0.0
    %1526 = vmatmul.mubr.f32.gmra.mrb[0].mxu0 %v1459
    %v1527 = vpop.f32.mrb[0].mxu0
    %v1528 = vadd.f32 0.0, %v1527
    %v1529 = vpop.f32.mrb[0].mxu0
    %1530 = vdwg.mxu0
    %v1531 = vmul.f32 %v1453, %v1453
    %v1533 = vsel %vm329, %v1531, 0
    %1535 = vmatprep.subr.mxu0 0.0
    %1536 = vmatpush1.msra.mxu0 %v34
    %1537 = vmatprep.subr.mxu0 0.0
    %1538 = vmatpush1.msra.mxu0 %v35
    %1539 = vmatprep.subr.mxu0 0.0
    %1540 = vmatpush1.msra.mxu0 %v36
    %1541 = vmatprep.subr.mxu0 0.0
    %1542 = vmatpush1.msra.mxu0 %v37
    %1543 = vmatprep.subr.mxu0 0.0
    %1544 = vmatpush1.msra.mxu0 0.0
    %1545 = vmatprep.subr.mxu0 0.0
    %1546 = vmatpush1.msra.mxu0 0.0
    %1547 = vmatprep.subr.mxu0 0.0
    %1548 = vmatpush1.msra.mxu0 0.0
    %1549 = vmatprep.subr.mxu0 0.0
    %1550 = vmatpush1.msra.mxu0 0.0
    %1551 = vmatprep.subr.mxu0 0.0
    %1552 = vmatpush1.msra.mxu0 0.0
    %1553 = vmatprep.subr.mxu0 0.0
    %1554 = vmatpush1.msra.mxu0 0.0
    %1555 = vmatprep.subr.mxu0 0.0
    %1556 = vmatpush1.msra.mxu0 0.0
    %1557 = vmatprep.subr.mxu0 0.0
    %1558 = vmatpush1.msra.mxu0 0.0
    %1559 = vmatprep.subr.mxu0 0.0
    %1560 = vmatpush1.msra.mxu0 0.0
    %1561 = vmatprep.subr.mxu0 0.0
    %1562 = vmatpush1.msra.mxu0 0.0
    %1563 = vmatprep.subr.mxu0 0.0
    %1564 = vmatpush1.msra.mxu0 0.0
    %1565 = vmatprep.subr.mxu0 0.0
    %1566 = vmatpush1.msra.mxu0 0.0
    %1567 = vmatprep.subr.mxu0 0.0
    %1568 = vmatpush1.msra.mxu0 0.0
    %1569 = vmatprep.subr.mxu0 0.0
    %1570 = vmatpush1.msra.mxu0 0.0
    %1571 = vmatprep.subr.mxu0 0.0
    %1572 = vmatpush1.msra.mxu0 0.0
    %1573 = vmatprep.subr.mxu0 0.0
    %1574 = vmatpush1.msra.mxu0 0.0
    %1575 = vmatprep.subr.mxu0 0.0
    %1576 = vmatpush1.msra.mxu0 0.0
    %1577 = vmatprep.subr.mxu0 0.0
    %1578 = vmatpush1.msra.mxu0 0.0
    %1579 = vmatprep.subr.mxu0 0.0
    %1580 = vmatpush1.msra.mxu0 0.0
    %1581 = vmatprep.subr.mxu0 0.0
    %1582 = vmatpush1.msra.mxu0 0.0
    %1583 = vmatprep.subr.mxu0 0.0
    %1584 = vmatpush1.msra.mxu0 0.0
    %1585 = vmatprep.subr.mxu0 0.0
    %1586 = vmatpush1.msra.mxu0 0.0
    %1587 = vmatprep.subr.mxu0 0.0
    %1588 = vmatpush1.msra.mxu0 0.0
    %1589 = vmatprep.subr.mxu0 0.0
    %1590 = vmatpush1.msra.mxu0 0.0
    %1591 = vmatprep.subr.mxu0 0.0
    %1592 = vmatpush1.msra.mxu0 0.0
    %1593 = vmatprep.subr.mxu0 0.0
    %1594 = vmatpush1.msra.mxu0 0.0
    %1595 = vmatprep.subr.mxu0 0.0
    %1596 = vmatpush1.msra.mxu0 0.0
    %1597 = vmatprep.subr.mxu0 0.0
    %1598 = vmatpush1.msra.mxu0 0.0
    %1599 = vmatprep.mubr.f32.mxu0 0.0
    %1600 = vmatmul.mubr.f32.gmra.mrb[0].mxu0 %v1533
    %v1601 = vpop.f32.mrb[0].mxu0
    %v1602 = vadd.f32 0.0, %v1601
    %v1603 = vpop.f32.mrb[0].mxu0
    %1604 = vdwg.mxu0
    %v1605 = vmul.f32 %v1528, %v1528
    %v1606 = vsub.f32 %v1602, %v1605
    %v1607 = vmax.f32 %v1606, 0.0
    %v1608 = vsub.f32 %v1453, %v1528
    %v1609 = vadd.f32 %v1607, 1e-05
    %v1610 = vrsqrt.pop %v1609
    %v1611 = vmul.f32 %v1608, %v1610
    %v1612 = vmul.f32 %v1611, %v530
    %v1613 = vadd.f32 %v1612, %v535
    %1614 = vrot.lane.b32.xlu0 %v1453, 96
    %v1615 = vpop.permute.xlu0 %1614
    %v1616 = vsel %vm329, %v1615, 0
    %1618 = vmatprep.subr.mxu0 0.0
    %1619 = vmatpush1.msra.mxu0 %v34
    %1620 = vmatprep.subr.mxu0 0.0
    %1621 = vmatpush1.msra.mxu0 %v35
    %1622 = vmatprep.subr.mxu0 0.0
    %1623 = vmatpush1.msra.mxu0 %v36
    %1624 = vmatprep.subr.mxu0 0.0
    %1625 = vmatpush1.msra.mxu0 %v37
    %1626 = vmatprep.subr.mxu0 0.0
    %1627 = vmatpush1.msra.mxu0 0.0
    %1628 = vmatprep.subr.mxu0 0.0
    %1629 = vmatpush1.msra.mxu0 0.0
    %1630 = vmatprep.subr.mxu0 0.0
    %1631 = vmatpush1.msra.mxu0 0.0
    %1632 = vmatprep.subr.mxu0 0.0
    %1633 = vmatpush1.msra.mxu0 0.0
    %1634 = vmatprep.subr.mxu0 0.0
    %1635 = vmatpush1.msra.mxu0 0.0
    %1636 = vmatprep.subr.mxu0 0.0
    %1637 = vmatpush1.msra.mxu0 0.0
    %1638 = vmatprep.subr.mxu0 0.0
    %1639 = vmatpush1.msra.mxu0 0.0
    %1640 = vmatprep.subr.mxu0 0.0
    %1641 = vmatpush1.msra.mxu0 0.0
    %1642 = vmatprep.subr.mxu0 0.0
    %1643 = vmatpush1.msra.mxu0 0.0
    %1644 = vmatprep.subr.mxu0 0.0
    %1645 = vmatpush1.msra.mxu0 0.0
    %1646 = vmatprep.subr.mxu0 0.0
    %1647 = vmatpush1.msra.mxu0 0.0
    %1648 = vmatprep.subr.mxu0 0.0
    %1649 = vmatpush1.msra.mxu0 0.0
    %1650 = vmatprep.subr.mxu0 0.0
    %1651 = vmatpush1.msra.mxu0 0.0
    %1652 = vmatprep.subr.mxu0 0.0
    %1653 = vmatpush1.msra.mxu0 0.0
    %1654 = vmatprep.subr.mxu0 0.0
    %1655 = vmatpush1.msra.mxu0 0.0
    %1656 = vmatprep.subr.mxu0 0.0
    %1657 = vmatpush1.msra.mxu0 0.0
    %1658 = vmatprep.subr.mxu0 0.0
    %1659 = vmatpush1.msra.mxu0 0.0
    %1660 = vmatprep.subr.mxu0 0.0
    %1661 = vmatpush1.msra.mxu0 0.0
    %1662 = vmatprep.subr.mxu0 0.0
    %1663 = vmatpush1.msra.mxu0 0.0
    %1664 = vmatprep.subr.mxu0 0.0
    %1665 = vmatpush1.msra.mxu0 0.0
    %1666 = vmatprep.subr.mxu0 0.0
    %1667 = vmatpush1.msra.mxu0 0.0
    %1668 = vmatprep.subr.mxu0 0.0
    %1669 = vmatpush1.msra.mxu0 0.0
    %1670 = vmatprep.subr.mxu0 0.0
    %1671 = vmatpush1.msra.mxu0 0.0
    %1672 = vmatprep.subr.mxu0 0.0
    %1673 = vmatpush1.msra.mxu0 0.0
    %1674 = vmatprep.subr.mxu0 0.0
    %1675 = vmatpush1.msra.mxu0 0.0
    %1676 = vmatprep.subr.mxu0 0.0
    %1677 = vmatpush1.msra.mxu0 0.0
    %1678 = vmatprep.subr.mxu0 0.0
    %1679 = vmatpush1.msra.mxu0 0.0
    %1680 = vmatprep.subr.mxu0 0.0
    %1681 = vmatpush1.msra.mxu0 0.0
    %1682 = vmatprep.mubr.f32.mxu0 0.0
    %1683 = vmatmul.mubr.f32.gmra.mrb[0].mxu0 %v1616
    %v1684 = vpop.f32.mrb[0].mxu0
    %v1685 = vadd.f32 0.0, %v1684
    %v1686 = vpop.f32.mrb[0].mxu0
    %1687 = vdwg.mxu0
    %1688 = vrot.lane.b32.xlu0 %v1531, 96
    %v1689 = vpop.permute.xlu0 %1688
    %v1690 = vsel %vm329, %v1689, 0
    %1692 = vmatprep.subr.mxu0 0.0
    %1693 = vmatpush1.msra.mxu0 %v34
    %1694 = vmatprep.subr.mxu0 0.0
    %1695 = vmatpush1.msra.mxu0 %v35
    %1696 = vmatprep.subr.mxu0 0.0
    %1697 = vmatpush1.msra.mxu0 %v36
    %1698 = vmatprep.subr.mxu0 0.0
    %1699 = vmatpush1.msra.mxu0 %v37
    %1700 = vmatprep.subr.mxu0 0.0
    %1701 = vmatpush1.msra.mxu0 0.0
    %1702 = vmatprep.subr.mxu0 0.0
    %1703 = vmatpush1.msra.mxu0 0.0
    %1704 = vmatprep.subr.mxu0 0.0
    %1705 = vmatpush1.msra.mxu0 0.0
    %1706 = vmatprep.subr.mxu0 0.0
    %1707 = vmatpush1.msra.mxu0 0.0
    %1708 = vmatprep.subr.mxu0 0.0
    %1709 = vmatpush1.msra.mxu0 0.0
    %1710 = vmatprep.subr.mxu0 0.0
    %1711 = vmatpush1.msra.mxu0 0.0
    %1712 = vmatprep.subr.mxu0 0.0
    %1713 = vmatpush1.msra.mxu0 0.0
    %1714 = vmatprep.subr.mxu0 0.0
    %1715 = vmatpush1.msra.mxu0 0.0
    %1716 = vmatprep.subr.mxu0 0.0
    %1717 = vmatpush1.msra.mxu0 0.0
    %1718 = vmatprep.subr.mxu0 0.0
    %1719 = vmatpush1.msra.mxu0 0.0
    %1720 = vmatprep.subr.mxu0 0.0
    %1721 = vmatpush1.msra.mxu0 0.0
    %1722 = vmatprep.subr.mxu0 0.0
    %1723 = vmatpush1.msra.mxu0 0.0
    %1724 = vmatprep.subr.mxu0 0.0
    %1725 = vmatpush1.msra.mxu0 0.0
    %1726 = vmatprep.subr.mxu0 0.0
    %1727 = vmatpush1.msra.mxu0 0.0
    %1728 = vmatprep.subr.mxu0 0.0
    %1729 = vmatpush1.msra.mxu0 0.0
    %1730 = vmatprep.subr.mxu0 0.0
    %1731 = vmatpush1.msra.mxu0 0.0
    %1732 = vmatprep.subr.mxu0 0.0
    %1733 = vmatpush1.msra.mxu0 0.0
    %1734 = vmatprep.subr.mxu0 0.0
    %1735 = vmatpush1.msra.mxu0 0.0
    %1736 = vmatprep.subr.mxu0 0.0
    %1737 = vmatpush1.msra.mxu0 0.0
    %1738 = vmatprep.subr.mxu0 0.0
    %1739 = vmatpush1.msra.mxu0 0.0
    %1740 = vmatprep.subr.mxu0 0.0
    %1741 = vmatpush1.msra.mxu0 0.0
    %1742 = vmatprep.subr.mxu0 0.0
    %1743 = vmatpush1.msra.mxu0 0.0
    %1744 = vmatprep.subr.mxu0 0.0
    %1745 = vmatpush1.msra.mxu0 0.0
    %1746 = vmatprep.subr.mxu0 0.0
    %1747 = vmatpush1.msra.mxu0 0.0
    %1748 = vmatprep.subr.mxu0 0.0
    %1749 = vmatpush1.msra.mxu0 0.0
    %1750 = vmatprep.subr.mxu0 0.0
    %1751 = vmatpush1.msra.mxu0 0.0
    %1752 = vmatprep.subr.mxu0 0.0
    %1753 = vmatpush1.msra.mxu0 0.0
    %1754 = vmatprep.subr.mxu0 0.0
    %1755 = vmatpush1.msra.mxu0 0.0
    %1756 = vmatprep.mubr.f32.mxu0 0.0
    %1757 = vmatmul.mubr.f32.gmra.mrb[0].mxu0 %v1690
    %v1758 = vpop.f32.mrb[0].mxu0
    %v1759 = vadd.f32 0.0, %v1758
    %v1760 = vpop.f32.mrb[0].mxu0
    %1761 = vdwg.mxu0
    %v1762 = vmul.f32 %v1685, %v1685
    %v1763 = vsub.f32 %v1759, %v1762
    %v1764 = vmax.f32 %v1763, 0.0
    %1766 = vrot.lane.b32.xlu0 %v1685, 32
    %v1767 = vpop.permute.xlu0 %1766
    %v1769 = vsub.f32 %v1453, %v1767
    %v1770 = vadd.f32 %v1764, 1e-05
    %v1771 = vrsqrt.pop %v1770
    %1773 = vrot.lane.b32.xlu0 %v1771, 32
    %v1774 = vpop.permute.xlu0 %1773
    %v1776 = vmul.f32 %v1769, %v1774
    %v1777 = vmul.f32 %v1776, %v706
    %v1778 = vadd.f32 %v1777, %v715
    %1780 = vrot.lane.b32.xlu0 %v1778, 96
    %v1781 = vpop.permute.xlu0 %1780
    %v1782 = vsel %vm737, %v1781, 0
    %1784 = vmatprep.subr.mxu0 0.0
    %1785 = vmatpush1.msra.mxu0 %v1782
    %1786 = vmatprep.subr.mxu0 0.0
    %1787 = vmatpush1.msra.mxu0 0.0
    %1788 = vmatprep.subr.mxu0 0.0
    %1789 = vmatpush1.msra.mxu0 0.0
    %1790 = vmatprep.subr.mxu0 0.0
    %1791 = vmatpush1.msra.mxu0 0.0
    %1792 = vmatprep.subr.mxu0 0.0
    %1793 = vmatpush1.msra.mxu0 0.0
    %1794 = vmatprep.subr.mxu0 0.0
    %1795 = vmatpush1.msra.mxu0 0.0
    %1796 = vmatprep.subr.mxu0 0.0
    %1797 = vmatpush1.msra.mxu0 0.0
    %1798 = vmatprep.subr.mxu0 0.0
    %1799 = vmatpush1.msra.mxu0 0.0
    %1800 = vmatprep.subr.mxu0 0.0
    %1801 = vmatpush1.msra.mxu0 0.0
    %1802 = vmatprep.subr.mxu0 0.0
    %1803 = vmatpush1.msra.mxu0 0.0
    %1804 = vmatprep.subr.mxu0 0.0
    %1805 = vmatpush1.msra.mxu0 0.0
    %1806 = vmatprep.subr.mxu0 0.0
    %1807 = vmatpush1.msra.mxu0 0.0
    %1808 = vmatprep.subr.mxu0 0.0
    %1809 = vmatpush1.msra.mxu0 0.0
    %1810 = vmatprep.subr.mxu0 0.0
    %1811 = vmatpush1.msra.mxu0 0.0
    %1812 = vmatprep.subr.mxu0 0.0
    %1813 = vmatpush1.msra.mxu0 0.0
    %1814 = vmatprep.subr.mxu0 0.0
    %1815 = vmatpush1.msra.mxu0 0.0
    %1816 = vmatprep.subr.mxu0 0.0
    %1817 = vmatpush1.msra.mxu0 0.0
    %1818 = vmatprep.subr.mxu0 0.0
    %1819 = vmatpush1.msra.mxu0 0.0
    %1820 = vmatprep.subr.mxu0 0.0
    %1821 = vmatpush1.msra.mxu0 0.0
    %1822 = vmatprep.subr.mxu0 0.0
    %1823 = vmatpush1.msra.mxu0 0.0
    %1824 = vmatprep.subr.mxu0 0.0
    %1825 = vmatpush1.msra.mxu0 0.0
    %1826 = vmatprep.subr.mxu0 0.0
    %1827 = vmatpush1.msra.mxu0 0.0
    %1828 = vmatprep.subr.mxu0 0.0
    %1829 = vmatpush1.msra.mxu0 0.0
    %1830 = vmatprep.subr.mxu0 0.0
    %1831 = vmatpush1.msra.mxu0 0.0
    %1832 = vmatprep.subr.mxu0 0.0
    %1833 = vmatpush1.msra.mxu0 0.0
    %1834 = vmatprep.subr.mxu0 0.0
    %1835 = vmatpush1.msra.mxu0 0.0
    %1836 = vmatprep.subr.mxu0 0.0
    %1837 = vmatpush1.msra.mxu0 0.0
    %1838 = vmatprep.subr.mxu0 0.0
    %1839 = vmatpush1.msra.mxu0 0.0
    %1840 = vmatprep.subr.mxu0 0.0
    %1841 = vmatpush1.msra.mxu0 0.0
    %1842 = vmatprep.subr.mxu0 0.0
    %1843 = vmatpush1.msra.mxu0 0.0
    %1844 = vmatprep.subr.mxu0 0.0
    %1845 = vmatpush1.msra.mxu0 0.0
    %1846 = vmatprep.subr.mxu0 0.0
    %1847 = vmatpush1.msra.mxu0 0.0
    %1848 = vmatprep.mubr.f32.mxu0 0.0
    %1849 = vmatmul.mubr.f32.gmra.mrb[0].mxu0 %v731
    %v1850 = vpop.f32.mrb[0].mxu0
    %v1851 = vadd.f32 0.0, %v1850
    %v1852 = vpop.f32.mrb[0].mxu0
    %1853 = vmatprep.mubr.f32.mxu0 0.0
    %1854 = vmatmul.mubr.f32.gmra.mrb[0].mxu0 %v733
    %v1855 = vpop.f32.mrb[0].mxu0
    %v1856 = vadd.f32 0.0, %v1855
    %v1857 = vpop.f32.mrb[0].mxu0
    %1858 = vmatprep.mubr.f32.mxu0 0.0
    %1859 = vmatmul.mubr.f32.gmra.mrb[0].mxu0 %v735
    %v1860 = vpop.f32.mrb[0].mxu0
    %v1861 = vadd.f32 0.0, %v1860
    %v1862 = vpop.f32.mrb[0].mxu0
    %1863 = vdwg.mxu0
    %v1864 = vmul.f32 %v1851, %v38
    %v1865 = vmul.f32 %v1856, %v39
    %v1866 = vmul.f32 %v1861, %v40
    %1867 = vrot.lane.b32.xlu0 %v1453, 64
    %v1868 = vpop.permute.xlu0 %1867
    %v1869 = vsel %vm737, %v1868, 0
    %1871 = vmatprep.subr.mxu0 0.0
    %1872 = vmatpush1.msra.mxu0 %v1869
    %1873 = vmatprep.subr.mxu0 0.0
    %1874 = vmatpush1.msra.mxu0 0.0
    %1875 = vmatprep.subr.mxu0 0.0
    %1876 = vmatpush1.msra.mxu0 0.0
    %1877 = vmatprep.subr.mxu0 0.0
    %1878 = vmatpush1.msra.mxu0 0.0
    %1879 = vmatprep.subr.mxu0 0.0
    %1880 = vmatpush1.msra.mxu0 0.0
    %1881 = vmatprep.subr.mxu0 0.0
    %1882 = vmatpush1.msra.mxu0 0.0
    %1883 = vmatprep.subr.mxu0 0.0
    %1884 = vmatpush1.msra.mxu0 0.0
    %1885 = vmatprep.subr.mxu0 0.0
    %1886 = vmatpush1.msra.mxu0 0.0
    %1887 = vmatprep.subr.mxu0 0.0
    %1888 = vmatpush1.msra.mxu0 0.0
    %1889 = vmatprep.subr.mxu0 0.0
    %1890 = vmatpush1.msra.mxu0 0.0
    %1891 = vmatprep.subr.mxu0 0.0
    %1892 = vmatpush1.msra.mxu0 0.0
    %1893 = vmatprep.subr.mxu0 0.0
    %1894 = vmatpush1.msra.mxu0 0.0
    %1895 = vmatprep.subr.mxu0 0.0
    %1896 = vmatpush1.msra.mxu0 0.0
    %1897 = vmatprep.subr.mxu0 0.0
    %1898 = vmatpush1.msra.mxu0 0.0
    %1899 = vmatprep.subr.mxu0 0.0
    %1900 = vmatpush1.msra.mxu0 0.0
    %1901 = vmatprep.subr.mxu0 0.0
    %1902 = vmatpush1.msra.mxu0 0.0
    %1903 = vmatprep.subr.mxu0 0.0
    %1904 = vmatpush1.msra.mxu0 0.0
    %1905 = vmatprep.subr.mxu0 0.0
    %1906 = vmatpush1.msra.mxu0 0.0
    %1907 = vmatprep.subr.mxu0 0.0
    %1908 = vmatpush1.msra.mxu0 0.0
    %1909 = vmatprep.subr.mxu0 0.0
    %1910 = vmatpush1.msra.mxu0 0.0
    %1911 = vmatprep.subr.mxu0 0.0
    %1912 = vmatpush1.msra.mxu0 0.0
    %1913 = vmatprep.subr.mxu0 0.0
    %1914 = vmatpush1.msra.mxu0 0.0
    %1915 = vmatprep.subr.mxu0 0.0
    %1916 = vmatpush1.msra.mxu0 0.0
    %1917 = vmatprep.subr.mxu0 0.0
    %1918 = vmatpush1.msra.mxu0 0.0
    %1919 = vmatprep.subr.mxu0 0.0
    %1920 = vmatpush1.msra.mxu0 0.0
    %1921 = vmatprep.subr.mxu0 0.0
    %1922 = vmatpush1.msra.mxu0 0.0
    %1923 = vmatprep.subr.mxu0 0.0
    %1924 = vmatpush1.msra.mxu0 0.0
    %1925 = vmatprep.subr.mxu0 0.0
    %1926 = vmatpush1.msra.mxu0 0.0
    %1927 = vmatprep.subr.mxu0 0.0
    %1928 = vmatpush1.msra.mxu0 0.0
    %1929 = vmatprep.subr.mxu0 0.0
    %1930 = vmatpush1.msra.mxu0 0.0
    %1931 = vmatprep.subr.mxu0 0.0
    %1932 = vmatpush1.msra.mxu0 0.0
    %1933 = vmatprep.subr.mxu0 0.0
    %1934 = vmatpush1.msra.mxu0 0.0
    %1935 = vmatprep.mubr.f32.mxu0 0.0
    %1936 = vmatmul.mubr.f32.gmra.mrb[0].mxu0 %v731
    %v1937 = vpop.f32.mrb[0].mxu0
    %v1938 = vadd.f32 0.0, %v1937
    %v1939 = vpop.f32.mrb[0].mxu0
    %1940 = vmatprep.mubr.f32.mxu0 0.0
    %1941 = vmatmul.mubr.f32.gmra.mrb[0].mxu0 %v733
    %v1942 = vpop.f32.mrb[0].mxu0
    %v1943 = vadd.f32 0.0, %v1942
    %v1944 = vpop.f32.mrb[0].mxu0
    %1945 = vmatprep.mubr.f32.mxu0 0.0
    %1946 = vmatmul.mubr.f32.gmra.mrb[0].mxu0 %v735
    %v1947 = vpop.f32.mrb[0].mxu0
    %v1948 = vadd.f32 0.0, %v1947
    %v1949 = vpop.f32.mrb[0].mxu0
    %1950 = vdwg.mxu0
    %v1951 = vmul.f32 %v1938, %v38
    %v1952 = vmul.f32 %v1943, %v39
    %v1953 = vmul.f32 %v1948, %v40
    %v1955 = vsel %vm329, %v1613, 0
    %v1958 = vsel %vm329, %v1864, 0
    %v1961 = vsel %vm329, %v1865, 0
    %v1964 = vsel %vm329, %v1866, 0
    %1966 = vmatprep.subr.mxu0 0.0
    %1967 = vmatpush1.xpose.msra.mxu0 %v1958
    %1968 = vmatprep.subr.mxu0 0.0
    %1969 = vmatpush1.xpose.msra.mxu0 %v1961
    %1970 = vmatprep.subr.mxu0 0.0
    %1971 = vmatpush1.xpose.msra.mxu0 %v1964
    %1972 = vmatprep.subr.mxu0 0.0
    %1973 = vmatpush1.xpose.msra.mxu0 0.0
    %1974 = vmatprep.subr.mxu0 0.0
    %1975 = vmatpush1.xpose.msra.mxu0 0.0
    %1976 = vmatprep.subr.mxu0 0.0
    %1977 = vmatpush1.xpose.msra.mxu0 0.0
    %1978 = vmatprep.subr.mxu0 0.0
    %1979 = vmatpush1.xpose.msra.mxu0 0.0
    %1980 = vmatprep.subr.mxu0 0.0
    %1981 = vmatpush1.xpose.msra.mxu0 0.0
    %1982 = vmatprep.subr.mxu0 0.0
    %1983 = vmatpush1.xpose.msra.mxu0 0.0
    %1984 = vmatprep.subr.mxu0 0.0
    %1985 = vmatpush1.xpose.msra.mxu0 0.0
    %1986 = vmatprep.subr.mxu0 0.0
    %1987 = vmatpush1.xpose.msra.mxu0 0.0
    %1988 = vmatprep.subr.mxu0 0.0
    %1989 = vmatpush1.xpose.msra.mxu0 0.0
    %1990 = vmatprep.subr.mxu0 0.0
    %1991 = vmatpush1.xpose.msra.mxu0 0.0
    %1992 = vmatprep.subr.mxu0 0.0
    %1993 = vmatpush1.xpose.msra.mxu0 0.0
    %1994 = vmatprep.subr.mxu0 0.0
    %1995 = vmatpush1.xpose.msra.mxu0 0.0
    %1996 = vmatprep.subr.mxu0 0.0
    %1997 = vmatpush1.xpose.msra.mxu0 0.0
    %1998 = vmatprep.subr.mxu0 0.0
    %1999 = vmatpush1.xpose.msra.mxu0 0.0
    %2000 = vmatprep.subr.mxu0 0.0
    %2001 = vmatpush1.xpose.msra.mxu0 0.0
    %2002 = vmatprep.subr.mxu0 0.0
    %2003 = vmatpush1.xpose.msra.mxu0 0.0
    %2004 = vmatprep.subr.mxu0 0.0
    %2005 = vmatpush1.xpose.msra.mxu0 0.0
    %2006 = vmatprep.subr.mxu0 0.0
    %2007 = vmatpush1.xpose.msra.mxu0 0.0
    %2008 = vmatprep.subr.mxu0 0.0
    %2009 = vmatpush1.xpose.msra.mxu0 0.0
    %2010 = vmatprep.subr.mxu0 0.0
    %2011 = vmatpush1.xpose.msra.mxu0 0.0
    %2012 = vmatprep.subr.mxu0 0.0
    %2013 = vmatpush1.xpose.msra.mxu0 0.0
    %2014 = vmatprep.subr.mxu0 0.0
    %2015 = vmatpush1.xpose.msra.mxu0 0.0
    %2016 = vmatprep.subr.mxu0 0.0
    %2017 = vmatpush1.xpose.msra.mxu0 0.0
    %2018 = vmatprep.subr.mxu0 0.0
    %2019 = vmatpush1.xpose.msra.mxu0 0.0
    %2020 = vmatprep.subr.mxu0 0.0
    %2021 = vmatpush1.xpose.msra.mxu0 0.0
    %2022 = vmatprep.subr.mxu0 0.0
    %2023 = vmatpush1.xpose.msra.mxu0 0.0
    %2024 = vmatprep.subr.mxu0 0.0
    %2025 = vmatpush1.xpose.msra.mxu0 0.0
    %2026 = vmatprep.subr.mxu0 0.0
    %2027 = vmatpush1.xpose.msra.mxu0 0.0
    %2028 = vmatprep.subr.mxu0 0.0
    %2029 = vmatpush1.xpose.msra.mxu0 0.0
    %2030 = vmatprep.mubr.f32.mxu0 0.0
    %2031 = vmatmul.mubr.f32.gmra.mrb[0].mxu0 %v1955
    %v2032 = vpop.f32.mrb[0].mxu0
    %v2033 = vadd.f32 0.0, %v2032
    %v2034 = vpop.f32.mrb[0].mxu0
    %2035 = vdwg.mxu0
    %v2036 = vsel %vm992, %v2033, -inf
    %2037 = vmax.xlane.f32.xlu0 %v2036
    %v2038 = vpop.xlane.xlu0 %2037
    %v2039 = vsub.f32 %v2033, %v2038
    %v2040 = vmul.f32 %v2039, 1.442695
    %v2041 = vpow.pop %v2040
    %v2043 = vsel %vm999, %v2041, 0
    %2045 = vmatprep.subr.mxu0 0.0
    %2046 = vmatpush1.msra.mxu0 %v41
    %2047 = vmatprep.subr.mxu0 0.0
    %2048 = vmatpush1.msra.mxu0 %v42
    %2049 = vmatprep.subr.mxu0 0.0
    %2050 = vmatpush1.msra.mxu0 %v1004
    %2051 = vmatprep.subr.mxu0 0.0
    %2052 = vmatpush1.msra.mxu0 0.0
    %2053 = vmatprep.subr.mxu0 0.0
    %2054 = vmatpush1.msra.mxu0 0.0
    %2055 = vmatprep.subr.mxu0 0.0
    %2056 = vmatpush1.msra.mxu0 0.0
    %2057 = vmatprep.subr.mxu0 0.0
    %2058 = vmatpush1.msra.mxu0 0.0
    %2059 = vmatprep.subr.mxu0 0.0
    %2060 = vmatpush1.msra.mxu0 0.0
    %2061 = vmatprep.subr.mxu0 0.0
    %2062 = vmatpush1.msra.mxu0 0.0
    %2063 = vmatprep.subr.mxu0 0.0
    %2064 = vmatpush1.msra.mxu0 0.0
    %2065 = vmatprep.subr.mxu0 0.0
    %2066 = vmatpush1.msra.mxu0 0.0
    %2067 = vmatprep.subr.mxu0 0.0
    %2068 = vmatpush1.msra.mxu0 0.0
    %2069 = vmatprep.subr.mxu0 0.0
    %2070 = vmatpush1.msra.mxu0 0.0
    %2071 = vmatprep.subr.mxu0 0.0
    %2072 = vmatpush1.msra.mxu0 0.0
    %2073 = vmatprep.subr.mxu0 0.0
    %2074 = vmatpush1.msra.mxu0 0.0
    %2075 = vmatprep.subr.mxu0 0.0
    %2076 = vmatpush1.msra.mxu0 0.0
    %2077 = vmatprep.subr.mxu0 0.0
    %2078 = vmatpush1.msra.mxu0 0.0
    %2079 = vmatprep.subr.mxu0 0.0
    %2080 = vmatpush1.msra.mxu0 0.0
    %2081 = vmatprep.subr.mxu0 0.0
    %2082 = vmatpush1.msra.mxu0 0.0
    %2083 = vmatprep.subr.mxu0 0.0
    %2084 = vmatpush1.msra.mxu0 0.0
    %2085 = vmatprep.subr.mxu0 0.0
    %2086 = vmatpush1.msra.mxu0 0.0
    %2087 = vmatprep.subr.mxu0 0.0
    %2088 = vmatpush1.msra.mxu0 0.0
    %2089 = vmatprep.subr.mxu0 0.0
    %2090 = vmatpush1.msra.mxu0 0.0
    %2091 = vmatprep.subr.mxu0 0.0
    %2092 = vmatpush1.msra.mxu0 0.0
    %2093 = vmatprep.subr.mxu0 0.0
    %2094 = vmatpush1.msra.mxu0 0.0
    %2095 = vmatprep.subr.mxu0 0.0
    %2096 = vmatpush1.msra.mxu0 0.0
    %2097 = vmatprep.subr.mxu0 0.0
    %2098 = vmatpush1.msra.mxu0 0.0
    %2099 = vmatprep.subr.mxu0 0.0
    %2100 = vmatpush1.msra.mxu0 0.0
    %2101 = vmatprep.subr.mxu0 0.0
    %2102 = vmatpush1.msra.mxu0 0.0
    %2103 = vmatprep.subr.mxu0 0.0
    %2104 = vmatpush1.msra.mxu0 0.0
    %2105 = vmatprep.subr.mxu0 0.0
    %2106 = vmatpush1.msra.mxu0 0.0
    %2107 = vmatprep.subr.mxu0 0.0
    %2108 = vmatpush1.msra.mxu0 0.0
    %2109 = vmatprep.mubr.f32.mxu0 0.0
    %2110 = vmatmul.mubr.f32.gmra.mrb[0].mxu0 %v2043
    %v2111 = vpop.f32.mrb[0].mxu0
    %v2112 = vadd.f32 0.0, %v2111
    %v2113 = vpop.f32.mrb[0].mxu0
    %2114 = vdwg.mxu0
    %v2115 = vmax.f32 %v2112, 1e-20
    %v2116 = vrcp.pop %v2115
    %v2117 = vmul.f32 %v2041, %v2116
    %v2119 = vsel %vm999, %v2117, 0
    %v2122 = vsel %vm1003, %v1953, 0
    %2124 = vmatprep.subr.mxu0 0.0
    %2125 = vmatpush1.msra.mxu0 %v1951
    %2126 = vmatprep.subr.mxu0 0.0
    %2127 = vmatpush1.msra.mxu0 %v1952
    %2128 = vmatprep.subr.mxu0 0.0
    %2129 = vmatpush1.msra.mxu0 %v2122
    %2130 = vmatprep.subr.mxu0 0.0
    %2131 = vmatpush1.msra.mxu0 0.0
    %2132 = vmatprep.subr.mxu0 0.0
    %2133 = vmatpush1.msra.mxu0 0.0
    %2134 = vmatprep.subr.mxu0 0.0
    %2135 = vmatpush1.msra.mxu0 0.0
    %2136 = vmatprep.subr.mxu0 0.0
    %2137 = vmatpush1.msra.mxu0 0.0
    %2138 = vmatprep.subr.mxu0 0.0
    %2139 = vmatpush1.msra.mxu0 0.0
    %2140 = vmatprep.subr.mxu0 0.0
    %2141 = vmatpush1.msra.mxu0 0.0
    %2142 = vmatprep.subr.mxu0 0.0
    %2143 = vmatpush1.msra.mxu0 0.0
    %2144 = vmatprep.subr.mxu0 0.0
    %2145 = vmatpush1.msra.mxu0 0.0
    %2146 = vmatprep.subr.mxu0 0.0
    %2147 = vmatpush1.msra.mxu0 0.0
    %2148 = vmatprep.subr.mxu0 0.0
    %2149 = vmatpush1.msra.mxu0 0.0
    %2150 = vmatprep.subr.mxu0 0.0
    %2151 = vmatpush1.msra.mxu0 0.0
    %2152 = vmatprep.subr.mxu0 0.0
    %2153 = vmatpush1.msra.mxu0 0.0
    %2154 = vmatprep.subr.mxu0 0.0
    %2155 = vmatpush1.msra.mxu0 0.0
    %2156 = vmatprep.subr.mxu0 0.0
    %2157 = vmatpush1.msra.mxu0 0.0
    %2158 = vmatprep.subr.mxu0 0.0
    %2159 = vmatpush1.msra.mxu0 0.0
    %2160 = vmatprep.subr.mxu0 0.0
    %2161 = vmatpush1.msra.mxu0 0.0
    %2162 = vmatprep.subr.mxu0 0.0
    %2163 = vmatpush1.msra.mxu0 0.0
    %2164 = vmatprep.subr.mxu0 0.0
    %2165 = vmatpush1.msra.mxu0 0.0
    %2166 = vmatprep.subr.mxu0 0.0
    %2167 = vmatpush1.msra.mxu0 0.0
    %2168 = vmatprep.subr.mxu0 0.0
    %2169 = vmatpush1.msra.mxu0 0.0
    %2170 = vmatprep.subr.mxu0 0.0
    %2171 = vmatpush1.msra.mxu0 0.0
    %2172 = vmatprep.subr.mxu0 0.0
    %2173 = vmatpush1.msra.mxu0 0.0
    %2174 = vmatprep.subr.mxu0 0.0
    %2175 = vmatpush1.msra.mxu0 0.0
    %2176 = vmatprep.subr.mxu0 0.0
    %2177 = vmatpush1.msra.mxu0 0.0
    %2178 = vmatprep.subr.mxu0 0.0
    %2179 = vmatpush1.msra.mxu0 0.0
    %2180 = vmatprep.subr.mxu0 0.0
    %2181 = vmatpush1.msra.mxu0 0.0
    %2182 = vmatprep.subr.mxu0 0.0
    %2183 = vmatpush1.msra.mxu0 0.0
    %2184 = vmatprep.subr.mxu0 0.0
    %2185 = vmatpush1.msra.mxu0 0.0
    %2186 = vmatprep.subr.mxu0 0.0
    %2187 = vmatpush1.msra.mxu0 0.0
    %2188 = vmatprep.mubr.f32.mxu0 0.0
    %2189 = vmatmul.mubr.f32.gmra.mrb[0].mxu0 %v2119
    %v2190 = vpop.f32.mrb[0].mxu0
    %v2191 = vadd.f32 0.0, %v2190
    %v2192 = vpop.f32.mrb[0].mxu0
    %2193 = vdwg.mxu0
    %v2194 = vpack.c.bf16 %v2191, %v2191
    %v2196 = vsel %vm329, %v2194, 0
    %2198 = vmatprep.subr.bf16.mxu0 0
    %2199 = vmatpush1.bf16.msra.mxu0 %v1157
    %2200 = vmatprep.subr.bf16.mxu0 0
    %2201 = vmatpush1.bf16.msra.mxu0 %v1159
    %2202 = vmatprep.subr.bf16.mxu0 0
    %2203 = vmatpush1.bf16.msra.mxu0 0
    %2204 = vmatprep.subr.bf16.mxu0 0
    %2205 = vmatpush1.bf16.msra.mxu0 0
    %2206 = vmatprep.subr.bf16.mxu0 0
    %2207 = vmatpush1.bf16.msra.mxu0 0
    %2208 = vmatprep.subr.bf16.mxu0 0
    %2209 = vmatpush1.bf16.msra.mxu0 0
    %2210 = vmatprep.subr.bf16.mxu0 0
    %2211 = vmatpush1.bf16.msra.mxu0 0
    %2212 = vmatprep.subr.bf16.mxu0 0
    %2213 = vmatpush1.bf16.msra.mxu0 0
    %2214 = vmatprep.subr.bf16.mxu0 0
    %2215 = vmatpush1.bf16.msra.mxu0 0
    %2216 = vmatprep.subr.bf16.mxu0 0
    %2217 = vmatpush1.bf16.msra.mxu0 0
    %2218 = vmatprep.subr.bf16.mxu0 0
    %2219 = vmatpush1.bf16.msra.mxu0 0
    %2220 = vmatprep.subr.bf16.mxu0 0
    %2221 = vmatpush1.bf16.msra.mxu0 0
    %2222 = vmatprep.subr.bf16.mxu0 0
    %2223 = vmatpush1.bf16.msra.mxu0 0
    %2224 = vmatprep.subr.bf16.mxu0 0
    %2225 = vmatpush1.bf16.msra.mxu0 0
    %2226 = vmatprep.subr.bf16.mxu0 0
    %2227 = vmatpush1.bf16.msra.mxu0 0
    %2228 = vmatprep.subr.bf16.mxu0 0
    %2229 = vmatpush1.bf16.msra.mxu0 0
    %2230 = vmatprep.mubr.bf16.mxu0 0
    %2231 = vmatmul.mubr.bf16.gmra.mrb[0].mxu0 %v2196
    %v2232 = vpop.f32.mrb[0].mxu0
    %v2233 = vadd.f32 0.0, %v2232
    %v2234 = vpop.f32.mrb[0].mxu0
    %v2235 = vpop.f32.mrb[0].mxu0
    %v2236 = vpop.f32.mrb[0].mxu0
    %2237 = vdwg.mxu0
    %v2238 = vadd.f32 %v259, %v2233
    %v2239 = vadd.f32 %v2238, %v1209
    %v2240 = vsel %vm291, %v2239, 0.0
    %2241 = vadd.xlane.f32.xlu0 %v2240
    %v2242 = vpop.xlane.xlu0 %2241
    %v2243 = vmul.f32 %v2242, %v295
    %v2244 = vsub.f32 %v2239, %v2243
    %v2245 = vmul.f32 %v2244, %v2244
    %v2246 = vsel %vm291, %v2245, 0.0
    %2247 = vadd.xlane.f32.xlu0 %v2246
    %v2248 = vpop.xlane.xlu0 %2247
    %v2249 = vmul.f32 %v2248, %v295
    %v2250 = vadd.f32 %v2249, 1e-05
    %v2251 = vrsqrt.pop %v2250
    %v2252 = vmul.f32 %v2244, %v2251
    %v2253 = vmul.f32 %v2252, %v1227
    %v2254 = vadd.f32 %v2253, %v1232
    %v2255 = vpack.c.bf16 %v2254, %v2254
    %v2257 = vsel %vm329, %v2255, 0
    %2259 = vmatprep.subr.bf16.mxu0 0
    %2260 = vmatpush1.bf16.msra.mxu0 %v1249
    %2261 = vmatprep.subr.bf16.mxu0 0
    %2262 = vmatpush1.bf16.msra.mxu0 %v1250
    %2263 = vmatprep.subr.bf16.mxu0 0
    %2264 = vmatpush1.bf16.msra.mxu0 0
    %2265 = vmatprep.subr.bf16.mxu0 0
    %2266 = vmatpush1.bf16.msra.mxu0 0
    %2267 = vmatprep.subr.bf16.mxu0 0
    %2268 = vmatpush1.bf16.msra.mxu0 0
    %2269 = vmatprep.subr.bf16.mxu0 0
    %2270 = vmatpush1.bf16.msra.mxu0 0
    %2271 = vmatprep.subr.bf16.mxu0 0
    %2272 = vmatpush1.bf16.msra.mxu0 0
    %2273 = vmatprep.subr.bf16.mxu0 0
    %2274 = vmatpush1.bf16.msra.mxu0 0
    %2275 = vmatprep.subr.bf16.mxu0 0
    %2276 = vmatpush1.bf16.msra.mxu0 0
    %2277 = vmatprep.subr.bf16.mxu0 0
    %2278 = vmatpush1.bf16.msra.mxu0 0
    %2279 = vmatprep.subr.bf16.mxu0 0
    %2280 = vmatpush1.bf16.msra.mxu0 0
    %2281 = vmatprep.subr.bf16.mxu0 0
    %2282 = vmatpush1.bf16.msra.mxu0 0
    %2283 = vmatprep.subr.bf16.mxu0 0
    %2284 = vmatpush1.bf16.msra.mxu0 0
    %2285 = vmatprep.subr.bf16.mxu0 0
    %2286 = vmatpush1.bf16.msra.mxu0 0
    %2287 = vmatprep.subr.bf16.mxu0 0
    %2288 = vmatpush1.bf16.msra.mxu0 0
    %2289 = vmatprep.subr.bf16.mxu0 0
    %2290 = vmatpush1.bf16.msra.mxu0 0
    %2291 = vmatprep.mubr.bf16.mxu0 0
    %2292 = vmatmul.mubr.bf16.gmra.mrb[0].mxu0 %v2257
    %v2293 = vpop.f32.mrb[0].mxu0
    %v2294 = vadd.f32 %v1239, %v2293
    %v2295 = vpop.f32.mrb[0].mxu0
    %v2296 = vpop.f32.mrb[0].mxu0
    %v2297 = vpop.f32.mrb[0].mxu0
    %2298 = vdwg.mxu0
    %v2299 = vmul.f32 %v2294, %v2294
    %v2300 = vmul.f32 %v2294, %v2299
    %v2301 = vmul.f32 %v2300, 0.044715
    %v2302 = vadd.f32 %v2294, %v2301
    %v2303 = vmul.f32 %v2302, 0.7978846
    %v2304 = vtanh.pop %v2303
    %v2305 = vadd.f32 %v2304, 1.0
    %v2306 = vmul.f32 %v2305, 0.5
    %v2307 = vmul.f32 %v2294, %v2306
    %v2308 = vpack.c.bf16 %v2307, %v2307
    %2309 = vmatprep.subr.bf16.mxu0 0
    %2310 = vmatpush1.bf16.msra.mxu0 %v1342
    %2311 = vmatprep.subr.bf16.mxu0 0
    %2312 = vmatpush1.bf16.msra.mxu0 %v1343
    %2313 = vmatprep.subr.bf16.mxu0 0
    %2314 = vmatpush1.bf16.msra.mxu0 %v1344
    %2315 = vmatprep.subr.bf16.mxu0 0
    %2316 = vmatpush1.bf16.msra.mxu0 %v1345
    %2317 = vmatprep.subr.bf16.mxu0 0
    %2318 = vmatpush1.bf16.msra.mxu0 %v1346
    %2319 = vmatprep.subr.bf16.mxu0 0
    %2320 = vmatpush1.bf16.msra.mxu0 %v1347
    %2321 = vmatprep.subr.bf16.mxu0 0
    %2322 = vmatpush1.bf16.msra.mxu0 %v1348
    %2323 = vmatprep.subr.bf16.mxu0 0
    %2324 = vmatpush1.bf16.msra.mxu0 %v1349
    %2325 = vmatprep.subr.bf16.mxu0 0
    %2326 = vmatpush1.bf16.msra.mxu0 0
    %2327 = vmatprep.subr.bf16.mxu0 0
    %2328 = vmatpush1.bf16.msra.mxu0 0
    %2329 = vmatprep.subr.bf16.mxu0 0
    %2330 = vmatpush1.bf16.msra.mxu0 0
    %2331 = vmatprep.subr.bf16.mxu0 0
    %2332 = vmatpush1.bf16.msra.mxu0 0
    %2333 = vmatprep.subr.bf16.mxu0 0
    %2334 = vmatpush1.bf16.msra.mxu0 0
    %2335 = vmatprep.subr.bf16.mxu0 0
    %2336 = vmatpush1.bf16.msra.mxu0 0
    %2337 = vmatprep.subr.bf16.mxu0 0
    %2338 = vmatpush1.bf16.msra.mxu0 0
    %2339 = vmatprep.subr.bf16.mxu0 0
    %2340 = vmatpush1.bf16.msra.mxu0 0
    %2341 = vmatprep.mubr.bf16.mxu0 0
    %2342 = vmatmul.mubr.bf16.gmra.mrb[0].mxu0 %v2308
    %v2343 = vpop.f32.mrb[0].mxu0
    %v2344 = vadd.f32 %v1309, %v2343
    %v2345 = vpop.f32.mrb[0].mxu0
    %v2346 = vpop.f32.mrb[0].mxu0
    %v2347 = vpop.f32.mrb[0].mxu0
    %2348 = vdwg.mxu0
    %v2349 = vadd.f32 %v2239, %v2344
    %s2350 = scalar_lea.vmem %s5, 16
    %v2351 = vld [vmem:[%s2350] sm:$0xff]
    %v2352 = vld [vmem:[%s2350 + $0x8] sm:$0x3]
    %s2353 = scalar_lea.vmem %s3, 32
    %v2354 = vld [vmem:[%s2353] sm:$0xf]
    %v2355 = vld [vmem:[%s2353 + $0x8] sm:$0xf]
    %v2356 = vld [vmem:[%s2353 + $0x10] sm:$0xf]
    %v2357 = vld [vmem:[%s2353 + $0x18] sm:$0xf]
    %v2358 = vld [vmem:[%s2353 + $0x4] sm:$0xf]
    %v2359 = vld [vmem:[%s2353 + $0xc] sm:$0xf]
    %v2360 = vld [vmem:[%s2353 + $0x14] sm:$0xf]
    %v2361 = vld [vmem:[%s2353 + $0x1c] sm:$0xf]
    %s2362 = scalar_lea.vmem %s4, 64
    %v2363 = vld [vmem:[%s2362] sm:$0xf]
    %v2364 = vld [vmem:[%s2362 + $0x4] sm:$0xf]
    %v2365 = vld [vmem:[%s2362 + $0x8] sm:$0xf]
    %v2366 = vld [vmem:[%s2362 + $0xc] sm:$0xf]
    %v2367 = vld [vmem:[%s2362 + $0x10] sm:$0xf]
    %v2368 = vld [vmem:[%s2362 + $0x14] sm:$0xf]
    %v2369 = vld [vmem:[%s2362 + $0x18] sm:$0xf]
    %v2370 = vld [vmem:[%s2362 + $0x1c] sm:$0xf]
    %v2371 = vld [vmem:[%s2362 + $0x20] sm:$0xf]
    %v2372 = vld [vmem:[%s2362 + $0x24] sm:$0xf]
    %v2373 = vld [vmem:[%s2362 + $0x28] sm:$0xf]
    %v2374 = vld [vmem:[%s2362 + $0x2c] sm:$0xf]
    %v2375 = vld [vmem:[%s2362 + $0x30] sm:$0xf]
    %v2376 = vld [vmem:[%s2362 + $0x34] sm:$0xf]
    %v2377 = vld [vmem:[%s2362 + $0x38] sm:$0xf]
    %v2378 = vld [vmem:[%s2362 + $0x3c] sm:$0xf]
    %s2379 = scalar_lea.vmem %s6, 1
    %v2380 = vld [vmem:[%s2379] sm:$0x1]
    %v2381 = vsel %vm291, %v1398, 0.0
    %2382 = vadd.xlane.f32.xlu0 %v2381
    %v2383 = vpop.xlane.xlu0 %2382
    %v2384 = vmul.f32 %v2383, %v295
    %v2385 = vsub.f32 %v1398, %v2384
    %v2386 = vmul.f32 %v2385, %v2385
    %v2387 = vsel %vm291, %v2386, 0.0
    %2388 = vadd.xlane.f32.xlu0 %v2387
    %v2389 = vpop.xlane.xlu0 %2388
    %v2390 = vmul.f32 %v2389, %v295
    %v2391 = vadd.f32 %v2390, 1e-05
    %v2392 = vrsqrt.pop %v2391
    %v2393 = vmul.f32 %v2385, %v2392
    %v2394 = vlaneseq
    %v2395 = vshrl.u32 %v2394, 7
    %v2396 = vsub.s32 0, %v2395
    %v2397 = vrot.slane %v2351, %v2396
    %v2398 = vmul.f32 %v2393, %v2397
    %v2399 = vlaneseq
    %v2400 = vshrl.u32 %v2399, 7
    %v2401 = vsub.s32 1, %v2400
    %v2402 = vrot.slane %v2351, %v2401
    %v2403 = vadd.f32 %v2398, %v2402
    %v2404 = vpack.c.bf16 %v2403, %v2403
    %v2409 = vunpack.c.l.b16 %v2354
    %v2410 = vunpack.c.l.b16 %v2355
    %v2411 = vunpack.c.l.b16 %v2356
    %v2412 = vunpack.c.l.b16 %v2357
    %v2413 = vpack.c.b16 %v2410, %v2409
    %v2414 = vpack.c.b16 %v2412, %v2411
    %v2418 = vsel %vm329, %v2404, 0
    %2420 = vmatprep.subr.bf16.mxu0 0
    %2421 = vmatpush1.bf16.msra.mxu0 %v2413
    %2422 = vmatprep.subr.bf16.mxu0 0
    %2423 = vmatpush1.bf16.msra.mxu0 %v2414
    %2424 = vmatprep.subr.bf16.mxu0 0
    %2425 = vmatpush1.bf16.msra.mxu0 0
    %2426 = vmatprep.subr.bf16.mxu0 0
    %2427 = vmatpush1.bf16.msra.mxu0 0
    %2428 = vmatprep.subr.bf16.mxu0 0
    %2429 = vmatpush1.bf16.msra.mxu0 0
    %2430 = vmatprep.subr.bf16.mxu0 0
    %2431 = vmatpush1.bf16.msra.mxu0 0
    %2432 = vmatprep.subr.bf16.mxu0 0
    %2433 = vmatpush1.bf16.msra.mxu0 0
    %2434 = vmatprep.subr.bf16.mxu0 0
    %2435 = vmatpush1.bf16.msra.mxu0 0
    %2436 = vmatprep.subr.bf16.mxu0 0
    %2437 = vmatpush1.bf16.msra.mxu0 0
    %2438 = vmatprep.subr.bf16.mxu0 0
    %2439 = vmatpush1.bf16.msra.mxu0 0
    %2440 = vmatprep.subr.bf16.mxu0 0
    %2441 = vmatpush1.bf16.msra.mxu0 0
    %2442 = vmatprep.subr.bf16.mxu0 0
    %2443 = vmatpush1.bf16.msra.mxu0 0
    %2444 = vmatprep.subr.bf16.mxu0 0
    %2445 = vmatpush1.bf16.msra.mxu0 0
    %2446 = vmatprep.subr.bf16.mxu0 0
    %2447 = vmatpush1.bf16.msra.mxu0 0
    %2448 = vmatprep.subr.bf16.mxu0 0
    %2449 = vmatpush1.bf16.msra.mxu0 0
    %2450 = vmatprep.subr.bf16.mxu0 0
    %2451 = vmatpush1.bf16.msra.mxu0 0
    %2452 = vmatprep.mubr.bf16.mxu0 0
    %2453 = vmatmul.mubr.bf16.gmra.mrb[0].mxu0 %v2418
    %v2454 = vpop.f32.mrb[0].mxu0
    %v2455 = vadd.f32 0.0, %v2454
    %v2456 = vpop.f32.mrb[0].mxu0
    %v2457 = vpop.f32.mrb[0].mxu0
    %v2458 = vpop.f32.mrb[0].mxu0
    %2459 = vdwg.mxu0
    %v2461 = vsel %vm329, %v2455, 0
    %2463 = vmatprep.subr.mxu0 0.0
    %2464 = vmatpush1.msra.mxu0 %v34
    %2465 = vmatprep.subr.mxu0 0.0
    %2466 = vmatpush1.msra.mxu0 %v35
    %2467 = vmatprep.subr.mxu0 0.0
    %2468 = vmatpush1.msra.mxu0 %v36
    %2469 = vmatprep.subr.mxu0 0.0
    %2470 = vmatpush1.msra.mxu0 %v37
    %2471 = vmatprep.subr.mxu0 0.0
    %2472 = vmatpush1.msra.mxu0 0.0
    %2473 = vmatprep.subr.mxu0 0.0
    %2474 = vmatpush1.msra.mxu0 0.0
    %2475 = vmatprep.subr.mxu0 0.0
    %2476 = vmatpush1.msra.mxu0 0.0
    %2477 = vmatprep.subr.mxu0 0.0
    %2478 = vmatpush1.msra.mxu0 0.0
    %2479 = vmatprep.subr.mxu0 0.0
    %2480 = vmatpush1.msra.mxu0 0.0
    %2481 = vmatprep.subr.mxu0 0.0
    %2482 = vmatpush1.msra.mxu0 0.0
    %2483 = vmatprep.subr.mxu0 0.0
    %2484 = vmatpush1.msra.mxu0 0.0
    %2485 = vmatprep.subr.mxu0 0.0
    %2486 = vmatpush1.msra.mxu0 0.0
    %2487 = vmatprep.subr.mxu0 0.0
    %2488 = vmatpush1.msra.mxu0 0.0
    %2489 = vmatprep.subr.mxu0 0.0
    %2490 = vmatpush1.msra.mxu0 0.0
    %2491 = vmatprep.subr.mxu0 0.0
    %2492 = vmatpush1.msra.mxu0 0.0
    %2493 = vmatprep.subr.mxu0 0.0
    %2494 = vmatpush1.msra.mxu0 0.0
    %2495 = vmatprep.subr.mxu0 0.0
    %2496 = vmatpush1.msra.mxu0 0.0
    %2497 = vmatprep.subr.mxu0 0.0
    %2498 = vmatpush1.msra.mxu0 0.0
    %2499 = vmatprep.subr.mxu0 0.0
    %2500 = vmatpush1.msra.mxu0 0.0
    %2501 = vmatprep.subr.mxu0 0.0
    %2502 = vmatpush1.msra.mxu0 0.0
    %2503 = vmatprep.subr.mxu0 0.0
    %2504 = vmatpush1.msra.mxu0 0.0
    %2505 = vmatprep.subr.mxu0 0.0
    %2506 = vmatpush1.msra.mxu0 0.0
    %2507 = vmatprep.subr.mxu0 0.0
    %2508 = vmatpush1.msra.mxu0 0.0
    %2509 = vmatprep.subr.mxu0 0.0
    %2510 = vmatpush1.msra.mxu0 0.0
    %2511 = vmatprep.subr.mxu0 0.0
    %2512 = vmatpush1.msra.mxu0 0.0
    %2513 = vmatprep.subr.mxu0 0.0
    %2514 = vmatpush1.msra.mxu0 0.0
    %2515 = vmatprep.subr.mxu0 0.0
    %2516 = vmatpush1.msra.mxu0 0.0
    %2517 = vmatprep.subr.mxu0 0.0
    %2518 = vmatpush1.msra.mxu0 0.0
    %2519 = vmatprep.subr.mxu0 0.0
    %2520 = vmatpush1.msra.mxu0 0.0
    %2521 = vmatprep.subr.mxu0 0.0
    %2522 = vmatpush1.msra.mxu0 0.0
    %2523 = vmatprep.subr.mxu0 0.0
    %2524 = vmatpush1.msra.mxu0 0.0
    %2525 = vmatprep.subr.mxu0 0.0
    %2526 = vmatpush1.msra.mxu0 0.0
    %2527 = vmatprep.mubr.f32.mxu0 0.0
    %2528 = vmatmul.mubr.f32.gmra.mrb[0].mxu0 %v2461
    %v2529 = vpop.f32.mrb[0].mxu0
    %v2530 = vadd.f32 0.0, %v2529
    %v2531 = vpop.f32.mrb[0].mxu0
    %2532 = vdwg.mxu0
    %v2533 = vmul.f32 %v2455, %v2455
    %v2535 = vsel %vm329, %v2533, 0
    %2537 = vmatprep.subr.mxu0 0.0
    %2538 = vmatpush1.msra.mxu0 %v34
    %2539 = vmatprep.subr.mxu0 0.0
    %2540 = vmatpush1.msra.mxu0 %v35
    %2541 = vmatprep.subr.mxu0 0.0
    %2542 = vmatpush1.msra.mxu0 %v36
    %2543 = vmatprep.subr.mxu0 0.0
    %2544 = vmatpush1.msra.mxu0 %v37
    %2545 = vmatprep.subr.mxu0 0.0
    %2546 = vmatpush1.msra.mxu0 0.0
    %2547 = vmatprep.subr.mxu0 0.0
    %2548 = vmatpush1.msra.mxu0 0.0
    %2549 = vmatprep.subr.mxu0 0.0
    %2550 = vmatpush1.msra.mxu0 0.0
    %2551 = vmatprep.subr.mxu0 0.0
    %2552 = vmatpush1.msra.mxu0 0.0
    %2553 = vmatprep.subr.mxu0 0.0
    %2554 = vmatpush1.msra.mxu0 0.0
    %2555 = vmatprep.subr.mxu0 0.0
    %2556 = vmatpush1.msra.mxu0 0.0
    %2557 = vmatprep.subr.mxu0 0.0
    %2558 = vmatpush1.msra.mxu0 0.0
    %2559 = vmatprep.subr.mxu0 0.0
    %2560 = vmatpush1.msra.mxu0 0.0
    %2561 = vmatprep.subr.mxu0 0.0
    %2562 = vmatpush1.msra.mxu0 0.0
    %2563 = vmatprep.subr.mxu0 0.0
    %2564 = vmatpush1.msra.mxu0 0.0
    %2565 = vmatprep.subr.mxu0 0.0
    %2566 = vmatpush1.msra.mxu0 0.0
    %2567 = vmatprep.subr.mxu0 0.0
    %2568 = vmatpush1.msra.mxu0 0.0
    %2569 = vmatprep.subr.mxu0 0.0
    %2570 = vmatpush1.msra.mxu0 0.0
    %2571 = vmatprep.subr.mxu0 0.0
    %2572 = vmatpush1.msra.mxu0 0.0
    %2573 = vmatprep.subr.mxu0 0.0
    %2574 = vmatpush1.msra.mxu0 0.0
    %2575 = vmatprep.subr.mxu0 0.0
    %2576 = vmatpush1.msra.mxu0 0.0
    %2577 = vmatprep.subr.mxu0 0.0
    %2578 = vmatpush1.msra.mxu0 0.0
    %2579 = vmatprep.subr.mxu0 0.0
    %2580 = vmatpush1.msra.mxu0 0.0
    %2581 = vmatprep.subr.mxu0 0.0
    %2582 = vmatpush1.msra.mxu0 0.0
    %2583 = vmatprep.subr.mxu0 0.0
    %2584 = vmatpush1.msra.mxu0 0.0
    %2585 = vmatprep.subr.mxu0 0.0
    %2586 = vmatpush1.msra.mxu0 0.0
    %2587 = vmatprep.subr.mxu0 0.0
    %2588 = vmatpush1.msra.mxu0 0.0
    %2589 = vmatprep.subr.mxu0 0.0
    %2590 = vmatpush1.msra.mxu0 0.0
    %2591 = vmatprep.subr.mxu0 0.0
    %2592 = vmatpush1.msra.mxu0 0.0
    %2593 = vmatprep.subr.mxu0 0.0
    %2594 = vmatpush1.msra.mxu0 0.0
    %2595 = vmatprep.subr.mxu0 0.0
    %2596 = vmatpush1.msra.mxu0 0.0
    %2597 = vmatprep.subr.mxu0 0.0
    %2598 = vmatpush1.msra.mxu0 0.0
    %2599 = vmatprep.subr.mxu0 0.0
    %2600 = vmatpush1.msra.mxu0 0.0
    %2601 = vmatprep.mubr.f32.mxu0 0.0
    %2602 = vmatmul.mubr.f32.gmra.mrb[0].mxu0 %v2535
    %v2603 = vpop.f32.mrb[0].mxu0
    %v2604 = vadd.f32 0.0, %v2603
    %v2605 = vpop.f32.mrb[0].mxu0
    %2606 = vdwg.mxu0
    %v2607 = vmul.f32 %v2530, %v2530
    %v2608 = vsub.f32 %v2604, %v2607
    %v2609 = vmax.f32 %v2608, 0.0
    %v2610 = vsub.f32 %v2455, %v2530
    %v2611 = vadd.f32 %v2609, 1e-05
    %v2612 = vrsqrt.pop %v2611
    %v2613 = vmul.f32 %v2610, %v2612
    %v2614 = vlaneseq
    %v2615 = vshrl.u32 %v2614, 7
    %v2616 = vsub.s32 2, %v2615
    %v2617 = vrot.slane %v2351, %v2616
    %v2618 = vmul.f32 %v2613, %v2617
    %v2619 = vlaneseq
    %v2620 = vshrl.u32 %v2619, 7
    %v2621 = vsub.s32 3, %v2620
    %v2622 = vrot.slane %v2351, %v2621
    %v2623 = vadd.f32 %v2618, %v2622
    %2624 = vrot.lane.b32.xlu0 %v2455, 96
    %v2625 = vpop.permute.xlu0 %2624
    %v2626 = vsel %vm329, %v2625, 0
    %2628 = vmatprep.subr.mxu0 0.0
    %2629 = vmatpush1.msra.mxu0 %v34
    %2630 = vmatprep.subr.mxu0 0.0
    %2631 = vmatpush1.msra.mxu0 %v35
    %2632 = vmatprep.subr.mxu0 0.0
    %2633 = vmatpush1.msra.mxu0 %v36
    %2634 = vmatprep.subr.mxu0 0.0
    %2635 = vmatpush1.msra.mxu0 %v37
    %2636 = vmatprep.subr.mxu0 0.0
    %2637 = vmatpush1.msra.mxu0 0.0
    %2638 = vmatprep.subr.mxu0 0.0
    %2639 = vmatpush1.msra.mxu0 0.0
    %2640 = vmatprep.subr.mxu0 0.0
    %2641 = vmatpush1.msra.mxu0 0.0
    %2642 = vmatprep.subr.mxu0 0.0
    %2643 = vmatpush1.msra.mxu0 0.0
    %2644 = vmatprep.subr.mxu0 0.0
    %2645 = vmatpush1.msra.mxu0 0.0
    %2646 = vmatprep.subr.mxu0 0.0
    %2647 = vmatpush1.msra.mxu0 0.0
    %2648 = vmatprep.subr.mxu0 0.0
    %2649 = vmatpush1.msra.mxu0 0.0
    %2650 = vmatprep.subr.mxu0 0.0
    %2651 = vmatpush1.msra.mxu0 0.0
    %2652 = vmatprep.subr.mxu0 0.0
    %2653 = vmatpush1.msra.mxu0 0.0
    %2654 = vmatprep.subr.mxu0 0.0
    %2655 = vmatpush1.msra.mxu0 0.0
    %2656 = vmatprep.subr.mxu0 0.0
    %2657 = vmatpush1.msra.mxu0 0.0
    %2658 = vmatprep.subr.mxu0 0.0
    %2659 = vmatpush1.msra.mxu0 0.0
    %2660 = vmatprep.subr.mxu0 0.0
    %2661 = vmatpush1.msra.mxu0 0.0
    %2662 = vmatprep.subr.mxu0 0.0
    %2663 = vmatpush1.msra.mxu0 0.0
    %2664 = vmatprep.subr.mxu0 0.0
    %2665 = vmatpush1.msra.mxu0 0.0
    %2666 = vmatprep.subr.mxu0 0.0
    %2667 = vmatpush1.msra.mxu0 0.0
    %2668 = vmatprep.subr.mxu0 0.0
    %2669 = vmatpush1.msra.mxu0 0.0
    %2670 = vmatprep.subr.mxu0 0.0
    %2671 = vmatpush1.msra.mxu0 0.0
    %2672 = vmatprep.subr.mxu0 0.0
    %2673 = vmatpush1.msra.mxu0 0.0
    %2674 = vmatprep.subr.mxu0 0.0
    %2675 = vmatpush1.msra.mxu0 0.0
    %2676 = vmatprep.subr.mxu0 0.0
    %2677 = vmatpush1.msra.mxu0 0.0
    %2678 = vmatprep.subr.mxu0 0.0
    %2679 = vmatpush1.msra.mxu0 0.0
    %2680 = vmatprep.subr.mxu0 0.0
    %2681 = vmatpush1.msra.mxu0 0.0
    %2682 = vmatprep.subr.mxu0 0.0
    %2683 = vmatpush1.msra.mxu0 0.0
    %2684 = vmatprep.subr.mxu0 0.0
    %2685 = vmatpush1.msra.mxu0 0.0
    %2686 = vmatprep.subr.mxu0 0.0
    %2687 = vmatpush1.msra.mxu0 0.0
    %2688 = vmatprep.subr.mxu0 0.0
    %2689 = vmatpush1.msra.mxu0 0.0
    %2690 = vmatprep.subr.mxu0 0.0
    %2691 = vmatpush1.msra.mxu0 0.0
    %2692 = vmatprep.mubr.f32.mxu0 0.0
    %2693 = vmatmul.mubr.f32.gmra.mrb[0].mxu0 %v2626
    %v2694 = vpop.f32.mrb[0].mxu0
    %v2695 = vadd.f32 0.0, %v2694
    %v2696 = vpop.f32.mrb[0].mxu0
    %2697 = vdwg.mxu0
    %2698 = vrot.lane.b32.xlu0 %v2533, 96
    %v2699 = vpop.permute.xlu0 %2698
    %v2700 = vsel %vm329, %v2699, 0
    %2702 = vmatprep.subr.mxu0 0.0
    %2703 = vmatpush1.msra.mxu0 %v34
    %2704 = vmatprep.subr.mxu0 0.0
    %2705 = vmatpush1.msra.mxu0 %v35
    %2706 = vmatprep.subr.mxu0 0.0
    %2707 = vmatpush1.msra.mxu0 %v36
    %2708 = vmatprep.subr.mxu0 0.0
    %2709 = vmatpush1.msra.mxu0 %v37
    %2710 = vmatprep.subr.mxu0 0.0
    %2711 = vmatpush1.msra.mxu0 0.0
    %2712 = vmatprep.subr.mxu0 0.0
    %2713 = vmatpush1.msra.mxu0 0.0
    %2714 = vmatprep.subr.mxu0 0.0
    %2715 = vmatpush1.msra.mxu0 0.0
    %2716 = vmatprep.subr.mxu0 0.0
    %2717 = vmatpush1.msra.mxu0 0.0
    %2718 = vmatprep.subr.mxu0 0.0
    %2719 = vmatpush1.msra.mxu0 0.0
    %2720 = vmatprep.subr.mxu0 0.0
    %2721 = vmatpush1.msra.mxu0 0.0
    %2722 = vmatprep.subr.mxu0 0.0
    %2723 = vmatpush1.msra.mxu0 0.0
    %2724 = vmatprep.subr.mxu0 0.0
    %2725 = vmatpush1.msra.mxu0 0.0
    %2726 = vmatprep.subr.mxu0 0.0
    %2727 = vmatpush1.msra.mxu0 0.0
    %2728 = vmatprep.subr.mxu0 0.0
    %2729 = vmatpush1.msra.mxu0 0.0
    %2730 = vmatprep.subr.mxu0 0.0
    %2731 = vmatpush1.msra.mxu0 0.0
    %2732 = vmatprep.subr.mxu0 0.0
    %2733 = vmatpush1.msra.mxu0 0.0
    %2734 = vmatprep.subr.mxu0 0.0
    %2735 = vmatpush1.msra.mxu0 0.0
    %2736 = vmatprep.subr.mxu0 0.0
    %2737 = vmatpush1.msra.mxu0 0.0
    %2738 = vmatprep.subr.mxu0 0.0
    %2739 = vmatpush1.msra.mxu0 0.0
    %2740 = vmatprep.subr.mxu0 0.0
    %2741 = vmatpush1.msra.mxu0 0.0
    %2742 = vmatprep.subr.mxu0 0.0
    %2743 = vmatpush1.msra.mxu0 0.0
    %2744 = vmatprep.subr.mxu0 0.0
    %2745 = vmatpush1.msra.mxu0 0.0
    %2746 = vmatprep.subr.mxu0 0.0
    %2747 = vmatpush1.msra.mxu0 0.0
    %2748 = vmatprep.subr.mxu0 0.0
    %2749 = vmatpush1.msra.mxu0 0.0
    %2750 = vmatprep.subr.mxu0 0.0
    %2751 = vmatpush1.msra.mxu0 0.0
    %2752 = vmatprep.subr.mxu0 0.0
    %2753 = vmatpush1.msra.mxu0 0.0
    %2754 = vmatprep.subr.mxu0 0.0
    %2755 = vmatpush1.msra.mxu0 0.0
    %2756 = vmatprep.subr.mxu0 0.0
    %2757 = vmatpush1.msra.mxu0 0.0
    %2758 = vmatprep.subr.mxu0 0.0
    %2759 = vmatpush1.msra.mxu0 0.0
    %2760 = vmatprep.subr.mxu0 0.0
    %2761 = vmatpush1.msra.mxu0 0.0
    %2762 = vmatprep.subr.mxu0 0.0
    %2763 = vmatpush1.msra.mxu0 0.0
    %2764 = vmatprep.subr.mxu0 0.0
    %2765 = vmatpush1.msra.mxu0 0.0
    %2766 = vmatprep.mubr.f32.mxu0 0.0
    %2767 = vmatmul.mubr.f32.gmra.mrb[0].mxu0 %v2700
    %v2768 = vpop.f32.mrb[0].mxu0
    %v2769 = vadd.f32 0.0, %v2768
    %v2770 = vpop.f32.mrb[0].mxu0
    %2771 = vdwg.mxu0
    %v2772 = vmul.f32 %v2695, %v2695
    %v2773 = vsub.f32 %v2769, %v2772
    %v2774 = vmax.f32 %v2773, 0.0
    %2776 = vrot.lane.b32.xlu0 %v2695, 32
    %v2777 = vpop.permute.xlu0 %2776
    %v2779 = vsub.f32 %v2455, %v2777
    %v2780 = vadd.f32 %v2774, 1e-05
    %v2781 = vrsqrt.pop %v2780
    %2783 = vrot.lane.b32.xlu0 %v2781, 32
    %v2784 = vpop.permute.xlu0 %2783
    %v2786 = vmul.f32 %v2779, %v2784
    %v2787 = vlaneseq
    %v2788 = vshrl.u32 %v2787, 7
    %v2789 = vsub.s32 4, %v2788
    %v2790 = vrot.slane %v2351, %v2789
    %2792 = vrot.lane.b32.xlu0 %v2790, 32
    %v2793 = vpop.permute.xlu0 %2792
    %v2795 = vmul.f32 %v2786, %v2793
    %v2796 = vlaneseq
    %v2797 = vshrl.u32 %v2796, 7
    %v2798 = vsub.s32 5, %v2797
    %v2799 = vrot.slane %v2351, %v2798
    %2801 = vrot.lane.b32.xlu0 %v2799, 32
    %v2802 = vpop.permute.xlu0 %2801
    %v2804 = vadd.f32 %v2795, %v2802
    %2806 = vrot.lane.b32.xlu0 %v2804, 96
    %v2807 = vpop.permute.xlu0 %2806
    %v2808 = vsel %vm737, %v2807, 0
    %2810 = vmatprep.subr.mxu0 0.0
    %2811 = vmatpush1.msra.mxu0 %v2808
    %2812 = vmatprep.subr.mxu0 0.0
    %2813 = vmatpush1.msra.mxu0 0.0
    %2814 = vmatprep.subr.mxu0 0.0
    %2815 = vmatpush1.msra.mxu0 0.0
    %2816 = vmatprep.subr.mxu0 0.0
    %2817 = vmatpush1.msra.mxu0 0.0
    %2818 = vmatprep.subr.mxu0 0.0
    %2819 = vmatpush1.msra.mxu0 0.0
    %2820 = vmatprep.subr.mxu0 0.0
    %2821 = vmatpush1.msra.mxu0 0.0
    %2822 = vmatprep.subr.mxu0 0.0
    %2823 = vmatpush1.msra.mxu0 0.0
    %2824 = vmatprep.subr.mxu0 0.0
    %2825 = vmatpush1.msra.mxu0 0.0
    %2826 = vmatprep.subr.mxu0 0.0
    %2827 = vmatpush1.msra.mxu0 0.0
    %2828 = vmatprep.subr.mxu0 0.0
    %2829 = vmatpush1.msra.mxu0 0.0
    %2830 = vmatprep.subr.mxu0 0.0
    %2831 = vmatpush1.msra.mxu0 0.0
    %2832 = vmatprep.subr.mxu0 0.0
    %2833 = vmatpush1.msra.mxu0 0.0
    %2834 = vmatprep.subr.mxu0 0.0
    %2835 = vmatpush1.msra.mxu0 0.0
    %2836 = vmatprep.subr.mxu0 0.0
    %2837 = vmatpush1.msra.mxu0 0.0
    %2838 = vmatprep.subr.mxu0 0.0
    %2839 = vmatpush1.msra.mxu0 0.0
    %2840 = vmatprep.subr.mxu0 0.0
    %2841 = vmatpush1.msra.mxu0 0.0
    %2842 = vmatprep.subr.mxu0 0.0
    %2843 = vmatpush1.msra.mxu0 0.0
    %2844 = vmatprep.subr.mxu0 0.0
    %2845 = vmatpush1.msra.mxu0 0.0
    %2846 = vmatprep.subr.mxu0 0.0
    %2847 = vmatpush1.msra.mxu0 0.0
    %2848 = vmatprep.subr.mxu0 0.0
    %2849 = vmatpush1.msra.mxu0 0.0
    %2850 = vmatprep.subr.mxu0 0.0
    %2851 = vmatpush1.msra.mxu0 0.0
    %2852 = vmatprep.subr.mxu0 0.0
    %2853 = vmatpush1.msra.mxu0 0.0
    %2854 = vmatprep.subr.mxu0 0.0
    %2855 = vmatpush1.msra.mxu0 0.0
    %2856 = vmatprep.subr.mxu0 0.0
    %2857 = vmatpush1.msra.mxu0 0.0
    %2858 = vmatprep.subr.mxu0 0.0
    %2859 = vmatpush1.msra.mxu0 0.0
    %2860 = vmatprep.subr.mxu0 0.0
    %2861 = vmatpush1.msra.mxu0 0.0
    %2862 = vmatprep.subr.mxu0 0.0
    %2863 = vmatpush1.msra.mxu0 0.0
    %2864 = vmatprep.subr.mxu0 0.0
    %2865 = vmatpush1.msra.mxu0 0.0
    %2866 = vmatprep.subr.mxu0 0.0
    %2867 = vmatpush1.msra.mxu0 0.0
    %2868 = vmatprep.subr.mxu0 0.0
    %2869 = vmatpush1.msra.mxu0 0.0
    %2870 = vmatprep.subr.mxu0 0.0
    %2871 = vmatpush1.msra.mxu0 0.0
    %2872 = vmatprep.subr.mxu0 0.0
    %2873 = vmatpush1.msra.mxu0 0.0
    %2874 = vmatprep.mubr.f32.mxu0 0.0
    %2875 = vmatmul.mubr.f32.gmra.mrb[0].mxu0 %v731
    %v2876 = vpop.f32.mrb[0].mxu0
    %v2877 = vadd.f32 0.0, %v2876
    %v2878 = vpop.f32.mrb[0].mxu0
    %2879 = vmatprep.mubr.f32.mxu0 0.0
    %2880 = vmatmul.mubr.f32.gmra.mrb[0].mxu0 %v733
    %v2881 = vpop.f32.mrb[0].mxu0
    %v2882 = vadd.f32 0.0, %v2881
    %v2883 = vpop.f32.mrb[0].mxu0
    %2884 = vmatprep.mubr.f32.mxu0 0.0
    %2885 = vmatmul.mubr.f32.gmra.mrb[0].mxu0 %v735
    %v2886 = vpop.f32.mrb[0].mxu0
    %v2887 = vadd.f32 0.0, %v2886
    %v2888 = vpop.f32.mrb[0].mxu0
    %2889 = vdwg.mxu0
    %v2890 = vmul.f32 %v2877, %v38
    %v2891 = vmul.f32 %v2882, %v39
    %v2892 = vmul.f32 %v2887, %v40
    %2893 = vrot.lane.b32.xlu0 %v2455, 64
    %v2894 = vpop.permute.xlu0 %2893
    %v2895 = vsel %vm737, %v2894, 0
    %2897 = vmatprep.subr.mxu0 0.0
    %2898 = vmatpush1.msra.mxu0 %v2895
    %2899 = vmatprep.subr.mxu0 0.0
    %2900 = vmatpush1.msra.mxu0 0.0
    %2901 = vmatprep.subr.mxu0 0.0
    %2902 = vmatpush1.msra.mxu0 0.0
    %2903 = vmatprep.subr.mxu0 0.0
    %2904 = vmatpush1.msra.mxu0 0.0
    %2905 = vmatprep.subr.mxu0 0.0
    %2906 = vmatpush1.msra.mxu0 0.0
    %2907 = vmatprep.subr.mxu0 0.0
    %2908 = vmatpush1.msra.mxu0 0.0
    %2909 = vmatprep.subr.mxu0 0.0
    %2910 = vmatpush1.msra.mxu0 0.0
    %2911 = vmatprep.subr.mxu0 0.0
    %2912 = vmatpush1.msra.mxu0 0.0
    %2913 = vmatprep.subr.mxu0 0.0
    %2914 = vmatpush1.msra.mxu0 0.0
    %2915 = vmatprep.subr.mxu0 0.0
    %2916 = vmatpush1.msra.mxu0 0.0
    %2917 = vmatprep.subr.mxu0 0.0
    %2918 = vmatpush1.msra.mxu0 0.0
    %2919 = vmatprep.subr.mxu0 0.0
    %2920 = vmatpush1.msra.mxu0 0.0
    %2921 = vmatprep.subr.mxu0 0.0
    %2922 = vmatpush1.msra.mxu0 0.0
    %2923 = vmatprep.subr.mxu0 0.0
    %2924 = vmatpush1.msra.mxu0 0.0
    %2925 = vmatprep.subr.mxu0 0.0
    %2926 = vmatpush1.msra.mxu0 0.0
    %2927 = vmatprep.subr.mxu0 0.0
    %2928 = vmatpush1.msra.mxu0 0.0
    %2929 = vmatprep.subr.mxu0 0.0
    %2930 = vmatpush1.msra.mxu0 0.0
    %2931 = vmatprep.subr.mxu0 0.0
    %2932 = vmatpush1.msra.mxu0 0.0
    %2933 = vmatprep.subr.mxu0 0.0
    %2934 = vmatpush1.msra.mxu0 0.0
    %2935 = vmatprep.subr.mxu0 0.0
    %2936 = vmatpush1.msra.mxu0 0.0
    %2937 = vmatprep.subr.mxu0 0.0
    %2938 = vmatpush1.msra.mxu0 0.0
    %2939 = vmatprep.subr.mxu0 0.0
    %2940 = vmatpush1.msra.mxu0 0.0
    %2941 = vmatprep.subr.mxu0 0.0
    %2942 = vmatpush1.msra.mxu0 0.0
    %2943 = vmatprep.subr.mxu0 0.0
    %2944 = vmatpush1.msra.mxu0 0.0
    %2945 = vmatprep.subr.mxu0 0.0
    %2946 = vmatpush1.msra.mxu0 0.0
    %2947 = vmatprep.subr.mxu0 0.0
    %2948 = vmatpush1.msra.mxu0 0.0
    %2949 = vmatprep.subr.mxu0 0.0
    %2950 = vmatpush1.msra.mxu0 0.0
    %2951 = vmatprep.subr.mxu0 0.0
    %2952 = vmatpush1.msra.mxu0 0.0
    %2953 = vmatprep.subr.mxu0 0.0
    %2954 = vmatpush1.msra.mxu0 0.0
    %2955 = vmatprep.subr.mxu0 0.0
    %2956 = vmatpush1.msra.mxu0 0.0
    %2957 = vmatprep.subr.mxu0 0.0
    %2958 = vmatpush1.msra.mxu0 0.0
    %2959 = vmatprep.subr.mxu0 0.0
    %2960 = vmatpush1.msra.mxu0 0.0
    %2961 = vmatprep.mubr.f32.mxu0 0.0
    %2962 = vmatmul.mubr.f32.gmra.mrb[0].mxu0 %v731
    %v2963 = vpop.f32.mrb[0].mxu0
    %v2964 = vadd.f32 0.0, %v2963
    %v2965 = vpop.f32.mrb[0].mxu0
    %2966 = vmatprep.mubr.f32.mxu0 0.0
    %2967 = vmatmul.mubr.f32.gmra.mrb[0].mxu0 %v733
    %v2968 = vpop.f32.mrb[0].mxu0
    %v2969 = vadd.f32 0.0, %v2968
    %v2970 = vpop.f32.mrb[0].mxu0
    %2971 = vmatprep.mubr.f32.mxu0 0.0
    %2972 = vmatmul.mubr.f32.gmra.mrb[0].mxu0 %v735
    %v2973 = vpop.f32.mrb[0].mxu0
    %v2974 = vadd.f32 0.0, %v2973
    %v2975 = vpop.f32.mrb[0].mxu0
    %2976 = vdwg.mxu0
    %v2977 = vmul.f32 %v2964, %v38
    %v2978 = vmul.f32 %v2969, %v39
    %v2979 = vmul.f32 %v2974, %v40
    %v2981 = vsel %vm329, %v2623, 0
    %v2984 = vsel %vm329, %v2890, 0
    %v2987 = vsel %vm329, %v2891, 0
    %v2990 = vsel %vm329, %v2892, 0
    %2992 = vmatprep.subr.mxu0 0.0
    %2993 = vmatpush1.xpose.msra.mxu0 %v2984
    %2994 = vmatprep.subr.mxu0 0.0
    %2995 = vmatpush1.xpose.msra.mxu0 %v2987
    %2996 = vmatprep.subr.mxu0 0.0
    %2997 = vmatpush1.xpose.msra.mxu0 %v2990
    %2998 = vmatprep.subr.mxu0 0.0
    %2999 = vmatpush1.xpose.msra.mxu0 0.0
    %3000 = vmatprep.subr.mxu0 0.0
    %3001 = vmatpush1.xpose.msra.mxu0 0.0
    %3002 = vmatprep.subr.mxu0 0.0
    %3003 = vmatpush1.xpose.msra.mxu0 0.0
    %3004 = vmatprep.subr.mxu0 0.0
    %3005 = vmatpush1.xpose.msra.mxu0 0.0
    %3006 = vmatprep.subr.mxu0 0.0
    %3007 = vmatpush1.xpose.msra.mxu0 0.0
    %3008 = vmatprep.subr.mxu0 0.0
    %3009 = vmatpush1.xpose.msra.mxu0 0.0
    %3010 = vmatprep.subr.mxu0 0.0
    %3011 = vmatpush1.xpose.msra.mxu0 0.0
    %3012 = vmatprep.subr.mxu0 0.0
    %3013 = vmatpush1.xpose.msra.mxu0 0.0
    %3014 = vmatprep.subr.mxu0 0.0
    %3015 = vmatpush1.xpose.msra.mxu0 0.0
    %3016 = vmatprep.subr.mxu0 0.0
    %3017 = vmatpush1.xpose.msra.mxu0 0.0
    %3018 = vmatprep.subr.mxu0 0.0
    %3019 = vmatpush1.xpose.msra.mxu0 0.0
    %3020 = vmatprep.subr.mxu0 0.0
    %3021 = vmatpush1.xpose.msra.mxu0 0.0
    %3022 = vmatprep.subr.mxu0 0.0
    %3023 = vmatpush1.xpose.msra.mxu0 0.0
    %3024 = vmatprep.subr.mxu0 0.0
    %3025 = vmatpush1.xpose.msra.mxu0 0.0
    %3026 = vmatprep.subr.mxu0 0.0
    %3027 = vmatpush1.xpose.msra.mxu0 0.0
    %3028 = vmatprep.subr.mxu0 0.0
    %3029 = vmatpush1.xpose.msra.mxu0 0.0
    %3030 = vmatprep.subr.mxu0 0.0
    %3031 = vmatpush1.xpose.msra.mxu0 0.0
    %3032 = vmatprep.subr.mxu0 0.0
    %3033 = vmatpush1.xpose.msra.mxu0 0.0
    %3034 = vmatprep.subr.mxu0 0.0
    %3035 = vmatpush1.xpose.msra.mxu0 0.0
    %3036 = vmatprep.subr.mxu0 0.0
    %3037 = vmatpush1.xpose.msra.mxu0 0.0
    %3038 = vmatprep.subr.mxu0 0.0
    %3039 = vmatpush1.xpose.msra.mxu0 0.0
    %3040 = vmatprep.subr.mxu0 0.0
    %3041 = vmatpush1.xpose.msra.mxu0 0.0
    %3042 = vmatprep.subr.mxu0 0.0
    %3043 = vmatpush1.xpose.msra.mxu0 0.0
    %3044 = vmatprep.subr.mxu0 0.0
    %3045 = vmatpush1.xpose.msra.mxu0 0.0
    %3046 = vmatprep.subr.mxu0 0.0
    %3047 = vmatpush1.xpose.msra.mxu0 0.0
    %3048 = vmatprep.subr.mxu0 0.0
    %3049 = vmatpush1.xpose.msra.mxu0 0.0
    %3050 = vmatprep.subr.mxu0 0.0
    %3051 = vmatpush1.xpose.msra.mxu0 0.0
    %3052 = vmatprep.subr.mxu0 0.0
    %3053 = vmatpush1.xpose.msra.mxu0 0.0
    %3054 = vmatprep.subr.mxu0 0.0
    %3055 = vmatpush1.xpose.msra.mxu0 0.0
    %3056 = vmatprep.mubr.f32.mxu0 0.0
    %3057 = vmatmul.mubr.f32.gmra.mrb[0].mxu0 %v2981
    %v3058 = vpop.f32.mrb[0].mxu0
    %v3059 = vadd.f32 0.0, %v3058
    %v3060 = vpop.f32.mrb[0].mxu0
    %3061 = vdwg.mxu0
    %v3062 = vsel %vm992, %v3059, -inf
    %3063 = vmax.xlane.f32.xlu0 %v3062
    %v3064 = vpop.xlane.xlu0 %3063
    %v3065 = vsub.f32 %v3059, %v3064
    %v3066 = vmul.f32 %v3065, 1.442695
    %v3067 = vpow.pop %v3066
    %v3069 = vsel %vm999, %v3067, 0
    %3071 = vmatprep.subr.mxu0 0.0
    %3072 = vmatpush1.msra.mxu0 %v41
    %3073 = vmatprep.subr.mxu0 0.0
    %3074 = vmatpush1.msra.mxu0 %v42
    %3075 = vmatprep.subr.mxu0 0.0
    %3076 = vmatpush1.msra.mxu0 %v1004
    %3077 = vmatprep.subr.mxu0 0.0
    %3078 = vmatpush1.msra.mxu0 0.0
    %3079 = vmatprep.subr.mxu0 0.0
    %3080 = vmatpush1.msra.mxu0 0.0
    %3081 = vmatprep.subr.mxu0 0.0
    %3082 = vmatpush1.msra.mxu0 0.0
    %3083 = vmatprep.subr.mxu0 0.0
    %3084 = vmatpush1.msra.mxu0 0.0
    %3085 = vmatprep.subr.mxu0 0.0
    %3086 = vmatpush1.msra.mxu0 0.0
    %3087 = vmatprep.subr.mxu0 0.0
    %3088 = vmatpush1.msra.mxu0 0.0
    %3089 = vmatprep.subr.mxu0 0.0
    %3090 = vmatpush1.msra.mxu0 0.0
    %3091 = vmatprep.subr.mxu0 0.0
    %3092 = vmatpush1.msra.mxu0 0.0
    %3093 = vmatprep.subr.mxu0 0.0
    %3094 = vmatpush1.msra.mxu0 0.0
    %3095 = vmatprep.subr.mxu0 0.0
    %3096 = vmatpush1.msra.mxu0 0.0
    %3097 = vmatprep.subr.mxu0 0.0
    %3098 = vmatpush1.msra.mxu0 0.0
    %3099 = vmatprep.subr.mxu0 0.0
    %3100 = vmatpush1.msra.mxu0 0.0
    %3101 = vmatprep.subr.mxu0 0.0
    %3102 = vmatpush1.msra.mxu0 0.0
    %3103 = vmatprep.subr.mxu0 0.0
    %3104 = vmatpush1.msra.mxu0 0.0
    %3105 = vmatprep.subr.mxu0 0.0
    %3106 = vmatpush1.msra.mxu0 0.0
    %3107 = vmatprep.subr.mxu0 0.0
    %3108 = vmatpush1.msra.mxu0 0.0
    %3109 = vmatprep.subr.mxu0 0.0
    %3110 = vmatpush1.msra.mxu0 0.0
    %3111 = vmatprep.subr.mxu0 0.0
    %3112 = vmatpush1.msra.mxu0 0.0
    %3113 = vmatprep.subr.mxu0 0.0
    %3114 = vmatpush1.msra.mxu0 0.0
    %3115 = vmatprep.subr.mxu0 0.0
    %3116 = vmatpush1.msra.mxu0 0.0
    %3117 = vmatprep.subr.mxu0 0.0
    %3118 = vmatpush1.msra.mxu0 0.0
    %3119 = vmatprep.subr.mxu0 0.0
    %3120 = vmatpush1.msra.mxu0 0.0
    %3121 = vmatprep.subr.mxu0 0.0
    %3122 = vmatpush1.msra.mxu0 0.0
    %3123 = vmatprep.subr.mxu0 0.0
    %3124 = vmatpush1.msra.mxu0 0.0
    %3125 = vmatprep.subr.mxu0 0.0
    %3126 = vmatpush1.msra.mxu0 0.0
    %3127 = vmatprep.subr.mxu0 0.0
    %3128 = vmatpush1.msra.mxu0 0.0
    %3129 = vmatprep.subr.mxu0 0.0
    %3130 = vmatpush1.msra.mxu0 0.0
    %3131 = vmatprep.subr.mxu0 0.0
    %3132 = vmatpush1.msra.mxu0 0.0
    %3133 = vmatprep.subr.mxu0 0.0
    %3134 = vmatpush1.msra.mxu0 0.0
    %3135 = vmatprep.mubr.f32.mxu0 0.0
    %3136 = vmatmul.mubr.f32.gmra.mrb[0].mxu0 %v3069
    %v3137 = vpop.f32.mrb[0].mxu0
    %v3138 = vadd.f32 0.0, %v3137
    %v3139 = vpop.f32.mrb[0].mxu0
    %3140 = vdwg.mxu0
    %v3141 = vmax.f32 %v3138, 1e-20
    %v3142 = vrcp.pop %v3141
    %v3143 = vmul.f32 %v3067, %v3142
    %v3145 = vsel %vm999, %v3143, 0
    %v3148 = vsel %vm1003, %v2979, 0
    %3150 = vmatprep.subr.mxu0 0.0
    %3151 = vmatpush1.msra.mxu0 %v2977
    %3152 = vmatprep.subr.mxu0 0.0
    %3153 = vmatpush1.msra.mxu0 %v2978
    %3154 = vmatprep.subr.mxu0 0.0
    %3155 = vmatpush1.msra.mxu0 %v3148
    %3156 = vmatprep.subr.mxu0 0.0
    %3157 = vmatpush1.msra.mxu0 0.0
    %3158 = vmatprep.subr.mxu0 0.0
    %3159 = vmatpush1.msra.mxu0 0.0
    %3160 = vmatprep.subr.mxu0 0.0
    %3161 = vmatpush1.msra.mxu0 0.0
    %3162 = vmatprep.subr.mxu0 0.0
    %3163 = vmatpush1.msra.mxu0 0.0
    %3164 = vmatprep.subr.mxu0 0.0
    %3165 = vmatpush1.msra.mxu0 0.0
    %3166 = vmatprep.subr.mxu0 0.0
    %3167 = vmatpush1.msra.mxu0 0.0
    %3168 = vmatprep.subr.mxu0 0.0
    %3169 = vmatpush1.msra.mxu0 0.0
    %3170 = vmatprep.subr.mxu0 0.0
    %3171 = vmatpush1.msra.mxu0 0.0
    %3172 = vmatprep.subr.mxu0 0.0
    %3173 = vmatpush1.msra.mxu0 0.0
    %3174 = vmatprep.subr.mxu0 0.0
    %3175 = vmatpush1.msra.mxu0 0.0
    %3176 = vmatprep.subr.mxu0 0.0
    %3177 = vmatpush1.msra.mxu0 0.0
    %3178 = vmatprep.subr.mxu0 0.0
    %3179 = vmatpush1.msra.mxu0 0.0
    %3180 = vmatprep.subr.mxu0 0.0
    %3181 = vmatpush1.msra.mxu0 0.0
    %3182 = vmatprep.subr.mxu0 0.0
    %3183 = vmatpush1.msra.mxu0 0.0
    %3184 = vmatprep.subr.mxu0 0.0
    %3185 = vmatpush1.msra.mxu0 0.0
    %3186 = vmatprep.subr.mxu0 0.0
    %3187 = vmatpush1.msra.mxu0 0.0
    %3188 = vmatprep.subr.mxu0 0.0
    %3189 = vmatpush1.msra.mxu0 0.0
    %3190 = vmatprep.subr.mxu0 0.0
    %3191 = vmatpush1.msra.mxu0 0.0
    %3192 = vmatprep.subr.mxu0 0.0
    %3193 = vmatpush1.msra.mxu0 0.0
    %3194 = vmatprep.subr.mxu0 0.0
    %3195 = vmatpush1.msra.mxu0 0.0
    %3196 = vmatprep.subr.mxu0 0.0
    %3197 = vmatpush1.msra.mxu0 0.0
    %3198 = vmatprep.subr.mxu0 0.0
    %3199 = vmatpush1.msra.mxu0 0.0
    %3200 = vmatprep.subr.mxu0 0.0
    %3201 = vmatpush1.msra.mxu0 0.0
    %3202 = vmatprep.subr.mxu0 0.0
    %3203 = vmatpush1.msra.mxu0 0.0
    %3204 = vmatprep.subr.mxu0 0.0
    %3205 = vmatpush1.msra.mxu0 0.0
    %3206 = vmatprep.subr.mxu0 0.0
    %3207 = vmatpush1.msra.mxu0 0.0
    %3208 = vmatprep.subr.mxu0 0.0
    %3209 = vmatpush1.msra.mxu0 0.0
    %3210 = vmatprep.subr.mxu0 0.0
    %3211 = vmatpush1.msra.mxu0 0.0
    %3212 = vmatprep.subr.mxu0 0.0
    %3213 = vmatpush1.msra.mxu0 0.0
    %3214 = vmatprep.mubr.f32.mxu0 0.0
    %3215 = vmatmul.mubr.f32.gmra.mrb[0].mxu0 %v3145
    %v3216 = vpop.f32.mrb[0].mxu0
    %v3217 = vadd.f32 0.0, %v3216
    %v3218 = vpop.f32.mrb[0].mxu0
    %3219 = vdwg.mxu0
    %v3220 = vpack.c.bf16 %v3217, %v3217
    %3221 = vrot.lane.b32.xlu0 %v2413, 32
    %v3222 = vpop.permute.xlu0 %3221
    %3223 = vrot.lane.b32.xlu0 %v2414, 32
    %v3224 = vpop.permute.xlu0 %3223
    %v3228 = vsel %vm329, %v3220, 0
    %3230 = vmatprep.subr.bf16.mxu0 0
    %3231 = vmatpush1.bf16.msra.mxu0 %v3222
    %3232 = vmatprep.subr.bf16.mxu0 0
    %3233 = vmatpush1.bf16.msra.mxu0 %v3224
    %3234 = vmatprep.subr.bf16.mxu0 0
    %3235 = vmatpush1.bf16.msra.mxu0 0
    %3236 = vmatprep.subr.bf16.mxu0 0
    %3237 = vmatpush1.bf16.msra.mxu0 0
    %3238 = vmatprep.subr.bf16.mxu0 0
    %3239 = vmatpush1.bf16.msra.mxu0 0
    %3240 = vmatprep.subr.bf16.mxu0 0
    %3241 = vmatpush1.bf16.msra.mxu0 0
    %3242 = vmatprep.subr.bf16.mxu0 0
    %3243 = vmatpush1.bf16.msra.mxu0 0
    %3244 = vmatprep.subr.bf16.mxu0 0
    %3245 = vmatpush1.bf16.msra.mxu0 0
    %3246 = vmatprep.subr.bf16.mxu0 0
    %3247 = vmatpush1.bf16.msra.mxu0 0
    %3248 = vmatprep.subr.bf16.mxu0 0
    %3249 = vmatpush1.bf16.msra.mxu0 0
    %3250 = vmatprep.subr.bf16.mxu0 0
    %3251 = vmatpush1.bf16.msra.mxu0 0
    %3252 = vmatprep.subr.bf16.mxu0 0
    %3253 = vmatpush1.bf16.msra.mxu0 0
    %3254 = vmatprep.subr.bf16.mxu0 0
    %3255 = vmatpush1.bf16.msra.mxu0 0
    %3256 = vmatprep.subr.bf16.mxu0 0
    %3257 = vmatpush1.bf16.msra.mxu0 0
    %3258 = vmatprep.subr.bf16.mxu0 0
    %3259 = vmatpush1.bf16.msra.mxu0 0
    %3260 = vmatprep.subr.bf16.mxu0 0
    %3261 = vmatpush1.bf16.msra.mxu0 0
    %3262 = vmatprep.mubr.bf16.mxu0 0
    %3263 = vmatmul.mubr.bf16.gmra.mrb[0].mxu0 %v3228
    %v3264 = vpop.f32.mrb[0].mxu0
    %v3265 = vadd.f32 0.0, %v3264
    %v3266 = vpop.f32.mrb[0].mxu0
    %v3267 = vpop.f32.mrb[0].mxu0
    %v3268 = vpop.f32.mrb[0].mxu0
    %3269 = vdwg.mxu0
    %v3270 = vadd.f32 %v1398, %v3265
    %v3271 = vlaneseq
    %v3272 = vshrl.u32 %v3271, 7
    %v3273 = vsub.s32 6, %v3272
    %v3274 = vrot.slane %v2351, %v3273
    %v3275 = vadd.f32 %v3270, %v3274
    %v3276 = vsel %vm291, %v3275, 0.0
    %3277 = vadd.xlane.f32.xlu0 %v3276
    %v3278 = vpop.xlane.xlu0 %3277
    %v3279 = vmul.f32 %v3278, %v295
    %v3280 = vsub.f32 %v3275, %v3279
    %v3281 = vmul.f32 %v3280, %v3280
    %v3282 = vsel %vm291, %v3281, 0.0
    %3283 = vadd.xlane.f32.xlu0 %v3282
    %v3284 = vpop.xlane.xlu0 %3283
    %v3285 = vmul.f32 %v3284, %v295
    %v3286 = vadd.f32 %v3285, 1e-05
    %v3287 = vrsqrt.pop %v3286
    %v3288 = vmul.f32 %v3280, %v3287
    %v3289 = vlaneseq
    %v3290 = vshrl.u32 %v3289, 7
    %v3291 = vsub.s32 7, %v3290
    %v3292 = vrot.slane %v2351, %v3291
    %v3293 = vmul.f32 %v3288, %v3292
    %v3294 = vlaneseq
    %v3295 = vshrl.u32 %v3294, 7
    %v3296 = vsub.s32 0, %v3295
    %v3297 = vrot.slane %v2352, %v3296
    %v3298 = vadd.f32 %v3293, %v3297
    %v3299 = vpack.c.bf16 %v3298, %v3298
    %v3301 = vlaneseq
    %v3302 = vshrl.u32 %v3301, 7
    %v3303 = vsub.s32 0, %v3302
    %v3304 = vrot.slane %v2380, %v3303
    %v3310 = vunpack.c.l.b16 %v2358
    %v3311 = vunpack.c.l.b16 %v2359
    %v3312 = vunpack.c.l.b16 %v2360
    %v3313 = vunpack.c.l.b16 %v2361
    %v3314 = vpack.c.b16 %v3311, %v3310
    %v3315 = vpack.c.b16 %v3313, %v3312
    %v3319 = vsel %vm329, %v3299, 0
    %3321 = vmatprep.subr.bf16.mxu0 0
    %3322 = vmatpush1.bf16.msra.mxu0 %v3314
    %3323 = vmatprep.subr.bf16.mxu0 0
    %3324 = vmatpush1.bf16.msra.mxu0 %v3315
    %3325 = vmatprep.subr.bf16.mxu0 0
    %3326 = vmatpush1.bf16.msra.mxu0 0
    %3327 = vmatprep.subr.bf16.mxu0 0
    %3328 = vmatpush1.bf16.msra.mxu0 0
    %3329 = vmatprep.subr.bf16.mxu0 0
    %3330 = vmatpush1.bf16.msra.mxu0 0
    %3331 = vmatprep.subr.bf16.mxu0 0
    %3332 = vmatpush1.bf16.msra.mxu0 0
    %3333 = vmatprep.subr.bf16.mxu0 0
    %3334 = vmatpush1.bf16.msra.mxu0 0
    %3335 = vmatprep.subr.bf16.mxu0 0
    %3336 = vmatpush1.bf16.msra.mxu0 0
    %3337 = vmatprep.subr.bf16.mxu0 0
    %3338 = vmatpush1.bf16.msra.mxu0 0
    %3339 = vmatprep.subr.bf16.mxu0 0
    %3340 = vmatpush1.bf16.msra.mxu0 0
    %3341 = vmatprep.subr.bf16.mxu0 0
    %3342 = vmatpush1.bf16.msra.mxu0 0
    %3343 = vmatprep.subr.bf16.mxu0 0
    %3344 = vmatpush1.bf16.msra.mxu0 0
    %3345 = vmatprep.subr.bf16.mxu0 0
    %3346 = vmatpush1.bf16.msra.mxu0 0
    %3347 = vmatprep.subr.bf16.mxu0 0
    %3348 = vmatpush1.bf16.msra.mxu0 0
    %3349 = vmatprep.subr.bf16.mxu0 0
    %3350 = vmatpush1.bf16.msra.mxu0 0
    %3351 = vmatprep.subr.bf16.mxu0 0
    %3352 = vmatpush1.bf16.msra.mxu0 0
    %3353 = vmatprep.mubr.bf16.mxu0 0
    %3354 = vmatmul.mubr.bf16.gmra.mrb[0].mxu0 %v3319
    %v3355 = vpop.f32.mrb[0].mxu0
    %v3356 = vadd.f32 %v3304, %v3355
    %v3357 = vpop.f32.mrb[0].mxu0
    %v3358 = vpop.f32.mrb[0].mxu0
    %v3359 = vpop.f32.mrb[0].mxu0
    %3360 = vdwg.mxu0
    %v3361 = vmul.f32 %v3356, %v3356
    %v3362 = vmul.f32 %v3356, %v3361
    %v3363 = vmul.f32 %v3362, 0.044715
    %v3364 = vadd.f32 %v3356, %v3363
    %v3365 = vmul.f32 %v3364, 0.7978846
    %v3366 = vtanh.pop %v3365
    %v3367 = vadd.f32 %v3366, 1.0
    %v3368 = vmul.f32 %v3367, 0.5
    %v3369 = vmul.f32 %v3356, %v3368
    %v3370 = vpack.c.bf16 %v3369, %v3369
    %v3371 = vlaneseq
    %v3372 = vshrl.u32 %v3371, 7
    %v3373 = vsub.s32 1, %v3372
    %v3374 = vrot.slane %v2352, %v3373
    %v3391 = vunpack.c.l.b16 %v2363
    %v3392 = vunpack.c.l.b16 %v2364
    %v3393 = vunpack.c.l.b16 %v2365
    %v3394 = vunpack.c.l.b16 %v2366
    %v3395 = vunpack.c.l.b16 %v2367
    %v3396 = vunpack.c.l.b16 %v2368
    %v3397 = vunpack.c.l.b16 %v2369
    %v3398 = vunpack.c.l.b16 %v2370
    %v3399 = vunpack.c.l.b16 %v2371
    %v3400 = vunpack.c.l.b16 %v2372
    %v3401 = vunpack.c.l.b16 %v2373
    %v3402 = vunpack.c.l.b16 %v2374
    %v3403 = vunpack.c.l.b16 %v2375
    %v3404 = vunpack.c.l.b16 %v2376
    %v3405 = vunpack.c.l.b16 %v2377
    %v3406 = vunpack.c.l.b16 %v2378
    %v3407 = vpack.c.b16 %v3392, %v3391
    %v3408 = vpack.c.b16 %v3394, %v3393
    %v3409 = vpack.c.b16 %v3396, %v3395
    %v3410 = vpack.c.b16 %v3398, %v3397
    %v3411 = vpack.c.b16 %v3400, %v3399
    %v3412 = vpack.c.b16 %v3402, %v3401
    %v3413 = vpack.c.b16 %v3404, %v3403
    %v3414 = vpack.c.b16 %v3406, %v3405
    %3423 = vmatprep.subr.bf16.mxu0 0
    %3424 = vmatpush1.bf16.msra.mxu0 %v3407
    %3425 = vmatprep.subr.bf16.mxu0 0
    %3426 = vmatpush1.bf16.msra.mxu0 %v3408
    %3427 = vmatprep.subr.bf16.mxu0 0
    %3428 = vmatpush1.bf16.msra.mxu0 %v3409
    %3429 = vmatprep.subr.bf16.mxu0 0
    %3430 = vmatpush1.bf16.msra.mxu0 %v3410
    %3431 = vmatprep.subr.bf16.mxu0 0
    %3432 = vmatpush1.bf16.msra.mxu0 %v3411
    %3433 = vmatprep.subr.bf16.mxu0 0
    %3434 = vmatpush1.bf16.msra.mxu0 %v3412
    %3435 = vmatprep.subr.bf16.mxu0 0
    %3436 = vmatpush1.bf16.msra.mxu0 %v3413
    %3437 = vmatprep.subr.bf16.mxu0 0
    %3438 = vmatpush1.bf16.msra.mxu0 %v3414
    %3439 = vmatprep.subr.bf16.mxu0 0
    %3440 = vmatpush1.bf16.msra.mxu0 0
    %3441 = vmatprep.subr.bf16.mxu0 0
    %3442 = vmatpush1.bf16.msra.mxu0 0
    %3443 = vmatprep.subr.bf16.mxu0 0
    %3444 = vmatpush1.bf16.msra.mxu0 0
    %3445 = vmatprep.subr.bf16.mxu0 0
    %3446 = vmatpush1.bf16.msra.mxu0 0
    %3447 = vmatprep.subr.bf16.mxu0 0
    %3448 = vmatpush1.bf16.msra.mxu0 0
    %3449 = vmatprep.subr.bf16.mxu0 0
    %3450 = vmatpush1.bf16.msra.mxu0 0
    %3451 = vmatprep.subr.bf16.mxu0 0
    %3452 = vmatpush1.bf16.msra.mxu0 0
    %3453 = vmatprep.subr.bf16.mxu0 0
    %3454 = vmatpush1.bf16.msra.mxu0 0
    %3455 = vmatprep.mubr.bf16.mxu0 0
    %3456 = vmatmul.mubr.bf16.gmra.mrb[0].mxu0 %v3370
    %v3457 = vpop.f32.mrb[0].mxu0
    %v3458 = vadd.f32 %v3374, %v3457
    %v3459 = vpop.f32.mrb[0].mxu0
    %v3460 = vpop.f32.mrb[0].mxu0
    %v3461 = vpop.f32.mrb[0].mxu0
    %3462 = vdwg.mxu0
    %v3463 = vadd.f32 %v3275, %v3458
    %v3464 = vsel %vm291, %v2349, 0.0
    %3465 = vadd.xlane.f32.xlu0 %v3464
    %v3466 = vpop.xlane.xlu0 %3465
    %v3467 = vmul.f32 %v3466, %v295
    %v3468 = vsub.f32 %v2349, %v3467
    %v3469 = vmul.f32 %v3468, %v3468
    %v3470 = vsel %vm291, %v3469, 0.0
    %3471 = vadd.xlane.f32.xlu0 %v3470
    %v3472 = vpop.xlane.xlu0 %3471
    %v3473 = vmul.f32 %v3472, %v295
    %v3474 = vadd.f32 %v3473, 1e-05
    %v3475 = vrsqrt.pop %v3474
    %v3476 = vmul.f32 %v3468, %v3475
    %v3477 = vmul.f32 %v3476, %v2397
    %v3478 = vadd.f32 %v3477, %v2402
    %v3479 = vpack.c.bf16 %v3478, %v3478
    %v3481 = vsel %vm329, %v3479, 0
    %3483 = vmatprep.subr.bf16.mxu0 0
    %3484 = vmatpush1.bf16.msra.mxu0 %v2413
    %3485 = vmatprep.subr.bf16.mxu0 0
    %3486 = vmatpush1.bf16.msra.mxu0 %v2414
    %3487 = vmatprep.subr.bf16.mxu0 0
    %3488 = vmatpush1.bf16.msra.mxu0 0
    %3489 = vmatprep.subr.bf16.mxu0 0
    %3490 = vmatpush1.bf16.msra.mxu0 0
    %3491 = vmatprep.subr.bf16.mxu0 0
    %3492 = vmatpush1.bf16.msra.mxu0 0
    %3493 = vmatprep.subr.bf16.mxu0 0
    %3494 = vmatpush1.bf16.msra.mxu0 0
    %3495 = vmatprep.subr.bf16.mxu0 0
    %3496 = vmatpush1.bf16.msra.mxu0 0
    %3497 = vmatprep.subr.bf16.mxu0 0
    %3498 = vmatpush1.bf16.msra.mxu0 0
    %3499 = vmatprep.subr.bf16.mxu0 0
    %3500 = vmatpush1.bf16.msra.mxu0 0
    %3501 = vmatprep.subr.bf16.mxu0 0
    %3502 = vmatpush1.bf16.msra.mxu0 0
    %3503 = vmatprep.subr.bf16.mxu0 0
    %3504 = vmatpush1.bf16.msra.mxu0 0
    %3505 = vmatprep.subr.bf16.mxu0 0
    %3506 = vmatpush1.bf16.msra.mxu0 0
    %3507 = vmatprep.subr.bf16.mxu0 0
    %3508 = vmatpush1.bf16.msra.mxu0 0
    %3509 = vmatprep.subr.bf16.mxu0 0
    %3510 = vmatpush1.bf16.msra.mxu0 0
    %3511 = vmatprep.subr.bf16.mxu0 0
    %3512 = vmatpush1.bf16.msra.mxu0 0
    %3513 = vmatprep.subr.bf16.mxu0 0
    %3514 = vmatpush1.bf16.msra.mxu0 0
    %3515 = vmatprep.mubr.bf16.mxu0 0
    %3516 = vmatmul.mubr.bf16.gmra.mrb[0].mxu0 %v3481
    %v3517 = vpop.f32.mrb[0].mxu0
    %v3518 = vadd.f32 0.0, %v3517
    %v3519 = vpop.f32.mrb[0].mxu0
    %v3520 = vpop.f32.mrb[0].mxu0
    %v3521 = vpop.f32.mrb[0].mxu0
    %3522 = vdwg.mxu0
    %v3524 = vsel %vm329, %v3518, 0
    %3526 = vmatprep.subr.mxu0 0.0
    %3527 = vmatpush1.msra.mxu0 %v34
    %3528 = vmatprep.subr.mxu0 0.0
    %3529 = vmatpush1.msra.mxu0 %v35
    %3530 = vmatprep.subr.mxu0 0.0
    %3531 = vmatpush1.msra.mxu0 %v36
    %3532 = vmatprep.subr.mxu0 0.0
    %3533 = vmatpush1.msra.mxu0 %v37
    %3534 = vmatprep.subr.mxu0 0.0
    %3535 = vmatpush1.msra.mxu0 0.0
    %3536 = vmatprep.subr.mxu0 0.0
    %3537 = vmatpush1.msra.mxu0 0.0
    %3538 = vmatprep.subr.mxu0 0.0
    %3539 = vmatpush1.msra.mxu0 0.0
    %3540 = vmatprep.subr.mxu0 0.0
    %3541 = vmatpush1.msra.mxu0 0.0
    %3542 = vmatprep.subr.mxu0 0.0
    %3543 = vmatpush1.msra.mxu0 0.0
    %3544 = vmatprep.subr.mxu0 0.0
    %3545 = vmatpush1.msra.mxu0 0.0
    %3546 = vmatprep.subr.mxu0 0.0
    %3547 = vmatpush1.msra.mxu0 0.0
    %3548 = vmatprep.subr.mxu0 0.0
    %3549 = vmatpush1.msra.mxu0 0.0
    %3550 = vmatprep.subr.mxu0 0.0
    %3551 = vmatpush1.msra.mxu0 0.0
    %3552 = vmatprep.subr.mxu0 0.0
    %3553 = vmatpush1.msra.mxu0 0.0
    %3554 = vmatprep.subr.mxu0 0.0
    %3555 = vmatpush1.msra.mxu0 0.0
    %3556 = vmatprep.subr.mxu0 0.0
    %3557 = vmatpush1.msra.mxu0 0.0
    %3558 = vmatprep.subr.mxu0 0.0
    %3559 = vmatpush1.msra.mxu0 0.0
    %3560 = vmatprep.subr.mxu0 0.0
    %3561 = vmatpush1.msra.mxu0 0.0
    %3562 = vmatprep.subr.mxu0 0.0
    %3563 = vmatpush1.msra.mxu0 0.0
    %3564 = vmatprep.subr.mxu0 0.0
    %3565 = vmatpush1.msra.mxu0 0.0
    %3566 = vmatprep.subr.mxu0 0.0
    %3567 = vmatpush1.msra.mxu0 0.0
    %3568 = vmatprep.subr.mxu0 0.0
    %3569 = vmatpush1.msra.mxu0 0.0
    %3570 = vmatprep.subr.mxu0 0.0
    %3571 = vmatpush1.msra.mxu0 0.0
    %3572 = vmatprep.subr.mxu0 0.0
    %3573 = vmatpush1.msra.mxu0 0.0
    %3574 = vmatprep.subr.mxu0 0.0
    %3575 = vmatpush1.msra.mxu0 0.0
    %3576 = vmatprep.subr.mxu0 0.0
    %3577 = vmatpush1.msra.mxu0 0.0
    %3578 = vmatprep.subr.mxu0 0.0
    %3579 = vmatpush1.msra.mxu0 0.0
    %3580 = vmatprep.subr.mxu0 0.0
    %3581 = vmatpush1.msra.mxu0 0.0
    %3582 = vmatprep.subr.mxu0 0.0
    %3583 = vmatpush1.msra.mxu0 0.0
    %3584 = vmatprep.subr.mxu0 0.0
    %3585 = vmatpush1.msra.mxu0 0.0
    %3586 = vmatprep.subr.mxu0 0.0
    %3587 = vmatpush1.msra.mxu0 0.0
    %3588 = vmatprep.subr.mxu0 0.0
    %3589 = vmatpush1.msra.mxu0 0.0
    %3590 = vmatprep.mubr.f32.mxu0 0.0
    %3591 = vmatmul.mubr.f32.gmra.mrb[0].mxu0 %v3524
    %v3592 = vpop.f32.mrb[0].mxu0
    %v3593 = vadd.f32 0.0, %v3592
    %v3594 = vpop.f32.mrb[0].mxu0
    %3595 = vdwg.mxu0
    %v3596 = vmul.f32 %v3518, %v3518
    %v3598 = vsel %vm329, %v3596, 0
    %3600 = vmatprep.subr.mxu0 0.0
    %3601 = vmatpush1.msra.mxu0 %v34
    %3602 = vmatprep.subr.mxu0 0.0
    %3603 = vmatpush1.msra.mxu0 %v35
    %3604 = vmatprep.subr.mxu0 0.0
    %3605 = vmatpush1.msra.mxu0 %v36
    %3606 = vmatprep.subr.mxu0 0.0
    %3607 = vmatpush1.msra.mxu0 %v37
    %3608 = vmatprep.subr.mxu0 0.0
    %3609 = vmatpush1.msra.mxu0 0.0
    %3610 = vmatprep.subr.mxu0 0.0
    %3611 = vmatpush1.msra.mxu0 0.0
    %3612 = vmatprep.subr.mxu0 0.0
    %3613 = vmatpush1.msra.mxu0 0.0
    %3614 = vmatprep.subr.mxu0 0.0
    %3615 = vmatpush1.msra.mxu0 0.0
    %3616 = vmatprep.subr.mxu0 0.0
    %3617 = vmatpush1.msra.mxu0 0.0
    %3618 = vmatprep.subr.mxu0 0.0
    %3619 = vmatpush1.msra.mxu0 0.0
    %3620 = vmatprep.subr.mxu0 0.0
    %3621 = vmatpush1.msra.mxu0 0.0
    %3622 = vmatprep.subr.mxu0 0.0
    %3623 = vmatpush1.msra.mxu0 0.0
    %3624 = vmatprep.subr.mxu0 0.0
    %3625 = vmatpush1.msra.mxu0 0.0
    %3626 = vmatprep.subr.mxu0 0.0
    %3627 = vmatpush1.msra.mxu0 0.0
    %3628 = vmatprep.subr.mxu0 0.0
    %3629 = vmatpush1.msra.mxu0 0.0
    %3630 = vmatprep.subr.mxu0 0.0
    %3631 = vmatpush1.msra.mxu0 0.0
    %3632 = vmatprep.subr.mxu0 0.0
    %3633 = vmatpush1.msra.mxu0 0.0
    %3634 = vmatprep.subr.mxu0 0.0
    %3635 = vmatpush1.msra.mxu0 0.0
    %3636 = vmatprep.subr.mxu0 0.0
    %3637 = vmatpush1.msra.mxu0 0.0
    %3638 = vmatprep.subr.mxu0 0.0
    %3639 = vmatpush1.msra.mxu0 0.0
    %3640 = vmatprep.subr.mxu0 0.0
    %3641 = vmatpush1.msra.mxu0 0.0
    %3642 = vmatprep.subr.mxu0 0.0
    %3643 = vmatpush1.msra.mxu0 0.0
    %3644 = vmatprep.subr.mxu0 0.0
    %3645 = vmatpush1.msra.mxu0 0.0
    %3646 = vmatprep.subr.mxu0 0.0
    %3647 = vmatpush1.msra.mxu0 0.0
    %3648 = vmatprep.subr.mxu0 0.0
    %3649 = vmatpush1.msra.mxu0 0.0
    %3650 = vmatprep.subr.mxu0 0.0
    %3651 = vmatpush1.msra.mxu0 0.0
    %3652 = vmatprep.subr.mxu0 0.0
    %3653 = vmatpush1.msra.mxu0 0.0
    %3654 = vmatprep.subr.mxu0 0.0
    %3655 = vmatpush1.msra.mxu0 0.0
    %3656 = vmatprep.subr.mxu0 0.0
    %3657 = vmatpush1.msra.mxu0 0.0
    %3658 = vmatprep.subr.mxu0 0.0
    %3659 = vmatpush1.msra.mxu0 0.0
    %3660 = vmatprep.subr.mxu0 0.0
    %3661 = vmatpush1.msra.mxu0 0.0
    %3662 = vmatprep.subr.mxu0 0.0
    %3663 = vmatpush1.msra.mxu0 0.0
    %3664 = vmatprep.mubr.f32.mxu0 0.0
    %3665 = vmatmul.mubr.f32.gmra.mrb[0].mxu0 %v3598
    %v3666 = vpop.f32.mrb[0].mxu0
    %v3667 = vadd.f32 0.0, %v3666
    %v3668 = vpop.f32.mrb[0].mxu0
    %3669 = vdwg.mxu0
    %v3670 = vmul.f32 %v3593, %v3593
    %v3671 = vsub.f32 %v3667, %v3670
    %v3672 = vmax.f32 %v3671, 0.0
    %v3673 = vsub.f32 %v3518, %v3593
    %v3674 = vadd.f32 %v3672, 1e-05
    %v3675 = vrsqrt.pop %v3674
    %v3676 = vmul.f32 %v3673, %v3675
    %v3677 = vmul.f32 %v3676, %v2617
    %v3678 = vadd.f32 %v3677, %v2622
    %3679 = vrot.lane.b32.xlu0 %v3518, 96
    %v3680 = vpop.permute.xlu0 %3679
    %v3681 = vsel %vm329, %v3680, 0
    %3683 = vmatprep.subr.mxu0 0.0
    %3684 = vmatpush1.msra.mxu0 %v34
    %3685 = vmatprep.subr.mxu0 0.0
    %3686 = vmatpush1.msra.mxu0 %v35
    %3687 = vmatprep.subr.mxu0 0.0
    %3688 = vmatpush1.msra.mxu0 %v36
    %3689 = vmatprep.subr.mxu0 0.0
    %3690 = vmatpush1.msra.mxu0 %v37
    %3691 = vmatprep.subr.mxu0 0.0
    %3692 = vmatpush1.msra.mxu0 0.0
    %3693 = vmatprep.subr.mxu0 0.0
    %3694 = vmatpush1.msra.mxu0 0.0
    %3695 = vmatprep.subr.mxu0 0.0
    %3696 = vmatpush1.msra.mxu0 0.0
    %3697 = vmatprep.subr.mxu0 0.0
    %3698 = vmatpush1.msra.mxu0 0.0
    %3699 = vmatprep.subr.mxu0 0.0
    %3700 = vmatpush1.msra.mxu0 0.0
    %3701 = vmatprep.subr.mxu0 0.0
    %3702 = vmatpush1.msra.mxu0 0.0
    %3703 = vmatprep.subr.mxu0 0.0
    %3704 = vmatpush1.msra.mxu0 0.0
    %3705 = vmatprep.subr.mxu0 0.0
    %3706 = vmatpush1.msra.mxu0 0.0
    %3707 = vmatprep.subr.mxu0 0.0
    %3708 = vmatpush1.msra.mxu0 0.0
    %3709 = vmatprep.subr.mxu0 0.0
    %3710 = vmatpush1.msra.mxu0 0.0
    %3711 = vmatprep.subr.mxu0 0.0
    %3712 = vmatpush1.msra.mxu0 0.0
    %3713 = vmatprep.subr.mxu0 0.0
    %3714 = vmatpush1.msra.mxu0 0.0
    %3715 = vmatprep.subr.mxu0 0.0
    %3716 = vmatpush1.msra.mxu0 0.0
    %3717 = vmatprep.subr.mxu0 0.0
    %3718 = vmatpush1.msra.mxu0 0.0
    %3719 = vmatprep.subr.mxu0 0.0
    %3720 = vmatpush1.msra.mxu0 0.0
    %3721 = vmatprep.subr.mxu0 0.0
    %3722 = vmatpush1.msra.mxu0 0.0
    %3723 = vmatprep.subr.mxu0 0.0
    %3724 = vmatpush1.msra.mxu0 0.0
    %3725 = vmatprep.subr.mxu0 0.0
    %3726 = vmatpush1.msra.mxu0 0.0
    %3727 = vmatprep.subr.mxu0 0.0
    %3728 = vmatpush1.msra.mxu0 0.0
    %3729 = vmatprep.subr.mxu0 0.0
    %3730 = vmatpush1.msra.mxu0 0.0
    %3731 = vmatprep.subr.mxu0 0.0
    %3732 = vmatpush1.msra.mxu0 0.0
    %3733 = vmatprep.subr.mxu0 0.0
    %3734 = vmatpush1.msra.mxu0 0.0
    %3735 = vmatprep.subr.mxu0 0.0
    %3736 = vmatpush1.msra.mxu0 0.0
    %3737 = vmatprep.subr.mxu0 0.0
    %3738 = vmatpush1.msra.mxu0 0.0
    %3739 = vmatprep.subr.mxu0 0.0
    %3740 = vmatpush1.msra.mxu0 0.0
    %3741 = vmatprep.subr.mxu0 0.0
    %3742 = vmatpush1.msra.mxu0 0.0
    %3743 = vmatprep.subr.mxu0 0.0
    %3744 = vmatpush1.msra.mxu0 0.0
    %3745 = vmatprep.subr.mxu0 0.0
    %3746 = vmatpush1.msra.mxu0 0.0
    %3747 = vmatprep.mubr.f32.mxu0 0.0
    %3748 = vmatmul.mubr.f32.gmra.mrb[0].mxu0 %v3681
    %v3749 = vpop.f32.mrb[0].mxu0
    %v3750 = vadd.f32 0.0, %v3749
    %v3751 = vpop.f32.mrb[0].mxu0
    %3752 = vdwg.mxu0
    %3753 = vrot.lane.b32.xlu0 %v3596, 96
    %v3754 = vpop.permute.xlu0 %3753
    %v3755 = vsel %vm329, %v3754, 0
    %3757 = vmatprep.subr.mxu0 0.0
    %3758 = vmatpush1.msra.mxu0 %v34
    %3759 = vmatprep.subr.mxu0 0.0
    %3760 = vmatpush1.msra.mxu0 %v35
    %3761 = vmatprep.subr.mxu0 0.0
    %3762 = vmatpush1.msra.mxu0 %v36
    %3763 = vmatprep.subr.mxu0 0.0
    %3764 = vmatpush1.msra.mxu0 %v37
    %3765 = vmatprep.subr.mxu0 0.0
    %3766 = vmatpush1.msra.mxu0 0.0
    %3767 = vmatprep.subr.mxu0 0.0
    %3768 = vmatpush1.msra.mxu0 0.0
    %3769 = vmatprep.subr.mxu0 0.0
    %3770 = vmatpush1.msra.mxu0 0.0
    %3771 = vmatprep.subr.mxu0 0.0
    %3772 = vmatpush1.msra.mxu0 0.0
    %3773 = vmatprep.subr.mxu0 0.0
    %3774 = vmatpush1.msra.mxu0 0.0
    %3775 = vmatprep.subr.mxu0 0.0
    %3776 = vmatpush1.msra.mxu0 0.0
    %3777 = vmatprep.subr.mxu0 0.0
    %3778 = vmatpush1.msra.mxu0 0.0
    %3779 = vmatprep.subr.mxu0 0.0
    %3780 = vmatpush1.msra.mxu0 0.0
    %3781 = vmatprep.subr.mxu0 0.0
    %3782 = vmatpush1.msra.mxu0 0.0
    %3783 = vmatprep.subr.mxu0 0.0
    %3784 = vmatpush1.msra.mxu0 0.0
    %3785 = vmatprep.subr.mxu0 0.0
    %3786 = vmatpush1.msra.mxu0 0.0
    %3787 = vmatprep.subr.mxu0 0.0
    %3788 = vmatpush1.msra.mxu0 0.0
    %3789 = vmatprep.subr.mxu0 0.0
    %3790 = vmatpush1.msra.mxu0 0.0
    %3791 = vmatprep.subr.mxu0 0.0
    %3792 = vmatpush1.msra.mxu0 0.0
    %3793 = vmatprep.subr.mxu0 0.0
    %3794 = vmatpush1.msra.mxu0 0.0
    %3795 = vmatprep.subr.mxu0 0.0
    %3796 = vmatpush1.msra.mxu0 0.0
    %3797 = vmatprep.subr.mxu0 0.0
    %3798 = vmatpush1.msra.mxu0 0.0
    %3799 = vmatprep.subr.mxu0 0.0
    %3800 = vmatpush1.msra.mxu0 0.0
    %3801 = vmatprep.subr.mxu0 0.0
    %3802 = vmatpush1.msra.mxu0 0.0
    %3803 = vmatprep.subr.mxu0 0.0
    %3804 = vmatpush1.msra.mxu0 0.0
    %3805 = vmatprep.subr.mxu0 0.0
    %3806 = vmatpush1.msra.mxu0 0.0
    %3807 = vmatprep.subr.mxu0 0.0
    %3808 = vmatpush1.msra.mxu0 0.0
    %3809 = vmatprep.subr.mxu0 0.0
    %3810 = vmatpush1.msra.mxu0 0.0
    %3811 = vmatprep.subr.mxu0 0.0
    %3812 = vmatpush1.msra.mxu0 0.0
    %3813 = vmatprep.subr.mxu0 0.0
    %3814 = vmatpush1.msra.mxu0 0.0
    %3815 = vmatprep.subr.mxu0 0.0
    %3816 = vmatpush1.msra.mxu0 0.0
    %3817 = vmatprep.subr.mxu0 0.0
    %3818 = vmatpush1.msra.mxu0 0.0
    %3819 = vmatprep.subr.mxu0 0.0
    %3820 = vmatpush1.msra.mxu0 0.0
    %3821 = vmatprep.mubr.f32.mxu0 0.0
    %3822 = vmatmul.mubr.f32.gmra.mrb[0].mxu0 %v3755
    %v3823 = vpop.f32.mrb[0].mxu0
    %v3824 = vadd.f32 0.0, %v3823
    %v3825 = vpop.f32.mrb[0].mxu0
    %3826 = vdwg.mxu0
    %v3827 = vmul.f32 %v3750, %v3750
    %v3828 = vsub.f32 %v3824, %v3827
    %v3829 = vmax.f32 %v3828, 0.0
    %3831 = vrot.lane.b32.xlu0 %v3750, 32
    %v3832 = vpop.permute.xlu0 %3831
    %v3834 = vsub.f32 %v3518, %v3832
    %v3835 = vadd.f32 %v3829, 1e-05
    %v3836 = vrsqrt.pop %v3835
    %3838 = vrot.lane.b32.xlu0 %v3836, 32
    %v3839 = vpop.permute.xlu0 %3838
    %v3841 = vmul.f32 %v3834, %v3839
    %v3842 = vmul.f32 %v3841, %v2793
    %v3843 = vadd.f32 %v3842, %v2802
    %3845 = vrot.lane.b32.xlu0 %v3843, 96
    %v3846 = vpop.permute.xlu0 %3845
    %v3847 = vsel %vm737, %v3846, 0
    %3849 = vmatprep.subr.mxu0 0.0
    %3850 = vmatpush1.msra.mxu0 %v3847
    %3851 = vmatprep.subr.mxu0 0.0
    %3852 = vmatpush1.msra.mxu0 0.0
    %3853 = vmatprep.subr.mxu0 0.0
    %3854 = vmatpush1.msra.mxu0 0.0
    %3855 = vmatprep.subr.mxu0 0.0
    %3856 = vmatpush1.msra.mxu0 0.0
    %3857 = vmatprep.subr.mxu0 0.0
    %3858 = vmatpush1.msra.mxu0 0.0
    %3859 = vmatprep.subr.mxu0 0.0
    %3860 = vmatpush1.msra.mxu0 0.0
    %3861 = vmatprep.subr.mxu0 0.0
    %3862 = vmatpush1.msra.mxu0 0.0
    %3863 = vmatprep.subr.mxu0 0.0
    %3864 = vmatpush1.msra.mxu0 0.0
    %3865 = vmatprep.subr.mxu0 0.0
    %3866 = vmatpush1.msra.mxu0 0.0
    %3867 = vmatprep.subr.mxu0 0.0
    %3868 = vmatpush1.msra.mxu0 0.0
    %3869 = vmatprep.subr.mxu0 0.0
    %3870 = vmatpush1.msra.mxu0 0.0
    %3871 = vmatprep.subr.mxu0 0.0
    %3872 = vmatpush1.msra.mxu0 0.0
    %3873 = vmatprep.subr.mxu0 0.0
    %3874 = vmatpush1.msra.mxu0 0.0
    %3875 = vmatprep.subr.mxu0 0.0
    %3876 = vmatpush1.msra.mxu0 0.0
    %3877 = vmatprep.subr.mxu0 0.0
    %3878 = vmatpush1.msra.mxu0 0.0
    %3879 = vmatprep.subr.mxu0 0.0
    %3880 = vmatpush1.msra.mxu0 0.0
    %3881 = vmatprep.subr.mxu0 0.0
    %3882 = vmatpush1.msra.mxu0 0.0
    %3883 = vmatprep.subr.mxu0 0.0
    %3884 = vmatpush1.msra.mxu0 0.0
    %3885 = vmatprep.subr.mxu0 0.0
    %3886 = vmatpush1.msra.mxu0 0.0
    %3887 = vmatprep.subr.mxu0 0.0
    %3888 = vmatpush1.msra.mxu0 0.0
    %3889 = vmatprep.subr.mxu0 0.0
    %3890 = vmatpush1.msra.mxu0 0.0
    %3891 = vmatprep.subr.mxu0 0.0
    %3892 = vmatpush1.msra.mxu0 0.0
    %3893 = vmatprep.subr.mxu0 0.0
    %3894 = vmatpush1.msra.mxu0 0.0
    %3895 = vmatprep.subr.mxu0 0.0
    %3896 = vmatpush1.msra.mxu0 0.0
    %3897 = vmatprep.subr.mxu0 0.0
    %3898 = vmatpush1.msra.mxu0 0.0
    %3899 = vmatprep.subr.mxu0 0.0
    %3900 = vmatpush1.msra.mxu0 0.0
    %3901 = vmatprep.subr.mxu0 0.0
    %3902 = vmatpush1.msra.mxu0 0.0
    %3903 = vmatprep.subr.mxu0 0.0
    %3904 = vmatpush1.msra.mxu0 0.0
    %3905 = vmatprep.subr.mxu0 0.0
    %3906 = vmatpush1.msra.mxu0 0.0
    %3907 = vmatprep.subr.mxu0 0.0
    %3908 = vmatpush1.msra.mxu0 0.0
    %3909 = vmatprep.subr.mxu0 0.0
    %3910 = vmatpush1.msra.mxu0 0.0
    %3911 = vmatprep.subr.mxu0 0.0
    %3912 = vmatpush1.msra.mxu0 0.0
    %3913 = vmatprep.mubr.f32.mxu0 0.0
    %3914 = vmatmul.mubr.f32.gmra.mrb[0].mxu0 %v731
    %v3915 = vpop.f32.mrb[0].mxu0
    %v3916 = vadd.f32 0.0, %v3915
    %v3917 = vpop.f32.mrb[0].mxu0
    %3918 = vmatprep.mubr.f32.mxu0 0.0
    %3919 = vmatmul.mubr.f32.gmra.mrb[0].mxu0 %v733
    %v3920 = vpop.f32.mrb[0].mxu0
    %v3921 = vadd.f32 0.0, %v3920
    %v3922 = vpop.f32.mrb[0].mxu0
    %3923 = vmatprep.mubr.f32.mxu0 0.0
    %3924 = vmatmul.mubr.f32.gmra.mrb[0].mxu0 %v735
    %v3925 = vpop.f32.mrb[0].mxu0
    %v3926 = vadd.f32 0.0, %v3925
    %v3927 = vpop.f32.mrb[0].mxu0
    %3928 = vdwg.mxu0
    %v3929 = vmul.f32 %v3916, %v38
    %v3930 = vmul.f32 %v3921, %v39
    %v3931 = vmul.f32 %v3926, %v40
    %3932 = vrot.lane.b32.xlu0 %v3518, 64
    %v3933 = vpop.permute.xlu0 %3932
    %v3934 = vsel %vm737, %v3933, 0
    %3936 = vmatprep.subr.mxu0 0.0
    %3937 = vmatpush1.msra.mxu0 %v3934
    %3938 = vmatprep.subr.mxu0 0.0
    %3939 = vmatpush1.msra.mxu0 0.0
    %3940 = vmatprep.subr.mxu0 0.0
    %3941 = vmatpush1.msra.mxu0 0.0
    %3942 = vmatprep.subr.mxu0 0.0
    %3943 = vmatpush1.msra.mxu0 0.0
    %3944 = vmatprep.subr.mxu0 0.0
    %3945 = vmatpush1.msra.mxu0 0.0
    %3946 = vmatprep.subr.mxu0 0.0
    %3947 = vmatpush1.msra.mxu0 0.0
    %3948 = vmatprep.subr.mxu0 0.0
    %3949 = vmatpush1.msra.mxu0 0.0
    %3950 = vmatprep.subr.mxu0 0.0
    %3951 = vmatpush1.msra.mxu0 0.0
    %3952 = vmatprep.subr.mxu0 0.0
    %3953 = vmatpush1.msra.mxu0 0.0
    %3954 = vmatprep.subr.mxu0 0.0
    %3955 = vmatpush1.msra.mxu0 0.0
    %3956 = vmatprep.subr.mxu0 0.0
    %3957 = vmatpush1.msra.mxu0 0.0
    %3958 = vmatprep.subr.mxu0 0.0
    %3959 = vmatpush1.msra.mxu0 0.0
    %3960 = vmatprep.subr.mxu0 0.0
    %3961 = vmatpush1.msra.mxu0 0.0
    %3962 = vmatprep.subr.mxu0 0.0
    %3963 = vmatpush1.msra.mxu0 0.0
    %3964 = vmatprep.subr.mxu0 0.0
    %3965 = vmatpush1.msra.mxu0 0.0
    %3966 = vmatprep.subr.mxu0 0.0
    %3967 = vmatpush1.msra.mxu0 0.0
    %3968 = vmatprep.subr.mxu0 0.0
    %3969 = vmatpush1.msra.mxu0 0.0
    %3970 = vmatprep.subr.mxu0 0.0
    %3971 = vmatpush1.msra.mxu0 0.0
    %3972 = vmatprep.subr.mxu0 0.0
    %3973 = vmatpush1.msra.mxu0 0.0
    %3974 = vmatprep.subr.mxu0 0.0
    %3975 = vmatpush1.msra.mxu0 0.0
    %3976 = vmatprep.subr.mxu0 0.0
    %3977 = vmatpush1.msra.mxu0 0.0
    %3978 = vmatprep.subr.mxu0 0.0
    %3979 = vmatpush1.msra.mxu0 0.0
    %3980 = vmatprep.subr.mxu0 0.0
    %3981 = vmatpush1.msra.mxu0 0.0
    %3982 = vmatprep.subr.mxu0 0.0
    %3983 = vmatpush1.msra.mxu0 0.0
    %3984 = vmatprep.subr.mxu0 0.0
    %3985 = vmatpush1.msra.mxu0 0.0
    %3986 = vmatprep.subr.mxu0 0.0
    %3987 = vmatpush1.msra.mxu0 0.0
    %3988 = vmatprep.subr.mxu0 0.0
    %3989 = vmatpush1.msra.mxu0 0.0
    %3990 = vmatprep.subr.mxu0 0.0
    %3991 = vmatpush1.msra.mxu0 0.0
    %3992 = vmatprep.subr.mxu0 0.0
    %3993 = vmatpush1.msra.mxu0 0.0
    %3994 = vmatprep.subr.mxu0 0.0
    %3995 = vmatpush1.msra.mxu0 0.0
    %3996 = vmatprep.subr.mxu0 0.0
    %3997 = vmatpush1.msra.mxu0 0.0
    %3998 = vmatprep.subr.mxu0 0.0
    %3999 = vmatpush1.msra.mxu0 0.0
    %4000 = vmatprep.mubr.f32.mxu0 0.0
    %4001 = vmatmul.mubr.f32.gmra.mrb[0].mxu0 %v731
    %v4002 = vpop.f32.mrb[0].mxu0
    %v4003 = vadd.f32 0.0, %v4002
    %v4004 = vpop.f32.mrb[0].mxu0
    %4005 = vmatprep.mubr.f32.mxu0 0.0
    %4006 = vmatmul.mubr.f32.gmra.mrb[0].mxu0 %v733
    %v4007 = vpop.f32.mrb[0].mxu0
    %v4008 = vadd.f32 0.0, %v4007
    %v4009 = vpop.f32.mrb[0].mxu0
    %4010 = vmatprep.mubr.f32.mxu0 0.0
    %4011 = vmatmul.mubr.f32.gmra.mrb[0].mxu0 %v735
    %v4012 = vpop.f32.mrb[0].mxu0
    %v4013 = vadd.f32 0.0, %v4012
    %v4014 = vpop.f32.mrb[0].mxu0
    %4015 = vdwg.mxu0
    %v4016 = vmul.f32 %v4003, %v38
    %v4017 = vmul.f32 %v4008, %v39
    %v4018 = vmul.f32 %v4013, %v40
    %v4020 = vsel %vm329, %v3678, 0
    %v4023 = vsel %vm329, %v3929, 0
    %v4026 = vsel %vm329, %v3930, 0
    %v4029 = vsel %vm329, %v3931, 0
    %4031 = vmatprep.subr.mxu0 0.0
    %4032 = vmatpush1.xpose.msra.mxu0 %v4023
    %4033 = vmatprep.subr.mxu0 0.0
    %4034 = vmatpush1.xpose.msra.mxu0 %v4026
    %4035 = vmatprep.subr.mxu0 0.0
    %4036 = vmatpush1.xpose.msra.mxu0 %v4029
    %4037 = vmatprep.subr.mxu0 0.0
    %4038 = vmatpush1.xpose.msra.mxu0 0.0
    %4039 = vmatprep.subr.mxu0 0.0
    %4040 = vmatpush1.xpose.msra.mxu0 0.0
    %4041 = vmatprep.subr.mxu0 0.0
    %4042 = vmatpush1.xpose.msra.mxu0 0.0
    %4043 = vmatprep.subr.mxu0 0.0
    %4044 = vmatpush1.xpose.msra.mxu0 0.0
    %4045 = vmatprep.subr.mxu0 0.0
    %4046 = vmatpush1.xpose.msra.mxu0 0.0
    %4047 = vmatprep.subr.mxu0 0.0
    %4048 = vmatpush1.xpose.msra.mxu0 0.0
    %4049 = vmatprep.subr.mxu0 0.0
    %4050 = vmatpush1.xpose.msra.mxu0 0.0
    %4051 = vmatprep.subr.mxu0 0.0
    %4052 = vmatpush1.xpose.msra.mxu0 0.0
    %4053 = vmatprep.subr.mxu0 0.0
    %4054 = vmatpush1.xpose.msra.mxu0 0.0
    %4055 = vmatprep.subr.mxu0 0.0
    %4056 = vmatpush1.xpose.msra.mxu0 0.0
    %4057 = vmatprep.subr.mxu0 0.0
    %4058 = vmatpush1.xpose.msra.mxu0 0.0
    %4059 = vmatprep.subr.mxu0 0.0
    %4060 = vmatpush1.xpose.msra.mxu0 0.0
    %4061 = vmatprep.subr.mxu0 0.0
    %4062 = vmatpush1.xpose.msra.mxu0 0.0
    %4063 = vmatprep.subr.mxu0 0.0
    %4064 = vmatpush1.xpose.msra.mxu0 0.0
    %4065 = vmatprep.subr.mxu0 0.0
    %4066 = vmatpush1.xpose.msra.mxu0 0.0
    %4067 = vmatprep.subr.mxu0 0.0
    %4068 = vmatpush1.xpose.msra.mxu0 0.0
    %4069 = vmatprep.subr.mxu0 0.0
    %4070 = vmatpush1.xpose.msra.mxu0 0.0
    %4071 = vmatprep.subr.mxu0 0.0
    %4072 = vmatpush1.xpose.msra.mxu0 0.0
    %4073 = vmatprep.subr.mxu0 0.0
    %4074 = vmatpush1.xpose.msra.mxu0 0.0
    %4075 = vmatprep.subr.mxu0 0.0
    %4076 = vmatpush1.xpose.msra.mxu0 0.0
    %4077 = vmatprep.subr.mxu0 0.0
    %4078 = vmatpush1.xpose.msra.mxu0 0.0
    %4079 = vmatprep.subr.mxu0 0.0
    %4080 = vmatpush1.xpose.msra.mxu0 0.0
    %4081 = vmatprep.subr.mxu0 0.0
    %4082 = vmatpush1.xpose.msra.mxu0 0.0
    %4083 = vmatprep.subr.mxu0 0.0
    %4084 = vmatpush1.xpose.msra.mxu0 0.0
    %4085 = vmatprep.subr.mxu0 0.0
    %4086 = vmatpush1.xpose.msra.mxu0 0.0
    %4087 = vmatprep.subr.mxu0 0.0
    %4088 = vmatpush1.xpose.msra.mxu0 0.0
    %4089 = vmatprep.subr.mxu0 0.0
    %4090 = vmatpush1.xpose.msra.mxu0 0.0
    %4091 = vmatprep.subr.mxu0 0.0
    %4092 = vmatpush1.xpose.msra.mxu0 0.0
    %4093 = vmatprep.subr.mxu0 0.0
    %4094 = vmatpush1.xpose.msra.mxu0 0.0
    %4095 = vmatprep.mubr.f32.mxu0 0.0
    %4096 = vmatmul.mubr.f32.gmra.mrb[0].mxu0 %v4020
    %v4097 = vpop.f32.mrb[0].mxu0
    %v4098 = vadd.f32 0.0, %v4097
    %v4099 = vpop.f32.mrb[0].mxu0
    %4100 = vdwg.mxu0
    %v4101 = vsel %vm992, %v4098, -inf
    %4102 = vmax.xlane.f32.xlu0 %v4101
    %v4103 = vpop.xlane.xlu0 %4102
    %v4104 = vsub.f32 %v4098, %v4103
    %v4105 = vmul.f32 %v4104, 1.442695
    %v4106 = vpow.pop %v4105
    %v4108 = vsel %vm999, %v4106, 0
    %4110 = vmatprep.subr.mxu0 0.0
    %4111 = vmatpush1.msra.mxu0 %v41
    %4112 = vmatprep.subr.mxu0 0.0
    %4113 = vmatpush1.msra.mxu0 %v42
    %4114 = vmatprep.subr.mxu0 0.0
    %4115 = vmatpush1.msra.mxu0 %v1004
    %4116 = vmatprep.subr.mxu0 0.0
    %4117 = vmatpush1.msra.mxu0 0.0
    %4118 = vmatprep.subr.mxu0 0.0
    %4119 = vmatpush1.msra.mxu0 0.0
    %4120 = vmatprep.subr.mxu0 0.0
    %4121 = vmatpush1.msra.mxu0 0.0
    %4122 = vmatprep.subr.mxu0 0.0
    %4123 = vmatpush1.msra.mxu0 0.0
    %4124 = vmatprep.subr.mxu0 0.0
    %4125 = vmatpush1.msra.mxu0 0.0
    %4126 = vmatprep.subr.mxu0 0.0
    %4127 = vmatpush1.msra.mxu0 0.0
    %4128 = vmatprep.subr.mxu0 0.0
    %4129 = vmatpush1.msra.mxu0 0.0
    %4130 = vmatprep.subr.mxu0 0.0
    %4131 = vmatpush1.msra.mxu0 0.0
    %4132 = vmatprep.subr.mxu0 0.0
    %4133 = vmatpush1.msra.mxu0 0.0
    %4134 = vmatprep.subr.mxu0 0.0
    %4135 = vmatpush1.msra.mxu0 0.0
    %4136 = vmatprep.subr.mxu0 0.0
    %4137 = vmatpush1.msra.mxu0 0.0
    %4138 = vmatprep.subr.mxu0 0.0
    %4139 = vmatpush1.msra.mxu0 0.0
    %4140 = vmatprep.subr.mxu0 0.0
    %4141 = vmatpush1.msra.mxu0 0.0
    %4142 = vmatprep.subr.mxu0 0.0
    %4143 = vmatpush1.msra.mxu0 0.0
    %4144 = vmatprep.subr.mxu0 0.0
    %4145 = vmatpush1.msra.mxu0 0.0
    %4146 = vmatprep.subr.mxu0 0.0
    %4147 = vmatpush1.msra.mxu0 0.0
    %4148 = vmatprep.subr.mxu0 0.0
    %4149 = vmatpush1.msra.mxu0 0.0
    %4150 = vmatprep.subr.mxu0 0.0
    %4151 = vmatpush1.msra.mxu0 0.0
    %4152 = vmatprep.subr.mxu0 0.0
    %4153 = vmatpush1.msra.mxu0 0.0
    %4154 = vmatprep.subr.mxu0 0.0
    %4155 = vmatpush1.msra.mxu0 0.0
    %4156 = vmatprep.subr.mxu0 0.0
    %4157 = vmatpush1.msra.mxu0 0.0
    %4158 = vmatprep.subr.mxu0 0.0
    %4159 = vmatpush1.msra.mxu0 0.0
    %4160 = vmatprep.subr.mxu0 0.0
    %4161 = vmatpush1.msra.mxu0 0.0
    %4162 = vmatprep.subr.mxu0 0.0
    %4163 = vmatpush1.msra.mxu0 0.0
    %4164 = vmatprep.subr.mxu0 0.0
    %4165 = vmatpush1.msra.mxu0 0.0
    %4166 = vmatprep.subr.mxu0 0.0
    %4167 = vmatpush1.msra.mxu0 0.0
    %4168 = vmatprep.subr.mxu0 0.0
    %4169 = vmatpush1.msra.mxu0 0.0
    %4170 = vmatprep.subr.mxu0 0.0
    %4171 = vmatpush1.msra.mxu0 0.0
    %4172 = vmatprep.subr.mxu0 0.0
    %4173 = vmatpush1.msra.mxu0 0.0
    %4174 = vmatprep.mubr.f32.mxu0 0.0
    %4175 = vmatmul.mubr.f32.gmra.mrb[0].mxu0 %v4108
    %v4176 = vpop.f32.mrb[0].mxu0
    %v4177 = vadd.f32 0.0, %v4176
    %v4178 = vpop.f32.mrb[0].mxu0
    %4179 = vdwg.mxu0
    %v4180 = vmax.f32 %v4177, 1e-20
    %v4181 = vrcp.pop %v4180
    %v4182 = vmul.f32 %v4106, %v4181
    %v4184 = vsel %vm999, %v4182, 0
    %v4187 = vsel %vm1003, %v4018, 0
    %4189 = vmatprep.subr.mxu0 0.0
    %4190 = vmatpush1.msra.mxu0 %v4016
    %4191 = vmatprep.subr.mxu0 0.0
    %4192 = vmatpush1.msra.mxu0 %v4017
    %4193 = vmatprep.subr.mxu0 0.0
    %4194 = vmatpush1.msra.mxu0 %v4187
    %4195 = vmatprep.subr.mxu0 0.0
    %4196 = vmatpush1.msra.mxu0 0.0
    %4197 = vmatprep.subr.mxu0 0.0
    %4198 = vmatpush1.msra.mxu0 0.0
    %4199 = vmatprep.subr.mxu0 0.0
    %4200 = vmatpush1.msra.mxu0 0.0
    %4201 = vmatprep.subr.mxu0 0.0
    %4202 = vmatpush1.msra.mxu0 0.0
    %4203 = vmatprep.subr.mxu0 0.0
    %4204 = vmatpush1.msra.mxu0 0.0
    %4205 = vmatprep.subr.mxu0 0.0
    %4206 = vmatpush1.msra.mxu0 0.0
    %4207 = vmatprep.subr.mxu0 0.0
    %4208 = vmatpush1.msra.mxu0 0.0
    %4209 = vmatprep.subr.mxu0 0.0
    %4210 = vmatpush1.msra.mxu0 0.0
    %4211 = vmatprep.subr.mxu0 0.0
    %4212 = vmatpush1.msra.mxu0 0.0
    %4213 = vmatprep.subr.mxu0 0.0
    %4214 = vmatpush1.msra.mxu0 0.0
    %4215 = vmatprep.subr.mxu0 0.0
    %4216 = vmatpush1.msra.mxu0 0.0
    %4217 = vmatprep.subr.mxu0 0.0
    %4218 = vmatpush1.msra.mxu0 0.0
    %4219 = vmatprep.subr.mxu0 0.0
    %4220 = vmatpush1.msra.mxu0 0.0
    %4221 = vmatprep.subr.mxu0 0.0
    %4222 = vmatpush1.msra.mxu0 0.0
    %4223 = vmatprep.subr.mxu0 0.0
    %4224 = vmatpush1.msra.mxu0 0.0
    %4225 = vmatprep.subr.mxu0 0.0
    %4226 = vmatpush1.msra.mxu0 0.0
    %4227 = vmatprep.subr.mxu0 0.0
    %4228 = vmatpush1.msra.mxu0 0.0
    %4229 = vmatprep.subr.mxu0 0.0
    %4230 = vmatpush1.msra.mxu0 0.0
    %4231 = vmatprep.subr.mxu0 0.0
    %4232 = vmatpush1.msra.mxu0 0.0
    %4233 = vmatprep.subr.mxu0 0.0
    %4234 = vmatpush1.msra.mxu0 0.0
    %4235 = vmatprep.subr.mxu0 0.0
    %4236 = vmatpush1.msra.mxu0 0.0
    %4237 = vmatprep.subr.mxu0 0.0
    %4238 = vmatpush1.msra.mxu0 0.0
    %4239 = vmatprep.subr.mxu0 0.0
    %4240 = vmatpush1.msra.mxu0 0.0
    %4241 = vmatprep.subr.mxu0 0.0
    %4242 = vmatpush1.msra.mxu0 0.0
    %4243 = vmatprep.subr.mxu0 0.0
    %4244 = vmatpush1.msra.mxu0 0.0
    %4245 = vmatprep.subr.mxu0 0.0
    %4246 = vmatpush1.msra.mxu0 0.0
    %4247 = vmatprep.subr.mxu0 0.0
    %4248 = vmatpush1.msra.mxu0 0.0
    %4249 = vmatprep.subr.mxu0 0.0
    %4250 = vmatpush1.msra.mxu0 0.0
    %4251 = vmatprep.subr.mxu0 0.0
    %4252 = vmatpush1.msra.mxu0 0.0
    %4253 = vmatprep.mubr.f32.mxu0 0.0
    %4254 = vmatmul.mubr.f32.gmra.mrb[0].mxu0 %v4184
    %v4255 = vpop.f32.mrb[0].mxu0
    %v4256 = vadd.f32 0.0, %v4255
    %v4257 = vpop.f32.mrb[0].mxu0
    %4258 = vdwg.mxu0
    %v4259 = vpack.c.bf16 %v4256, %v4256
    %v4261 = vsel %vm329, %v4259, 0
    %4263 = vmatprep.subr.bf16.mxu0 0
    %4264 = vmatpush1.bf16.msra.mxu0 %v3222
    %4265 = vmatprep.subr.bf16.mxu0 0
    %4266 = vmatpush1.bf16.msra.mxu0 %v3224
    %4267 = vmatprep.subr.bf16.mxu0 0
    %4268 = vmatpush1.bf16.msra.mxu0 0
    %4269 = vmatprep.subr.bf16.mxu0 0
    %4270 = vmatpush1.bf16.msra.mxu0 0
    %4271 = vmatprep.subr.bf16.mxu0 0
    %4272 = vmatpush1.bf16.msra.mxu0 0
    %4273 = vmatprep.subr.bf16.mxu0 0
    %4274 = vmatpush1.bf16.msra.mxu0 0
    %4275 = vmatprep.subr.bf16.mxu0 0
    %4276 = vmatpush1.bf16.msra.mxu0 0
    %4277 = vmatprep.subr.bf16.mxu0 0
    %4278 = vmatpush1.bf16.msra.mxu0 0
    %4279 = vmatprep.subr.bf16.mxu0 0
    %4280 = vmatpush1.bf16.msra.mxu0 0
    %4281 = vmatprep.subr.bf16.mxu0 0
    %4282 = vmatpush1.bf16.msra.mxu0 0
    %4283 = vmatprep.subr.bf16.mxu0 0
    %4284 = vmatpush1.bf16.msra.mxu0 0
    %4285 = vmatprep.subr.bf16.mxu0 0
    %4286 = vmatpush1.bf16.msra.mxu0 0
    %4287 = vmatprep.subr.bf16.mxu0 0
    %4288 = vmatpush1.bf16.msra.mxu0 0
    %4289 = vmatprep.subr.bf16.mxu0 0
    %4290 = vmatpush1.bf16.msra.mxu0 0
    %4291 = vmatprep.subr.bf16.mxu0 0
    %4292 = vmatpush1.bf16.msra.mxu0 0
    %4293 = vmatprep.subr.bf16.mxu0 0
    %4294 = vmatpush1.bf16.msra.mxu0 0
    %4295 = vmatprep.mubr.bf16.mxu0 0
    %4296 = vmatmul.mubr.bf16.gmra.mrb[0].mxu0 %v4261
    %v4297 = vpop.f32.mrb[0].mxu0
    %v4298 = vadd.f32 0.0, %v4297
    %v4299 = vpop.f32.mrb[0].mxu0
    %v4300 = vpop.f32.mrb[0].mxu0
    %v4301 = vpop.f32.mrb[0].mxu0
    %4302 = vdwg.mxu0
    %v4303 = vadd.f32 %v2349, %v4298
    %v4304 = vadd.f32 %v4303, %v3274
    %v4305 = vsel %vm291, %v4304, 0.0
    %4306 = vadd.xlane.f32.xlu0 %v4305
    %v4307 = vpop.xlane.xlu0 %4306
    %v4308 = vmul.f32 %v4307, %v295
    %v4309 = vsub.f32 %v4304, %v4308
    %v4310 = vmul.f32 %v4309, %v4309
    %v4311 = vsel %vm291, %v4310, 0.0
    %4312 = vadd.xlane.f32.xlu0 %v4311
    %v4313 = vpop.xlane.xlu0 %4312
    %v4314 = vmul.f32 %v4313, %v295
    %v4315 = vadd.f32 %v4314, 1e-05
    %v4316 = vrsqrt.pop %v4315
    %v4317 = vmul.f32 %v4309, %v4316
    %v4318 = vmul.f32 %v4317, %v3292
    %v4319 = vadd.f32 %v4318, %v3297
    %v4320 = vpack.c.bf16 %v4319, %v4319
    %v4322 = vsel %vm329, %v4320, 0
    %4324 = vmatprep.subr.bf16.mxu0 0
    %4325 = vmatpush1.bf16.msra.mxu0 %v3314
    %4326 = vmatprep.subr.bf16.mxu0 0
    %4327 = vmatpush1.bf16.msra.mxu0 %v3315
    %4328 = vmatprep.subr.bf16.mxu0 0
    %4329 = vmatpush1.bf16.msra.mxu0 0
    %4330 = vmatprep.subr.bf16.mxu0 0
    %4331 = vmatpush1.bf16.msra.mxu0 0
    %4332 = vmatprep.subr.bf16.mxu0 0
    %4333 = vmatpush1.bf16.msra.mxu0 0
    %4334 = vmatprep.subr.bf16.mxu0 0
    %4335 = vmatpush1.bf16.msra.mxu0 0
    %4336 = vmatprep.subr.bf16.mxu0 0
    %4337 = vmatpush1.bf16.msra.mxu0 0
    %4338 = vmatprep.subr.bf16.mxu0 0
    %4339 = vmatpush1.bf16.msra.mxu0 0
    %4340 = vmatprep.subr.bf16.mxu0 0
    %4341 = vmatpush1.bf16.msra.mxu0 0
    %4342 = vmatprep.subr.bf16.mxu0 0
    %4343 = vmatpush1.bf16.msra.mxu0 0
    %4344 = vmatprep.subr.bf16.mxu0 0
    %4345 = vmatpush1.bf16.msra.mxu0 0
    %4346 = vmatprep.subr.bf16.mxu0 0
    %4347 = vmatpush1.bf16.msra.mxu0 0
    %4348 = vmatprep.subr.bf16.mxu0 0
    %4349 = vmatpush1.bf16.msra.mxu0 0
    %4350 = vmatprep.subr.bf16.mxu0 0
    %4351 = vmatpush1.bf16.msra.mxu0 0
    %4352 = vmatprep.subr.bf16.mxu0 0
    %4353 = vmatpush1.bf16.msra.mxu0 0
    %4354 = vmatprep.subr.bf16.mxu0 0
    %4355 = vmatpush1.bf16.msra.mxu0 0
    %4356 = vmatprep.mubr.bf16.mxu0 0
    %4357 = vmatmul.mubr.bf16.gmra.mrb[0].mxu0 %v4322
    %v4358 = vpop.f32.mrb[0].mxu0
    %v4359 = vadd.f32 %v3304, %v4358
    %v4360 = vpop.f32.mrb[0].mxu0
    %v4361 = vpop.f32.mrb[0].mxu0
    %v4362 = vpop.f32.mrb[0].mxu0
    %4363 = vdwg.mxu0
    %v4364 = vmul.f32 %v4359, %v4359
    %v4365 = vmul.f32 %v4359, %v4364
    %v4366 = vmul.f32 %v4365, 0.044715
    %v4367 = vadd.f32 %v4359, %v4366
    %v4368 = vmul.f32 %v4367, 0.7978846
    %v4369 = vtanh.pop %v4368
    %v4370 = vadd.f32 %v4369, 1.0
    %v4371 = vmul.f32 %v4370, 0.5
    %v4372 = vmul.f32 %v4359, %v4371
    %v4373 = vpack.c.bf16 %v4372, %v4372
    %4374 = vmatprep.subr.bf16.mxu0 0
    %4375 = vmatpush1.bf16.msra.mxu0 %v3407
    %4376 = vmatprep.subr.bf16.mxu0 0
    %4377 = vmatpush1.bf16.msra.mxu0 %v3408
    %4378 = vmatprep.subr.bf16.mxu0 0
    %4379 = vmatpush1.bf16.msra.mxu0 %v3409
    %4380 = vmatprep.subr.bf16.mxu0 0
    %4381 = vmatpush1.bf16.msra.mxu0 %v3410
    %4382 = vmatprep.subr.bf16.mxu0 0
    %4383 = vmatpush1.bf16.msra.mxu0 %v3411
    %4384 = vmatprep.subr.bf16.mxu0 0
    %4385 = vmatpush1.bf16.msra.mxu0 %v3412
    %4386 = vmatprep.subr.bf16.mxu0 0
    %4387 = vmatpush1.bf16.msra.mxu0 %v3413
    %4388 = vmatprep.subr.bf16.mxu0 0
    %4389 = vmatpush1.bf16.msra.mxu0 %v3414
    %4390 = vmatprep.subr.bf16.mxu0 0
    %4391 = vmatpush1.bf16.msra.mxu0 0
    %4392 = vmatprep.subr.bf16.mxu0 0
    %4393 = vmatpush1.bf16.msra.mxu0 0
    %4394 = vmatprep.subr.bf16.mxu0 0
    %4395 = vmatpush1.bf16.msra.mxu0 0
    %4396 = vmatprep.subr.bf16.mxu0 0
    %4397 = vmatpush1.bf16.msra.mxu0 0
    %4398 = vmatprep.subr.bf16.mxu0 0
    %4399 = vmatpush1.bf16.msra.mxu0 0
    %4400 = vmatprep.subr.bf16.mxu0 0
    %4401 = vmatpush1.bf16.msra.mxu0 0
    %4402 = vmatprep.subr.bf16.mxu0 0
    %4403 = vmatpush1.bf16.msra.mxu0 0
    %4404 = vmatprep.subr.bf16.mxu0 0
    %4405 = vmatpush1.bf16.msra.mxu0 0
    %4406 = vmatprep.mubr.bf16.mxu0 0
    %4407 = vmatmul.mubr.bf16.gmra.mrb[0].mxu0 %v4373
    %v4408 = vpop.f32.mrb[0].mxu0
    %v4409 = vadd.f32 %v3374, %v4408
    %v4410 = vpop.f32.mrb[0].mxu0
    %v4411 = vpop.f32.mrb[0].mxu0
    %v4412 = vpop.f32.mrb[0].mxu0
    %4413 = vdwg.mxu0
    %v4414 = vadd.f32 %v4304, %v4409
    %vm4415 = vcmask 253952
    %v4416 = vsel %vm4415, %v3463, 0.0
    %4417 = vadd.xlane.f32.xlu0 %v4416
    %v4418 = vpop.xlane.xlu0 %4417
    %v4419 = vmul.f32 %v4418, %v295
    %v4420 = vsub.f32 %v3463, %v4419
    %v4421 = vmul.f32 %v4420, %v4420
    %v4422 = vsel %vm4415, %v4421, 0.0
    %4423 = vadd.xlane.f32.xlu0 %v4422
    %v4424 = vpop.xlane.xlu0 %4423
    %v4425 = vmul.f32 %v4424, %v295
    %v4426 = vadd.f32 %v4425, 1e-05
    %v4427 = vrsqrt.pop %v4426
    %v4428 = vmul.f32 %v4420, %v4427
    %v4429 = vmul.f32 %v4428, %v45
    %v4430 = vadd.f32 %v4429, %v46
    %4431 = vst.msk [vmem:[#allocation2] sm:$0x1] %vm4415, %v4430
    %v4432 = vsel %vm4415, %v4414, 0.0
    %4433 = vadd.xlane.f32.xlu0 %v4432
    %v4434 = vpop.xlane.xlu0 %4433
    %v4435 = vmul.f32 %v4434, %v295
    %v4436 = vsub.f32 %v4414, %v4435
    %v4437 = vmul.f32 %v4436, %v4436
    %v4438 = vsel %vm4415, %v4437, 0.0
    %4439 = vadd.xlane.f32.xlu0 %v4438
    %v4440 = vpop.xlane.xlu0 %4439
    %v4441 = vmul.f32 %v4440, %v295
    %v4442 = vadd.f32 %v4441, 1e-05
    %v4443 = vrsqrt.pop %v4442
    %v4444 = vmul.f32 %v4436, %v4443
    %v4445 = vmul.f32 %v4444, %v45
    %v4446 = vadd.f32 %v4445, %v46
    %s4447 = scalar_lea.vmem [#allocation2], 1
    %4448 = vst.msk [vmem:[%s4447] sm:$0x1] %vm4415, %v4446
    // Predicated region
    $region38: #{vision_transformer_forward.1} parent=1 // pred_check
      _
    $region39: #{vision_transformer_forward.1} parent=1 // pred_check_branch
      %4450 = sbr.rel (0) target = $region41
    $region40: #{vision_transformer_forward.1} parent=1 // pred_region
      %s4452 = ssub.s32 32, 32
      %4453 = vsyncadd [#allocation3], %s4452
      %s4454 = sshll.u32 [#allocation2], 4
      %s4455 = int_to_ptr.vmem [resolvable:$true] %s4454
      %4460 = dma.vmem_to_hbm [thread:$0]  %s4455, 32, %s9, [#allocation3], 16, 16, 1
    $region41: #{vision_transformer_forward.1} parent=1 // pred_fallthru
      _
    // Predicated region
    $region42: #{vision_transformer_forward.1} parent=1 // pred_check
      _
    $region43: #{vision_transformer_forward.1} parent=1 // pred_check_branch
      %4462 = sbr.rel (0) target = $region45
    $region44: #{vision_transformer_forward.1} parent=1 // pred_region
      %4463 = dma.done [#allocation3], 32
    $region45: #{vision_transformer_forward.1} parent=1 // pred_fallthru
      _
    %4464 = vsyncpa [#allocation3], 1

</llo_original>
